<compile_context>
chip_gen: v5e
topology: v5e:2x2
jax: 0.10.0
libtpu: 0.0.40
codegen_flags: <defaults>
</compile_context>

<pallas_src>
import jax
import jax.numpy as jnp
from jax.experimental import pallas as pl
from jax.experimental.pallas import tpu as pltpu

INPUT_SIZE = 28 * 28      # 784
HIDDEN1_SIZE = 1024
HIDDEN2_SIZE = 512
OUTPUT_SIZE = 10

K_PAD = 896               # fc1 contraction dim padded 784 -> 7*128
OUT_PAD = 128             # fc3 output dim padded for lane-dense stores
TB_MAX = 512              # max batch tile (sized for v7x 64 MiB/TC VMEM)


def _round_up(n, m):
    return ((n + m - 1) // m) * m


def _choose_batch_tile(b16):
    """b16 = B rounded up to a multiple of 16 (bf16 packs 16 sublanes/vreg).

    Returns (tb, Bp): batch tile (multiple of 16, <= TB_MAX) and padded batch,
    picked to minimize phantom (padded) rows rather than rounding B up to tb.
    """
    if b16 <= TB_MAX:
        return b16, b16
    best_key, best_tb = None, 16
    for tb in range(TB_MAX, 15, -16):
        pad = _round_up(b16, tb) - b16
        key = (pad, -tb)                      # least padding, then largest tile
        if best_key is None or key < best_key:
            best_key, best_tb = key, tb
        if pad == 0:
            break
    return best_tb, _round_up(b16, best_tb)


def mlp_kernel(x_ref, w1_ref, b1_ref, w2_ref, b2_ref, w3_ref, b3_ref, o_ref):
    # fc1 + ReLU  (bf16 MXU matmul, f32 accumulate; bias add in f32)
    z1 = jnp.dot(x_ref[...], w1_ref[...], preferred_element_type=jnp.float32)
    z1 = jnp.maximum(z1 + b1_ref[...], 0.0).astype(jnp.bfloat16)
    # fc2 + ReLU
    z2 = jnp.dot(z1, w2_ref[...], preferred_element_type=jnp.float32)
    z2 = jnp.maximum(z2 + b2_ref[...], 0.0).astype(jnp.bfloat16)
    # fc3 (no activation), lane-dense padded output
    y = jnp.dot(z2, w3_ref[...], preferred_element_type=jnp.float32)
    o_ref[...] = (y + b3_ref[...]).astype(o_ref.dtype)


@jax.jit
def mlp_forward(xp, params):
    """xp: [B, K_PAD] bf16 (from prepare_input). params: from prepare_params."""
    w1, b1, w2, b2, w3, b3 = params
    B = xp.shape[0]

    tb, Bp = _choose_batch_tile(_round_up(B, 16))
    if Bp != B:
        xp = jnp.pad(xp, ((0, Bp - B), (0, 0)))

    # Weights/biases have constant index_maps -> fetched once and VMEM-resident;
    # single-buffer them so the pipeline doesn't allocate a dead second buffer.
    const = lambda shape: pl.BlockSpec(
        shape, lambda i: (0, 0), pipeline_mode=pl.Buffered(1))

    out_p = pl.pallas_call(
        mlp_kernel,
        out_shape=jax.ShapeDtypeStruct((Bp, OUT_PAD), jnp.float32),
        grid=(pl.cdiv(Bp, tb),),
        in_specs=[
            pl.BlockSpec((tb, K_PAD), lambda i: (i, 0)),   # x: tiled over batch
            const(w1.shape), const(b1.shape),
            const(w2.shape), const(b2.shape),
            const(w3.shape), const(b3.shape),
        ],
        out_specs=pl.BlockSpec((tb, OUT_PAD), lambda i: (i, 0)),
        compiler_params=pltpu.CompilerParams(
            dimension_semantics=("parallel",),             # megacore sharding
            vmem_limit_bytes=40 << 20,
        ),
    )(xp, w1, b1, w2, b2, w3, b3)

    return out_p[:B, :OUTPUT_SIZE]


def prepare_input(x):
    """Cast to bf16 and pad K 784 -> K_PAD.  Call once outside the hot loop so
    the kernel does not pay an extra pad/cast HBM pass per forward."""
    return jnp.pad(x.astype(jnp.bfloat16), ((0, 0), (0, K_PAD - x.shape[1])))


def init_params(key):
    """Deterministic synthetic f32 parameters (nn.Linear init, stored as [in, out])."""
    ks = jax.random.split(key, 6)
    s1 = 1.0 / jnp.sqrt(INPUT_SIZE)
    s2 = 1.0 / jnp.sqrt(HIDDEN1_SIZE)
    s3 = 1.0 / jnp.sqrt(HIDDEN2_SIZE)
    w1 = jax.random.uniform(ks[0], (INPUT_SIZE, HIDDEN1_SIZE), jnp.float32, -s1, s1)
    b1 = jax.random.uniform(ks[1], (1, HIDDEN1_SIZE), jnp.float32, -s1, s1)
    w2 = jax.random.uniform(ks[2], (HIDDEN1_SIZE, HIDDEN2_SIZE), jnp.float32, -s2, s2)
    b2 = jax.random.uniform(ks[3], (1, HIDDEN2_SIZE), jnp.float32, -s2, s2)
    w3 = jax.random.uniform(ks[4], (HIDDEN2_SIZE, OUTPUT_SIZE), jnp.float32, -s3, s3)
    b3 = jax.random.uniform(ks[5], (1, OUTPUT_SIZE), jnp.float32, -s3, s3)
    return w1, b1, w2, b2, w3, b3


def prepare_params(w1, b1, w2, b2, w3, b3):
    """Pad + cast f32 params into the kernel layout (bf16 weights, f32 biases)."""
    w1p = jnp.pad(w1, ((0, K_PAD - w1.shape[0]), (0, 0))).astype(jnp.bfloat16)
    w2p = w2.astype(jnp.bfloat16)
    w3p = jnp.pad(w3, ((0, 0), (0, OUT_PAD - w3.shape[1]))).astype(jnp.bfloat16)
    b3p = jnp.pad(b3, ((0, 0), (0, OUT_PAD - b3.shape[1]))).astype(jnp.float32)
    return w1p, b1.astype(jnp.float32), w2p, b2.astype(jnp.float32), w3p, b3p


def reference_forward_f32(x, w1, b1, w2, b2, w3, b3):
    """Exact f32 forward of the original PyTorch module."""
    z1 = jnp.maximum(x @ w1 + b1, 0.0)
    z2 = jnp.maximum(z1 @ w2 + b2, 0.0)
    return z2 @ w3 + b3


def reference_forward_bf16(x, params):
    """Reference with the same bf16 casts as the kernel (tight comparison)."""
    w1, b1, w2, b2, w3, b3 = params
    f32 = lambda a: a.astype(jnp.float32)
    xp = prepare_input(x)
    z1 = jnp.maximum(f32(xp) @ f32(w1) + b1, 0.0)
    z2 = jnp.maximum(f32(z1.astype(jnp.bfloat16)) @ f32(w2) + b2, 0.0)
    y = f32(z2.astype(jnp.bfloat16)) @ f32(w3) + b3
    return y[:, :OUTPUT_SIZE]


if __name__ == "__main__":
    key = jax.random.PRNGKey(0)
    k_x, k_p = jax.random.split(key)

    B = 8  # small batch
    x = jax.random.normal(k_x, (B, INPUT_SIZE), jnp.float32)

    raw_params = init_params(k_p)
    params = prepare_params(*raw_params)
    xp = prepare_input(x)          # one-time bf16 cast + K pad, outside hot loop

    y = mlp_forward(xp, params)
    y = jax.block_until_ready(y)

    assert y.shape == (B, OUTPUT_SIZE)

    # Tight check against a reference that applies the same bf16 casts.
    y_bf = reference_forward_bf16(x, params)
    assert jnp.allclose(y, y_bf, atol=2e-3, rtol=2e-3), "mismatch vs bf16 reference"

    # Looser check against the exact f32 module semantics.
    y_f32 = reference_forward_f32(x, *raw_params)
    assert jnp.allclose(y, y_f32, atol=5e-2, rtol=5e-2), "mismatch vs f32 reference"

    print("KERNEL_OK")
</pallas_src>

<mosaic_0001>
module attributes {stable_mosaic.version = 11 : i64} {
  func.func @mlp_kernel(%arg0: i32, %arg1: memref<16x896xbf16, #tpu.memory_space<vmem>>, %arg2: memref<896x1024xbf16, #tpu.memory_space<vmem>>, %arg3: memref<1x1024xf32, #tpu.memory_space<vmem>>, %arg4: memref<1024x512xbf16, #tpu.memory_space<vmem>>, %arg5: memref<1x512xf32, #tpu.memory_space<vmem>>, %arg6: memref<512x128xbf16, #tpu.memory_space<vmem>>, %arg7: memref<1x128xf32, #tpu.memory_space<vmem>>, %arg8: memref<16x128xf32, #tpu.memory_space<vmem>>) attributes {dimension_semantics = [#tpu.dimension_semantics<parallel>], iteration_bounds = array<i64: 1>, scalar_prefetch = 0 : i64, scratch_operands = 0 : i64, tpu.core_type = #tpu.core_type<tc>, window_params = [{transform_indices = @transform_0, window_bounds = array<i64: 16, 896>}, {pipeline_mode = #tpu.pipeline_mode<synchronous>, transform_indices = @transform_1, window_bounds = array<i64: 896, 1024>}, {pipeline_mode = #tpu.pipeline_mode<synchronous>, transform_indices = @transform_2, window_bounds = array<i64: 1, 1024>}, {pipeline_mode = #tpu.pipeline_mode<synchronous>, transform_indices = @transform_3, window_bounds = array<i64: 1024, 512>}, {pipeline_mode = #tpu.pipeline_mode<synchronous>, transform_indices = @transform_4, window_bounds = array<i64: 1, 512>}, {pipeline_mode = #tpu.pipeline_mode<synchronous>, transform_indices = @transform_5, window_bounds = array<i64: 512, 128>}, {pipeline_mode = #tpu.pipeline_mode<synchronous>, transform_indices = @transform_6, window_bounds = array<i64: 1, 128>}, {transform_indices = @transform_7, window_bounds = array<i64: 16, 128>}]} {
    %c0 = arith.constant 0 : index
    %c0_0 = arith.constant 0 : index
    %0 = vector.load %arg1[%c0, %c0_0] : memref<16x896xbf16, #tpu.memory_space<vmem>>, vector<16x896xbf16>
    %c0_1 = arith.constant 0 : index
    %c0_2 = arith.constant 0 : index
    %1 = vector.load %arg2[%c0_1, %c0_2] : memref<896x1024xbf16, #tpu.memory_space<vmem>>, vector<896x1024xbf16>
    %cst = arith.constant dense<0.000000e+00> : vector<16x1024xf32>
    %2 = tpu.matmul %0, %1, %cst {dimension_numbers = #tpu.dot_dimension_numbers<[1], [0], [0], [1], [0, 0, 1, 1], [], []>} : vector<16x896xbf16>, vector<896x1024xbf16>, vector<16x1024xf32> -> vector<16x1024xf32>
    %c0_3 = arith.constant 0 : index
    %c0_4 = arith.constant 0 : index
    %3 = vector.load %arg3[%c0_3, %c0_4] : memref<1x1024xf32, #tpu.memory_space<vmem>>, vector<1x1024xf32>
    %4 = vector.broadcast %3 : vector<1x1024xf32> to vector<16x1024xf32>
    %5 = arith.addf %2, %4 : vector<16x1024xf32>
    %cst_5 = arith.constant 0.000000e+00 : f32
    %6 = vector.broadcast %cst_5 : f32 to vector<16x1024xf32>
    %7 = arith.maximumf %5, %6 : vector<16x1024xf32>
    %8 = arith.truncf %7 : vector<16x1024xf32> to vector<16x1024xbf16>
    %c0_6 = arith.constant 0 : index
    %c0_7 = arith.constant 0 : index
    %9 = vector.load %arg4[%c0_6, %c0_7] : memref<1024x512xbf16, #tpu.memory_space<vmem>>, vector<1024x512xbf16>
    %cst_8 = arith.constant dense<0.000000e+00> : vector<16x512xf32>
    %10 = tpu.matmul %8, %9, %cst_8 {dimension_numbers = #tpu.dot_dimension_numbers<[1], [0], [0], [1], [0, 0, 1, 1], [], []>} : vector<16x1024xbf16>, vector<1024x512xbf16>, vector<16x512xf32> -> vector<16x512xf32>
    %c0_9 = arith.constant 0 : index
    %c0_10 = arith.constant 0 : index
    %11 = vector.load %arg5[%c0_9, %c0_10] : memref<1x512xf32, #tpu.memory_space<vmem>>, vector<1x512xf32>
    %12 = vector.broadcast %11 : vector<1x512xf32> to vector<16x512xf32>
    %13 = arith.addf %10, %12 : vector<16x512xf32>
    %cst_11 = arith.constant 0.000000e+00 : f32
    %14 = vector.broadcast %cst_11 : f32 to vector<16x512xf32>
    %15 = arith.maximumf %13, %14 : vector<16x512xf32>
    %16 = arith.truncf %15 : vector<16x512xf32> to vector<16x512xbf16>
    %c0_12 = arith.constant 0 : index
    %c0_13 = arith.constant 0 : index
    %17 = vector.load %arg6[%c0_12, %c0_13] : memref<512x128xbf16, #tpu.memory_space<vmem>>, vector<512x128xbf16>
    %cst_14 = arith.constant dense<0.000000e+00> : vector<16x128xf32>
    %18 = tpu.matmul %16, %17, %cst_14 {dimension_numbers = #tpu.dot_dimension_numbers<[1], [0], [0], [1], [0, 0, 1, 1], [], []>} : vector<16x512xbf16>, vector<512x128xbf16>, vector<16x128xf32> -> vector<16x128xf32>
    %c0_15 = arith.constant 0 : index
    %c0_16 = arith.constant 0 : index
    %19 = vector.load %arg7[%c0_15, %c0_16] : memref<1x128xf32, #tpu.memory_space<vmem>>, vector<1x128xf32>
    %20 = vector.broadcast %19 : vector<1x128xf32> to vector<16x128xf32>
    %21 = arith.addf %18, %20 : vector<16x128xf32>
    %c0_17 = arith.constant 0 : index
    %c0_18 = arith.constant 0 : index
    %22 = vector.load %arg8[%c0_17, %c0_18] : memref<16x128xf32, #tpu.memory_space<vmem>>, vector<16x128xf32>
    tpu.vector_store %arg8[%c0_17, %c0_18], %21 {strides = array<i32>} : memref<16x128xf32, #tpu.memory_space<vmem>>, vector<16x128xf32>,
    return
  }
  func.func @transform_0(%arg0: i32) -> (i32, i32) {
    %c0_i32 = arith.constant 0 : i32
    %c0_i32_0 = arith.constant 0 : i32
    return %arg0, %c0_i32 : i32, i32
  }
  func.func @transform_1(%arg0: i32) -> (i32, i32) {
    %c0_i32 = arith.constant 0 : i32
    %c0_i32_0 = arith.constant 0 : i32
    %c0_i32_1 = arith.constant 0 : i32
    return %c0_i32, %c0_i32_0 : i32, i32
  }
  func.func @transform_2(%arg0: i32) -> (i32, i32) {
    %c0_i32 = arith.constant 0 : i32
    %c0_i32_0 = arith.constant 0 : i32
    %c0_i32_1 = arith.constant 0 : i32
    return %c0_i32, %c0_i32_0 : i32, i32
  }
  func.func @transform_3(%arg0: i32) -> (i32, i32) {
    %c0_i32 = arith.constant 0 : i32
    %c0_i32_0 = arith.constant 0 : i32
    %c0_i32_1 = arith.constant 0 : i32
    return %c0_i32, %c0_i32_0 : i32, i32
  }
  func.func @transform_4(%arg0: i32) -> (i32, i32) {
    %c0_i32 = arith.constant 0 : i32
    %c0_i32_0 = arith.constant 0 : i32
    %c0_i32_1 = arith.constant 0 : i32
    return %c0_i32, %c0_i32_0 : i32, i32
  }
  func.func @transform_5(%arg0: i32) -> (i32, i32) {
    %c0_i32 = arith.constant 0 : i32
    %c0_i32_0 = arith.constant 0 : i32
    %c0_i32_1 = arith.constant 0 : i32
    return %c0_i32, %c0_i32_0 : i32, i32
  }
  func.func @transform_6(%arg0: i32) -> (i32, i32) {
    %c0_i32 = arith.constant 0 : i32
    %c0_i32_0 = arith.constant 0 : i32
    %c0_i32_1 = arith.constant 0 : i32
    return %c0_i32, %c0_i32_0 : i32, i32
  }
  func.func @transform_7(%arg0: i32) -> (i32, i32) {
    %c0_i32 = arith.constant 0 : i32
    %c0_i32_0 = arith.constant 0 : i32
    return %arg0, %c0_i32 : i32, i32
  }
}

</mosaic_0001>

<llo_original>
// kernel: mlp_forward.1
$region0: #{mlp_forward.1}
  #allocation0 [shape = 'u32[]', space=smem, size = 0x4, offset = 0x4, fixed_abs, tag = 'smem constant byte address 0x4 - core index']
  #allocation1 [shape = 'u32[72,128]{1,0:T(1,128)}', space=vmem, size = 0x9000, scoped, tag = 'internal scratch']
  %s0 = inlined_call_operand.vmem [shape: bf16[16,896], index: 0, kind: input, shape index: {}]
  %s1 = inlined_call_operand.hbm [shape: bf16[896,1024], index: 1, kind: input, shape index: {}]
  %s2 = inlined_call_operand.hbm [shape: f32[1,1024], index: 2, kind: input, shape index: {}]
  %s3 = inlined_call_operand.hbm [shape: bf16[1024,512], index: 3, kind: input, shape index: {}]
  %s4 = inlined_call_operand.hbm [shape: f32[1,512], index: 4, kind: input, shape index: {}]
  %s5 = inlined_call_operand.hbm [shape: bf16[512,128], index: 5, kind: input, shape index: {}]
  %s6 = inlined_call_operand.hbm [shape: f32[1,128], index: 6, kind: input, shape index: {}]
  %s7 = inlined_call_operand.vmem [shape: f32[16,128], index: 7, kind: output, shape index: {}]
  %s8 = sld [smem:[#allocation0]]
  $region62: #{mlp_forward.1} parent=0
    _
  %s10 = ssub.s32 1, %s8
  %s11 = scalar_select 0, %s10, %s8
  $region1: #{mlp_forward.1} parent=0
    #allocation2 [shape = 'u8[1835008]{0}', space=vmem, size = 0x1c0000, scoped, tag = 'input window, operand 1, single buffered']
    #allocation3 [shape = 's32[1]{0}', space=sflag, size = 0x4, scoped, tag = 'scoped memory for mlp_forward.1']
    #allocation4 [shape = 'u8[4096]{0}', space=vmem, size = 0x1000, scoped, tag = 'input window, operand 2, single buffered']
    #allocation5 [shape = 's32[1]{0}', space=sflag, size = 0x4, scoped, tag = 'scoped memory for mlp_forward.1']
    #allocation6 [shape = 'u8[1048576]{0}', space=vmem, size = 0x100000, scoped, tag = 'input window, operand 3, single buffered']
    #allocation7 [shape = 'u8[2048]{0}', space=vmem, size = 0x800, scoped, tag = 'input window, operand 4, single buffered']
    #allocation8 [shape = 's32[1]{0}', space=sflag, size = 0x4, scoped, tag = 'scoped memory for mlp_forward.1']
    #allocation9 [shape = 'u8[131072]{0}', space=vmem, size = 0x20000, scoped, tag = 'input window, operand 5, single buffered']
    #allocation10 [shape = 'u8[512]{0}', space=vmem, size = 0x400, scoped, tag = 'input window, operand 6, single buffered']
    #allocation11 [shape = 's32[1]{0}', space=sflag, size = 0x4, scoped, tag = 'scoped memory for mlp_forward.1']
    %12 = vsyncpa [#allocation3], 0
    %13 = vsyncpa [#allocation5], 0
    %14 = vsyncpa [#allocation8], 0
    %15 = vsyncpa [#allocation11], 0
    // Predicated region
    $region2: #{mlp_forward.1} parent=1 // pred_check
      _
    $region3: #{mlp_forward.1} parent=1 // pred_check_branch
      %17 = sbr.rel (0) target = $region5
    $region4: #{mlp_forward.1} parent=1 // pred_region
      _
    $region5: #{mlp_forward.1} parent=1 // pred_fallthru
      _
    // Predicated region
    $region6: #{mlp_forward.1} parent=1 // pred_check
      _
    $region7: #{mlp_forward.1} parent=1 // pred_check_branch
      %19 = sbr.rel (0) target = $region9
    $region8: #{mlp_forward.1} parent=1 // pred_region
      %21 = vsyncadd [#allocation3], 0
      %s22 = sshll.u32 %s1, 4
      %s23 = int_to_ptr.hbm [resolvable:$true] %s22
      %s24 = sshll.u32 [#allocation2], 4
      %s25 = int_to_ptr.vmem [resolvable:$true] %s24
      %30 = dma.hbm_to_vmem [thread:$0]  %s23, 57344, %s25, [#allocation3], 512, 512, 32
    $region9: #{mlp_forward.1} parent=1 // pred_fallthru
      _
    // Predicated region
    $region10: #{mlp_forward.1} parent=1 // pred_check
      _
    $region11: #{mlp_forward.1} parent=1 // pred_check_branch
      %32 = sbr.rel (0) target = $region13
    $region12: #{mlp_forward.1} parent=1 // pred_region
      %34 = vsyncadd [#allocation5], 0
      %s36 = sshll.u32 %s2, 4
      %s37 = int_to_ptr.hbm [resolvable:$true] %s36
      %s38 = sshll.u32 [#allocation4], 4
      %s39 = int_to_ptr.vmem [resolvable:$true] %s38
      %41 = dma.hbm_to_vmem [thread:$0]  %s37, 128, %s39, [#allocation5]
    $region13: #{mlp_forward.1} parent=1 // pred_fallthru
      _
    // Predicated region
    $region14: #{mlp_forward.1} parent=1 // pred_check
      _
    $region15: #{mlp_forward.1} parent=1 // pred_check_branch
      %43 = sbr.rel (0) target = $region17
    $region16: #{mlp_forward.1} parent=1 // pred_region
      %45 = vsyncadd [#allocation5], 0
      %s46 = sshll.u32 %s3, 4
      %s47 = int_to_ptr.hbm [resolvable:$true] %s46
      %s48 = sshll.u32 [#allocation6], 4
      %s49 = int_to_ptr.vmem [resolvable:$true] %s48
      %54 = dma.hbm_to_vmem [thread:$0]  %s47, 32768, %s49, [#allocation5], 256, 256, 16
    $region17: #{mlp_forward.1} parent=1 // pred_fallthru
      _
    // Predicated region
    $region18: #{mlp_forward.1} parent=1 // pred_check
      _
    $region19: #{mlp_forward.1} parent=1 // pred_check_branch
      %56 = sbr.rel (0) target = $region21
    $region20: #{mlp_forward.1} parent=1 // pred_region
      %58 = vsyncadd [#allocation8], 0
      %s60 = sshll.u32 %s4, 4
      %s61 = int_to_ptr.hbm [resolvable:$true] %s60
      %s62 = sshll.u32 [#allocation7], 4
      %s63 = int_to_ptr.vmem [resolvable:$true] %s62
      %65 = dma.hbm_to_vmem [thread:$0]  %s61, 64, %s63, [#allocation8]
    $region21: #{mlp_forward.1} parent=1 // pred_fallthru
      _
    // Predicated region
    $region22: #{mlp_forward.1} parent=1 // pred_check
      _
    $region23: #{mlp_forward.1} parent=1 // pred_check_branch
      %67 = sbr.rel (0) target = $region25
    $region24: #{mlp_forward.1} parent=1 // pred_region
      %69 = vsyncadd [#allocation8], 0
      %s70 = sshll.u32 %s5, 4
      %s71 = int_to_ptr.hbm [resolvable:$true] %s70
      %s72 = sshll.u32 [#allocation9], 4
      %s73 = int_to_ptr.vmem [resolvable:$true] %s72
      %78 = dma.hbm_to_vmem [thread:$0]  %s71, 4096, %s73, [#allocation8], 64, 64, 4
    $region25: #{mlp_forward.1} parent=1 // pred_fallthru
      _
    // Predicated region
    $region26: #{mlp_forward.1} parent=1 // pred_check
      _
    $region27: #{mlp_forward.1} parent=1 // pred_check_branch
      %80 = sbr.rel (0) target = $region29
    $region28: #{mlp_forward.1} parent=1 // pred_region
      %82 = vsyncadd [#allocation11], 0
      %s84 = sshll.u32 %s6, 4
      %s85 = int_to_ptr.hbm [resolvable:$true] %s84
      %s86 = sshll.u32 [#allocation10], 4
      %s87 = int_to_ptr.vmem [resolvable:$true] %s86
      %89 = dma.hbm_to_vmem [thread:$0]  %s85, 16, %s87, [#allocation11]
    $region29: #{mlp_forward.1} parent=1 // pred_fallthru
      _
    // Predicated region
    $region30: #{mlp_forward.1} parent=1 // pred_check
      _
    $region31: #{mlp_forward.1} parent=1 // pred_check_branch
      %91 = sbr.rel (0) target = $region33
    $region32: #{mlp_forward.1} parent=1 // pred_region
      %93 = dma.done [#allocation3], 57344
    $region33: #{mlp_forward.1} parent=1 // pred_fallthru
      _
    // Predicated region
    $region34: #{mlp_forward.1} parent=1 // pred_check
      _
    $region35: #{mlp_forward.1} parent=1 // pred_check_branch
      %95 = sbr.rel (0) target = $region37
    $region36: #{mlp_forward.1} parent=1 // pred_region
      %97 = dma.done [#allocation5], 128
    $region37: #{mlp_forward.1} parent=1 // pred_fallthru
      _
    // Predicated region
    $region38: #{mlp_forward.1} parent=1 // pred_check
      _
    $region39: #{mlp_forward.1} parent=1 // pred_check_branch
      %99 = sbr.rel (0) target = $region41
    $region40: #{mlp_forward.1} parent=1 // pred_region
      %101 = dma.done [#allocation5], 32768
    $region41: #{mlp_forward.1} parent=1 // pred_fallthru
      _
    // Predicated region
    $region42: #{mlp_forward.1} parent=1 // pred_check
      _
    $region43: #{mlp_forward.1} parent=1 // pred_check_branch
      %103 = sbr.rel (0) target = $region45
    $region44: #{mlp_forward.1} parent=1 // pred_region
      %105 = dma.done [#allocation8], 64
    $region45: #{mlp_forward.1} parent=1 // pred_fallthru
      _
    // Predicated region
    $region46: #{mlp_forward.1} parent=1 // pred_check
      _
    $region47: #{mlp_forward.1} parent=1 // pred_check_branch
      %107 = sbr.rel (0) target = $region49
    $region48: #{mlp_forward.1} parent=1 // pred_region
      %109 = dma.done [#allocation8], 4096
    $region49: #{mlp_forward.1} parent=1 // pred_fallthru
      _
    // Predicated region
    $region50: #{mlp_forward.1} parent=1 // pred_check
      _
    $region51: #{mlp_forward.1} parent=1 // pred_check_branch
      %111 = sbr.rel (0) target = $region53
    $region52: #{mlp_forward.1} parent=1 // pred_region
      %113 = dma.done [#allocation11], 16
    $region53: #{mlp_forward.1} parent=1 // pred_fallthru
      _
    %v114 = vld [vmem:[%s0] sm:$0xff]
    %v115 = vld [vmem:[%s0 + $0x8] sm:$0xff]
    %v116 = vld [vmem:[%s0 + $0x10] sm:$0xff]
    %v117 = vld [vmem:[%s0 + $0x18] sm:$0xf]
    %v118 = vld [vmem:[%s0 + $0x1c] sm:$0xff]
    %v119 = vld [vmem:[%s0 + $0x24] sm:$0xff]
    %v120 = vld [vmem:[%s0 + $0x2c] sm:$0xff]
    %v121 = vld [vmem:[%s0 + $0x34] sm:$0xf]
    %v122 = vld [vmem:[#allocation2] sm:$0xff]
    %v123 = vld [vmem:[#allocation2 + $0x8] sm:$0xff]
    %v124 = vld [vmem:[#allocation2 + $0x10] sm:$0xff]
    %v125 = vld [vmem:[#allocation2 + $0x18] sm:$0xff]
    %v126 = vld [vmem:[#allocation2 + $0x20] sm:$0xff]
    %v127 = vld [vmem:[#allocation2 + $0x28] sm:$0xff]
    %v128 = vld [vmem:[#allocation2 + $0x30] sm:$0xff]
    %v129 = vld [vmem:[#allocation2 + $0x38] sm:$0xff]
    %v130 = vld [vmem:[#allocation2 + $0x40] sm:$0xff]
    %v131 = vld [vmem:[#allocation2 + $0x48] sm:$0xff]
    %v132 = vld [vmem:[#allocation2 + $0x50] sm:$0xff]
    %v133 = vld [vmem:[#allocation2 + $0x58] sm:$0xff]
    %v134 = vld [vmem:[#allocation2 + $0x60] sm:$0xff]
    %v135 = vld [vmem:[#allocation2 + $0x68] sm:$0xff]
    %v136 = vld [vmem:[#allocation2 + $0x70] sm:$0xff]
    %v137 = vld [vmem:[#allocation2 + $0x78] sm:$0xff]
    %v138 = vld [vmem:[#allocation2 + $0x80] sm:$0xff]
    %v139 = vld [vmem:[#allocation2 + $0x88] sm:$0xff]
    %v140 = vld [vmem:[#allocation2 + $0x90] sm:$0xff]
    %v141 = vld [vmem:[#allocation2 + $0x98] sm:$0xff]
    %v142 = vld [vmem:[#allocation2 + $0xa0] sm:$0xff]
    %v143 = vld [vmem:[#allocation2 + $0xa8] sm:$0xff]
    %v144 = vld [vmem:[#allocation2 + $0xb0] sm:$0xff]
    %v145 = vld [vmem:[#allocation2 + $0xb8] sm:$0xff]
    %v146 = vld [vmem:[#allocation2 + $0xc0] sm:$0xff]
    %v147 = vld [vmem:[#allocation2 + $0xc8] sm:$0xff]
    %v148 = vld [vmem:[#allocation2 + $0xd0] sm:$0xff]
    %v149 = vld [vmem:[#allocation2 + $0xd8] sm:$0xff]
    %v150 = vld [vmem:[#allocation2 + $0xe0] sm:$0xff]
    %v151 = vld [vmem:[#allocation2 + $0xe8] sm:$0xff]
    %v152 = vld [vmem:[#allocation2 + $0xf0] sm:$0xff]
    %v153 = vld [vmem:[#allocation2 + $0xf8] sm:$0xff]
    %v154 = vld [vmem:[#allocation2 + $0x100] sm:$0xff]
    %v155 = vld [vmem:[#allocation2 + $0x108] sm:$0xff]
    %v156 = vld [vmem:[#allocation2 + $0x110] sm:$0xff]
    %v157 = vld [vmem:[#allocation2 + $0x118] sm:$0xff]
    %v158 = vld [vmem:[#allocation2 + $0x120] sm:$0xff]
    %v159 = vld [vmem:[#allocation2 + $0x128] sm:$0xff]
    %v160 = vld [vmem:[#allocation2 + $0x130] sm:$0xff]
    %v161 = vld [vmem:[#allocation2 + $0x138] sm:$0xff]
    %v162 = vld [vmem:[#allocation2 + $0x140] sm:$0xff]
    %v163 = vld [vmem:[#allocation2 + $0x148] sm:$0xff]
    %v164 = vld [vmem:[#allocation2 + $0x150] sm:$0xff]
    %v165 = vld [vmem:[#allocation2 + $0x158] sm:$0xff]
    %v166 = vld [vmem:[#allocation2 + $0x160] sm:$0xff]
    %v167 = vld [vmem:[#allocation2 + $0x168] sm:$0xff]
    %v168 = vld [vmem:[#allocation2 + $0x170] sm:$0xff]
    %v169 = vld [vmem:[#allocation2 + $0x178] sm:$0xff]
    %v170 = vld [vmem:[#allocation2 + $0x180] sm:$0xff]
    %v171 = vld [vmem:[#allocation2 + $0x188] sm:$0xff]
    %v172 = vld [vmem:[#allocation2 + $0x190] sm:$0xff]
    %v173 = vld [vmem:[#allocation2 + $0x198] sm:$0xff]
    %v174 = vld [vmem:[#allocation2 + $0x1a0] sm:$0xff]
    %v175 = vld [vmem:[#allocation2 + $0x1a8] sm:$0xff]
    %v176 = vld [vmem:[#allocation2 + $0x1b0] sm:$0xff]
    %v177 = vld [vmem:[#allocation2 + $0x1b8] sm:$0xff]
    %v178 = vld [vmem:[#allocation2 + $0x1c0] sm:$0xff]
    %v179 = vld [vmem:[#allocation2 + $0x1c8] sm:$0xff]
    %v180 = vld [vmem:[#allocation2 + $0x1d0] sm:$0xff]
    %v181 = vld [vmem:[#allocation2 + $0x1d8] sm:$0xff]
    %v182 = vld [vmem:[#allocation2 + $0x1e0] sm:$0xff]
    %v183 = vld [vmem:[#allocation2 + $0x1e8] sm:$0xff]
    %v184 = vld [vmem:[#allocation2 + $0x1f0] sm:$0xff]
    %v185 = vld [vmem:[#allocation2 + $0x1f8] sm:$0xff]
    %v186 = vld [vmem:[#allocation2 + $0x200] sm:$0xff]
    %v187 = vld [vmem:[#allocation2 + $0x208] sm:$0xff]
    %v188 = vld [vmem:[#allocation2 + $0x210] sm:$0xff]
    %v189 = vld [vmem:[#allocation2 + $0x218] sm:$0xff]
    %v190 = vld [vmem:[#allocation2 + $0x220] sm:$0xff]
    %v191 = vld [vmem:[#allocation2 + $0x228] sm:$0xff]
    %v192 = vld [vmem:[#allocation2 + $0x230] sm:$0xff]
    %v193 = vld [vmem:[#allocation2 + $0x238] sm:$0xff]
    %v194 = vld [vmem:[#allocation2 + $0x240] sm:$0xff]
    %v195 = vld [vmem:[#allocation2 + $0x248] sm:$0xff]
    %v196 = vld [vmem:[#allocation2 + $0x250] sm:$0xff]
    %v197 = vld [vmem:[#allocation2 + $0x258] sm:$0xff]
    %v198 = vld [vmem:[#allocation2 + $0x260] sm:$0xff]
    %v199 = vld [vmem:[#allocation2 + $0x268] sm:$0xff]
    %v200 = vld [vmem:[#allocation2 + $0x270] sm:$0xff]
    %v201 = vld [vmem:[#allocation2 + $0x278] sm:$0xff]
    %v202 = vld [vmem:[#allocation2 + $0x280] sm:$0xff]
    %v203 = vld [vmem:[#allocation2 + $0x288] sm:$0xff]
    %v204 = vld [vmem:[#allocation2 + $0x290] sm:$0xff]
    %v205 = vld [vmem:[#allocation2 + $0x298] sm:$0xff]
    %v206 = vld [vmem:[#allocation2 + $0x2a0] sm:$0xff]
    %v207 = vld [vmem:[#allocation2 + $0x2a8] sm:$0xff]
    %v208 = vld [vmem:[#allocation2 + $0x2b0] sm:$0xff]
    %v209 = vld [vmem:[#allocation2 + $0x2b8] sm:$0xff]
    %v210 = vld [vmem:[#allocation2 + $0x2c0] sm:$0xff]
    %v211 = vld [vmem:[#allocation2 + $0x2c8] sm:$0xff]
    %v212 = vld [vmem:[#allocation2 + $0x2d0] sm:$0xff]
    %v213 = vld [vmem:[#allocation2 + $0x2d8] sm:$0xff]
    %v214 = vld [vmem:[#allocation2 + $0x2e0] sm:$0xff]
    %v215 = vld [vmem:[#allocation2 + $0x2e8] sm:$0xff]
    %v216 = vld [vmem:[#allocation2 + $0x2f0] sm:$0xff]
    %v217 = vld [vmem:[#allocation2 + $0x2f8] sm:$0xff]
    %v218 = vld [vmem:[#allocation2 + $0x300] sm:$0xff]
    %v219 = vld [vmem:[#allocation2 + $0x308] sm:$0xff]
    %v220 = vld [vmem:[#allocation2 + $0x310] sm:$0xff]
    %v221 = vld [vmem:[#allocation2 + $0x318] sm:$0xff]
    %v222 = vld [vmem:[#allocation2 + $0x320] sm:$0xff]
    %v223 = vld [vmem:[#allocation2 + $0x328] sm:$0xff]
    %v224 = vld [vmem:[#allocation2 + $0x330] sm:$0xff]
    %v225 = vld [vmem:[#allocation2 + $0x338] sm:$0xff]
    %v226 = vld [vmem:[#allocation2 + $0x340] sm:$0xff]
    %v227 = vld [vmem:[#allocation2 + $0x348] sm:$0xff]
    %v228 = vld [vmem:[#allocation2 + $0x350] sm:$0xff]
    %v229 = vld [vmem:[#allocation2 + $0x358] sm:$0xff]
    %v230 = vld [vmem:[#allocation2 + $0x360] sm:$0xff]
    %v231 = vld [vmem:[#allocation2 + $0x368] sm:$0xff]
    %v232 = vld [vmem:[#allocation2 + $0x370] sm:$0xff]
    %v233 = vld [vmem:[#allocation2 + $0x378] sm:$0xff]
    %v234 = vld [vmem:[#allocation2 + $0x380] sm:$0xff]
    %v235 = vld [vmem:[#allocation2 + $0x388] sm:$0xff]
    %v236 = vld [vmem:[#allocation2 + $0x390] sm:$0xff]
    %v237 = vld [vmem:[#allocation2 + $0x398] sm:$0xff]
    %v238 = vld [vmem:[#allocation2 + $0x3a0] sm:$0xff]
    %v239 = vld [vmem:[#allocation2 + $0x3a8] sm:$0xff]
    %v240 = vld [vmem:[#allocation2 + $0x3b0] sm:$0xff]
    %v241 = vld [vmem:[#allocation2 + $0x3b8] sm:$0xff]
    %v242 = vld [vmem:[#allocation2 + $0x3c0] sm:$0xff]
    %v243 = vld [vmem:[#allocation2 + $0x3c8] sm:$0xff]
    %v244 = vld [vmem:[#allocation2 + $0x3d0] sm:$0xff]
    %v245 = vld [vmem:[#allocation2 + $0x3d8] sm:$0xff]
    %v246 = vld [vmem:[#allocation2 + $0x3e0] sm:$0xff]
    %v247 = vld [vmem:[#allocation2 + $0x3e8] sm:$0xff]
    %v248 = vld [vmem:[#allocation2 + $0x3f0] sm:$0xff]
    %v249 = vld [vmem:[#allocation2 + $0x3f8] sm:$0xff]
    %v250 = vld [vmem:[#allocation2 + $0x400] sm:$0xff]
    %v251 = vld [vmem:[#allocation2 + $0x408] sm:$0xff]
    %v252 = vld [vmem:[#allocation2 + $0x410] sm:$0xff]
    %v253 = vld [vmem:[#allocation2 + $0x418] sm:$0xff]
    %v254 = vld [vmem:[#allocation2 + $0x420] sm:$0xff]
    %v255 = vld [vmem:[#allocation2 + $0x428] sm:$0xff]
    %v256 = vld [vmem:[#allocation2 + $0x430] sm:$0xff]
    %v257 = vld [vmem:[#allocation2 + $0x438] sm:$0xff]
    %v258 = vld [vmem:[#allocation2 + $0x440] sm:$0xff]
    %v259 = vld [vmem:[#allocation2 + $0x448] sm:$0xff]
    %v260 = vld [vmem:[#allocation2 + $0x450] sm:$0xff]
    %v261 = vld [vmem:[#allocation2 + $0x458] sm:$0xff]
    %v262 = vld [vmem:[#allocation2 + $0x460] sm:$0xff]
    %v263 = vld [vmem:[#allocation2 + $0x468] sm:$0xff]
    %v264 = vld [vmem:[#allocation2 + $0x470] sm:$0xff]
    %v265 = vld [vmem:[#allocation2 + $0x478] sm:$0xff]
    %v266 = vld [vmem:[#allocation2 + $0x480] sm:$0xff]
    %v267 = vld [vmem:[#allocation2 + $0x488] sm:$0xff]
    %v268 = vld [vmem:[#allocation2 + $0x490] sm:$0xff]
    %v269 = vld [vmem:[#allocation2 + $0x498] sm:$0xff]
    %v270 = vld [vmem:[#allocation2 + $0x4a0] sm:$0xff]
    %v271 = vld [vmem:[#allocation2 + $0x4a8] sm:$0xff]
    %v272 = vld [vmem:[#allocation2 + $0x4b0] sm:$0xff]
    %v273 = vld [vmem:[#allocation2 + $0x4b8] sm:$0xff]
    %v274 = vld [vmem:[#allocation2 + $0x4c0] sm:$0xff]
    %v275 = vld [vmem:[#allocation2 + $0x4c8] sm:$0xff]
    %v276 = vld [vmem:[#allocation2 + $0x4d0] sm:$0xff]
    %v277 = vld [vmem:[#allocation2 + $0x4d8] sm:$0xff]
    %v278 = vld [vmem:[#allocation2 + $0x4e0] sm:$0xff]
    %v279 = vld [vmem:[#allocation2 + $0x4e8] sm:$0xff]
    %v280 = vld [vmem:[#allocation2 + $0x4f0] sm:$0xff]
    %v281 = vld [vmem:[#allocation2 + $0x4f8] sm:$0xff]
    %v282 = vld [vmem:[#allocation2 + $0x500] sm:$0xff]
    %v283 = vld [vmem:[#allocation2 + $0x508] sm:$0xff]
    %v284 = vld [vmem:[#allocation2 + $0x510] sm:$0xff]
    %v285 = vld [vmem:[#allocation2 + $0x518] sm:$0xff]
    %v286 = vld [vmem:[#allocation2 + $0x520] sm:$0xff]
    %v287 = vld [vmem:[#allocation2 + $0x528] sm:$0xff]
    %v288 = vld [vmem:[#allocation2 + $0x530] sm:$0xff]
    %v289 = vld [vmem:[#allocation2 + $0x538] sm:$0xff]
    %v290 = vld [vmem:[#allocation2 + $0x540] sm:$0xff]
    %v291 = vld [vmem:[#allocation2 + $0x548] sm:$0xff]
    %v292 = vld [vmem:[#allocation2 + $0x550] sm:$0xff]
    %v293 = vld [vmem:[#allocation2 + $0x558] sm:$0xff]
    %v294 = vld [vmem:[#allocation2 + $0x560] sm:$0xff]
    %v295 = vld [vmem:[#allocation2 + $0x568] sm:$0xff]
    %v296 = vld [vmem:[#allocation2 + $0x570] sm:$0xff]
    %v297 = vld [vmem:[#allocation2 + $0x578] sm:$0xff]
    %v298 = vld [vmem:[#allocation2 + $0x580] sm:$0xff]
    %v299 = vld [vmem:[#allocation2 + $0x588] sm:$0xff]
    %v300 = vld [vmem:[#allocation2 + $0x590] sm:$0xff]
    %v301 = vld [vmem:[#allocation2 + $0x598] sm:$0xff]
    %v302 = vld [vmem:[#allocation2 + $0x5a0] sm:$0xff]
    %v303 = vld [vmem:[#allocation2 + $0x5a8] sm:$0xff]
    %v304 = vld [vmem:[#allocation2 + $0x5b0] sm:$0xff]
    %v305 = vld [vmem:[#allocation2 + $0x5b8] sm:$0xff]
    %v306 = vld [vmem:[#allocation2 + $0x5c0] sm:$0xff]
    %v307 = vld [vmem:[#allocation2 + $0x5c8] sm:$0xff]
    %v308 = vld [vmem:[#allocation2 + $0x5d0] sm:$0xff]
    %v309 = vld [vmem:[#allocation2 + $0x5d8] sm:$0xff]
    %v310 = vld [vmem:[#allocation2 + $0x5e0] sm:$0xff]
    %v311 = vld [vmem:[#allocation2 + $0x5e8] sm:$0xff]
    %v312 = vld [vmem:[#allocation2 + $0x5f0] sm:$0xff]
    %v313 = vld [vmem:[#allocation2 + $0x5f8] sm:$0xff]
    %v314 = vld [vmem:[#allocation2 + $0x600] sm:$0xff]
    %v315 = vld [vmem:[#allocation2 + $0x608] sm:$0xff]
    %v316 = vld [vmem:[#allocation2 + $0x610] sm:$0xff]
    %v317 = vld [vmem:[#allocation2 + $0x618] sm:$0xff]
    %v318 = vld [vmem:[#allocation2 + $0x620] sm:$0xff]
    %v319 = vld [vmem:[#allocation2 + $0x628] sm:$0xff]
    %v320 = vld [vmem:[#allocation2 + $0x630] sm:$0xff]
    %v321 = vld [vmem:[#allocation2 + $0x638] sm:$0xff]
    %v322 = vld [vmem:[#allocation2 + $0x640] sm:$0xff]
    %v323 = vld [vmem:[#allocation2 + $0x648] sm:$0xff]
    %v324 = vld [vmem:[#allocation2 + $0x650] sm:$0xff]
    %v325 = vld [vmem:[#allocation2 + $0x658] sm:$0xff]
    %v326 = vld [vmem:[#allocation2 + $0x660] sm:$0xff]
    %v327 = vld [vmem:[#allocation2 + $0x668] sm:$0xff]
    %v328 = vld [vmem:[#allocation2 + $0x670] sm:$0xff]
    %v329 = vld [vmem:[#allocation2 + $0x678] sm:$0xff]
    %v330 = vld [vmem:[#allocation2 + $0x680] sm:$0xff]
    %v331 = vld [vmem:[#allocation2 + $0x688] sm:$0xff]
    %v332 = vld [vmem:[#allocation2 + $0x690] sm:$0xff]
    %v333 = vld [vmem:[#allocation2 + $0x698] sm:$0xff]
    %v334 = vld [vmem:[#allocation2 + $0x6a0] sm:$0xff]
    %v335 = vld [vmem:[#allocation2 + $0x6a8] sm:$0xff]
    %v336 = vld [vmem:[#allocation2 + $0x6b0] sm:$0xff]
    %v337 = vld [vmem:[#allocation2 + $0x6b8] sm:$0xff]
    %v338 = vld [vmem:[#allocation2 + $0x6c0] sm:$0xff]
    %v339 = vld [vmem:[#allocation2 + $0x6c8] sm:$0xff]
    %v340 = vld [vmem:[#allocation2 + $0x6d0] sm:$0xff]
    %v341 = vld [vmem:[#allocation2 + $0x6d8] sm:$0xff]
    %v342 = vld [vmem:[#allocation2 + $0x6e0] sm:$0xff]
    %v343 = vld [vmem:[#allocation2 + $0x6e8] sm:$0xff]
    %v344 = vld [vmem:[#allocation2 + $0x6f0] sm:$0xff]
    %v345 = vld [vmem:[#allocation2 + $0x6f8] sm:$0xff]
    %v346 = vld [vmem:[#allocation2 + $0x700] sm:$0xff]
    %v347 = vld [vmem:[#allocation2 + $0x708] sm:$0xff]
    %v348 = vld [vmem:[#allocation2 + $0x710] sm:$0xff]
    %v349 = vld [vmem:[#allocation2 + $0x718] sm:$0xff]
    %v350 = vld [vmem:[#allocation2 + $0x720] sm:$0xff]
    %v351 = vld [vmem:[#allocation2 + $0x728] sm:$0xff]
    %v352 = vld [vmem:[#allocation2 + $0x730] sm:$0xff]
    %v353 = vld [vmem:[#allocation2 + $0x738] sm:$0xff]
    %v354 = vld [vmem:[#allocation2 + $0x740] sm:$0xff]
    %v355 = vld [vmem:[#allocation2 + $0x748] sm:$0xff]
    %v356 = vld [vmem:[#allocation2 + $0x750] sm:$0xff]
    %v357 = vld [vmem:[#allocation2 + $0x758] sm:$0xff]
    %v358 = vld [vmem:[#allocation2 + $0x760] sm:$0xff]
    %v359 = vld [vmem:[#allocation2 + $0x768] sm:$0xff]
    %v360 = vld [vmem:[#allocation2 + $0x770] sm:$0xff]
    %v361 = vld [vmem:[#allocation2 + $0x778] sm:$0xff]
    %v362 = vld [vmem:[#allocation2 + $0x780] sm:$0xff]
    %v363 = vld [vmem:[#allocation2 + $0x788] sm:$0xff]
    %v364 = vld [vmem:[#allocation2 + $0x790] sm:$0xff]
    %v365 = vld [vmem:[#allocation2 + $0x798] sm:$0xff]
    %v366 = vld [vmem:[#allocation2 + $0x7a0] sm:$0xff]
    %v367 = vld [vmem:[#allocation2 + $0x7a8] sm:$0xff]
    %v368 = vld [vmem:[#allocation2 + $0x7b0] sm:$0xff]
    %v369 = vld [vmem:[#allocation2 + $0x7b8] sm:$0xff]
    %v370 = vld [vmem:[#allocation2 + $0x7c0] sm:$0xff]
    %v371 = vld [vmem:[#allocation2 + $0x7c8] sm:$0xff]
    %v372 = vld [vmem:[#allocation2 + $0x7d0] sm:$0xff]
    %v373 = vld [vmem:[#allocation2 + $0x7d8] sm:$0xff]
    %v374 = vld [vmem:[#allocation2 + $0x7e0] sm:$0xff]
    %v375 = vld [vmem:[#allocation2 + $0x7e8] sm:$0xff]
    %v376 = vld [vmem:[#allocation2 + $0x7f0] sm:$0xff]
    %v377 = vld [vmem:[#allocation2 + $0x7f8] sm:$0xff]
    %v378 = vld [vmem:[#allocation2 + $0x800] sm:$0xff]
    %v379 = vld [vmem:[#allocation2 + $0x808] sm:$0xff]
    %v380 = vld [vmem:[#allocation2 + $0x810] sm:$0xff]
    %v381 = vld [vmem:[#allocation2 + $0x818] sm:$0xff]
    %v382 = vld [vmem:[#allocation2 + $0x820] sm:$0xff]
    %v383 = vld [vmem:[#allocation2 + $0x828] sm:$0xff]
    %v384 = vld [vmem:[#allocation2 + $0x830] sm:$0xff]
    %v385 = vld [vmem:[#allocation2 + $0x838] sm:$0xff]
    %v386 = vld [vmem:[#allocation2 + $0x840] sm:$0xff]
    %v387 = vld [vmem:[#allocation2 + $0x848] sm:$0xff]
    %v388 = vld [vmem:[#allocation2 + $0x850] sm:$0xff]
    %v389 = vld [vmem:[#allocation2 + $0x858] sm:$0xff]
    %v390 = vld [vmem:[#allocation2 + $0x860] sm:$0xff]
    %v391 = vld [vmem:[#allocation2 + $0x868] sm:$0xff]
    %v392 = vld [vmem:[#allocation2 + $0x870] sm:$0xff]
    %v393 = vld [vmem:[#allocation2 + $0x878] sm:$0xff]
    %v394 = vld [vmem:[#allocation2 + $0x880] sm:$0xff]
    %v395 = vld [vmem:[#allocation2 + $0x888] sm:$0xff]
    %v396 = vld [vmem:[#allocation2 + $0x890] sm:$0xff]
    %v397 = vld [vmem:[#allocation2 + $0x898] sm:$0xff]
    %v398 = vld [vmem:[#allocation2 + $0x8a0] sm:$0xff]
    %v399 = vld [vmem:[#allocation2 + $0x8a8] sm:$0xff]
    %v400 = vld [vmem:[#allocation2 + $0x8b0] sm:$0xff]
    %v401 = vld [vmem:[#allocation2 + $0x8b8] sm:$0xff]
    %v402 = vld [vmem:[#allocation2 + $0x8c0] sm:$0xff]
    %v403 = vld [vmem:[#allocation2 + $0x8c8] sm:$0xff]
    %v404 = vld [vmem:[#allocation2 + $0x8d0] sm:$0xff]
    %v405 = vld [vmem:[#allocation2 + $0x8d8] sm:$0xff]
    %v406 = vld [vmem:[#allocation2 + $0x8e0] sm:$0xff]
    %v407 = vld [vmem:[#allocation2 + $0x8e8] sm:$0xff]
    %v408 = vld [vmem:[#allocation2 + $0x8f0] sm:$0xff]
    %v409 = vld [vmem:[#allocation2 + $0x8f8] sm:$0xff]
    %v410 = vld [vmem:[#allocation2 + $0x900] sm:$0xff]
    %v411 = vld [vmem:[#allocation2 + $0x908] sm:$0xff]
    %v412 = vld [vmem:[#allocation2 + $0x910] sm:$0xff]
    %v413 = vld [vmem:[#allocation2 + $0x918] sm:$0xff]
    %v414 = vld [vmem:[#allocation2 + $0x920] sm:$0xff]
    %v415 = vld [vmem:[#allocation2 + $0x928] sm:$0xff]
    %v416 = vld [vmem:[#allocation2 + $0x930] sm:$0xff]
    %v417 = vld [vmem:[#allocation2 + $0x938] sm:$0xff]
    %v418 = vld [vmem:[#allocation2 + $0x940] sm:$0xff]
    %v419 = vld [vmem:[#allocation2 + $0x948] sm:$0xff]
    %v420 = vld [vmem:[#allocation2 + $0x950] sm:$0xff]
    %v421 = vld [vmem:[#allocation2 + $0x958] sm:$0xff]
    %v422 = vld [vmem:[#allocation2 + $0x960] sm:$0xff]
    %v423 = vld [vmem:[#allocation2 + $0x968] sm:$0xff]
    %v424 = vld [vmem:[#allocation2 + $0x970] sm:$0xff]
    %v425 = vld [vmem:[#allocation2 + $0x978] sm:$0xff]
    %v426 = vld [vmem:[#allocation2 + $0x980] sm:$0xff]
    %v427 = vld [vmem:[#allocation2 + $0x988] sm:$0xff]
    %v428 = vld [vmem:[#allocation2 + $0x990] sm:$0xff]
    %v429 = vld [vmem:[#allocation2 + $0x998] sm:$0xff]
    %v430 = vld [vmem:[#allocation2 + $0x9a0] sm:$0xff]
    %v431 = vld [vmem:[#allocation2 + $0x9a8] sm:$0xff]
    %v432 = vld [vmem:[#allocation2 + $0x9b0] sm:$0xff]
    %v433 = vld [vmem:[#allocation2 + $0x9b8] sm:$0xff]
    %v434 = vld [vmem:[#allocation2 + $0x9c0] sm:$0xff]
    %v435 = vld [vmem:[#allocation2 + $0x9c8] sm:$0xff]
    %v436 = vld [vmem:[#allocation2 + $0x9d0] sm:$0xff]
    %v437 = vld [vmem:[#allocation2 + $0x9d8] sm:$0xff]
    %v438 = vld [vmem:[#allocation2 + $0x9e0] sm:$0xff]
    %v439 = vld [vmem:[#allocation2 + $0x9e8] sm:$0xff]
    %v440 = vld [vmem:[#allocation2 + $0x9f0] sm:$0xff]
    %v441 = vld [vmem:[#allocation2 + $0x9f8] sm:$0xff]
    %v442 = vld [vmem:[#allocation2 + $0xa00] sm:$0xff]
    %v443 = vld [vmem:[#allocation2 + $0xa08] sm:$0xff]
    %v444 = vld [vmem:[#allocation2 + $0xa10] sm:$0xff]
    %v445 = vld [vmem:[#allocation2 + $0xa18] sm:$0xff]
    %v446 = vld [vmem:[#allocation2 + $0xa20] sm:$0xff]
    %v447 = vld [vmem:[#allocation2 + $0xa28] sm:$0xff]
    %v448 = vld [vmem:[#allocation2 + $0xa30] sm:$0xff]
    %v449 = vld [vmem:[#allocation2 + $0xa38] sm:$0xff]
    %v450 = vld [vmem:[#allocation2 + $0xa40] sm:$0xff]
    %v451 = vld [vmem:[#allocation2 + $0xa48] sm:$0xff]
    %v452 = vld [vmem:[#allocation2 + $0xa50] sm:$0xff]
    %v453 = vld [vmem:[#allocation2 + $0xa58] sm:$0xff]
    %v454 = vld [vmem:[#allocation2 + $0xa60] sm:$0xff]
    %v455 = vld [vmem:[#allocation2 + $0xa68] sm:$0xff]
    %v456 = vld [vmem:[#allocation2 + $0xa70] sm:$0xff]
    %v457 = vld [vmem:[#allocation2 + $0xa78] sm:$0xff]
    %v458 = vld [vmem:[#allocation2 + $0xa80] sm:$0xff]
    %v459 = vld [vmem:[#allocation2 + $0xa88] sm:$0xff]
    %v460 = vld [vmem:[#allocation2 + $0xa90] sm:$0xff]
    %v461 = vld [vmem:[#allocation2 + $0xa98] sm:$0xff]
    %v462 = vld [vmem:[#allocation2 + $0xaa0] sm:$0xff]
    %v463 = vld [vmem:[#allocation2 + $0xaa8] sm:$0xff]
    %v464 = vld [vmem:[#allocation2 + $0xab0] sm:$0xff]
    %v465 = vld [vmem:[#allocation2 + $0xab8] sm:$0xff]
    %v466 = vld [vmem:[#allocation2 + $0xac0] sm:$0xff]
    %v467 = vld [vmem:[#allocation2 + $0xac8] sm:$0xff]
    %v468 = vld [vmem:[#allocation2 + $0xad0] sm:$0xff]
    %v469 = vld [vmem:[#allocation2 + $0xad8] sm:$0xff]
    %v470 = vld [vmem:[#allocation2 + $0xae0] sm:$0xff]
    %v471 = vld [vmem:[#allocation2 + $0xae8] sm:$0xff]
    %v472 = vld [vmem:[#allocation2 + $0xaf0] sm:$0xff]
    %v473 = vld [vmem:[#allocation2 + $0xaf8] sm:$0xff]
    %v474 = vld [vmem:[#allocation2 + $0xb00] sm:$0xff]
    %v475 = vld [vmem:[#allocation2 + $0xb08] sm:$0xff]
    %v476 = vld [vmem:[#allocation2 + $0xb10] sm:$0xff]
    %v477 = vld [vmem:[#allocation2 + $0xb18] sm:$0xff]
    %v478 = vld [vmem:[#allocation2 + $0xb20] sm:$0xff]
    %v479 = vld [vmem:[#allocation2 + $0xb28] sm:$0xff]
    %v480 = vld [vmem:[#allocation2 + $0xb30] sm:$0xff]
    %v481 = vld [vmem:[#allocation2 + $0xb38] sm:$0xff]
    %v482 = vld [vmem:[#allocation2 + $0xb40] sm:$0xff]
    %v483 = vld [vmem:[#allocation2 + $0xb48] sm:$0xff]
    %v484 = vld [vmem:[#allocation2 + $0xb50] sm:$0xff]
    %v485 = vld [vmem:[#allocation2 + $0xb58] sm:$0xff]
    %v486 = vld [vmem:[#allocation2 + $0xb60] sm:$0xff]
    %v487 = vld [vmem:[#allocation2 + $0xb68] sm:$0xff]
    %v488 = vld [vmem:[#allocation2 + $0xb70] sm:$0xff]
    %v489 = vld [vmem:[#allocation2 + $0xb78] sm:$0xff]
    %v490 = vld [vmem:[#allocation2 + $0xb80] sm:$0xff]
    %v491 = vld [vmem:[#allocation2 + $0xb88] sm:$0xff]
    %v492 = vld [vmem:[#allocation2 + $0xb90] sm:$0xff]
    %v493 = vld [vmem:[#allocation2 + $0xb98] sm:$0xff]
    %v494 = vld [vmem:[#allocation2 + $0xba0] sm:$0xff]
    %v495 = vld [vmem:[#allocation2 + $0xba8] sm:$0xff]
    %v496 = vld [vmem:[#allocation2 + $0xbb0] sm:$0xff]
    %v497 = vld [vmem:[#allocation2 + $0xbb8] sm:$0xff]
    %v498 = vld [vmem:[#allocation2 + $0xbc0] sm:$0xff]
    %v499 = vld [vmem:[#allocation2 + $0xbc8] sm:$0xff]
    %v500 = vld [vmem:[#allocation2 + $0xbd0] sm:$0xff]
    %v501 = vld [vmem:[#allocation2 + $0xbd8] sm:$0xff]
    %v502 = vld [vmem:[#allocation2 + $0xbe0] sm:$0xff]
    %v503 = vld [vmem:[#allocation2 + $0xbe8] sm:$0xff]
    %v504 = vld [vmem:[#allocation2 + $0xbf0] sm:$0xff]
    %v505 = vld [vmem:[#allocation2 + $0xbf8] sm:$0xff]
    %v506 = vld [vmem:[#allocation2 + $0xc00] sm:$0xff]
    %v507 = vld [vmem:[#allocation2 + $0xc08] sm:$0xff]
    %v508 = vld [vmem:[#allocation2 + $0xc10] sm:$0xff]
    %v509 = vld [vmem:[#allocation2 + $0xc18] sm:$0xff]
    %v510 = vld [vmem:[#allocation2 + $0xc20] sm:$0xff]
    %v511 = vld [vmem:[#allocation2 + $0xc28] sm:$0xff]
    %v512 = vld [vmem:[#allocation2 + $0xc30] sm:$0xff]
    %v513 = vld [vmem:[#allocation2 + $0xc38] sm:$0xff]
    %v514 = vld [vmem:[#allocation2 + $0xc40] sm:$0xff]
    %v515 = vld [vmem:[#allocation2 + $0xc48] sm:$0xff]
    %v516 = vld [vmem:[#allocation2 + $0xc50] sm:$0xff]
    %v517 = vld [vmem:[#allocation2 + $0xc58] sm:$0xff]
    %v518 = vld [vmem:[#allocation2 + $0xc60] sm:$0xff]
    %v519 = vld [vmem:[#allocation2 + $0xc68] sm:$0xff]
    %v520 = vld [vmem:[#allocation2 + $0xc70] sm:$0xff]
    %v521 = vld [vmem:[#allocation2 + $0xc78] sm:$0xff]
    %v522 = vld [vmem:[#allocation2 + $0xc80] sm:$0xff]
    %v523 = vld [vmem:[#allocation2 + $0xc88] sm:$0xff]
    %v524 = vld [vmem:[#allocation2 + $0xc90] sm:$0xff]
    %v525 = vld [vmem:[#allocation2 + $0xc98] sm:$0xff]
    %v526 = vld [vmem:[#allocation2 + $0xca0] sm:$0xff]
    %v527 = vld [vmem:[#allocation2 + $0xca8] sm:$0xff]
    %v528 = vld [vmem:[#allocation2 + $0xcb0] sm:$0xff]
    %v529 = vld [vmem:[#allocation2 + $0xcb8] sm:$0xff]
    %v530 = vld [vmem:[#allocation2 + $0xcc0] sm:$0xff]
    %v531 = vld [vmem:[#allocation2 + $0xcc8] sm:$0xff]
    %v532 = vld [vmem:[#allocation2 + $0xcd0] sm:$0xff]
    %v533 = vld [vmem:[#allocation2 + $0xcd8] sm:$0xff]
    %v534 = vld [vmem:[#allocation2 + $0xce0] sm:$0xff]
    %v535 = vld [vmem:[#allocation2 + $0xce8] sm:$0xff]
    %v536 = vld [vmem:[#allocation2 + $0xcf0] sm:$0xff]
    %v537 = vld [vmem:[#allocation2 + $0xcf8] sm:$0xff]
    %v538 = vld [vmem:[#allocation2 + $0xd00] sm:$0xff]
    %v539 = vld [vmem:[#allocation2 + $0xd08] sm:$0xff]
    %v540 = vld [vmem:[#allocation2 + $0xd10] sm:$0xff]
    %v541 = vld [vmem:[#allocation2 + $0xd18] sm:$0xff]
    %v542 = vld [vmem:[#allocation2 + $0xd20] sm:$0xff]
    %v543 = vld [vmem:[#allocation2 + $0xd28] sm:$0xff]
    %v544 = vld [vmem:[#allocation2 + $0xd30] sm:$0xff]
    %v545 = vld [vmem:[#allocation2 + $0xd38] sm:$0xff]
    %v546 = vld [vmem:[#allocation2 + $0xd40] sm:$0xff]
    %v547 = vld [vmem:[#allocation2 + $0xd48] sm:$0xff]
    %v548 = vld [vmem:[#allocation2 + $0xd50] sm:$0xff]
    %v549 = vld [vmem:[#allocation2 + $0xd58] sm:$0xff]
    %v550 = vld [vmem:[#allocation2 + $0xd60] sm:$0xff]
    %v551 = vld [vmem:[#allocation2 + $0xd68] sm:$0xff]
    %v552 = vld [vmem:[#allocation2 + $0xd70] sm:$0xff]
    %v553 = vld [vmem:[#allocation2 + $0xd78] sm:$0xff]
    %v554 = vld [vmem:[#allocation2 + $0xd80] sm:$0xff]
    %v555 = vld [vmem:[#allocation2 + $0xd88] sm:$0xff]
    %v556 = vld [vmem:[#allocation2 + $0xd90] sm:$0xff]
    %v557 = vld [vmem:[#allocation2 + $0xd98] sm:$0xff]
    %v558 = vld [vmem:[#allocation2 + $0xda0] sm:$0xff]
    %v559 = vld [vmem:[#allocation2 + $0xda8] sm:$0xff]
    %v560 = vld [vmem:[#allocation2 + $0xdb0] sm:$0xff]
    %v561 = vld [vmem:[#allocation2 + $0xdb8] sm:$0xff]
    %v562 = vld [vmem:[#allocation2 + $0xdc0] sm:$0xff]
    %v563 = vld [vmem:[#allocation2 + $0xdc8] sm:$0xff]
    %v564 = vld [vmem:[#allocation2 + $0xdd0] sm:$0xff]
    %v565 = vld [vmem:[#allocation2 + $0xdd8] sm:$0xff]
    %v566 = vld [vmem:[#allocation2 + $0xde0] sm:$0xff]
    %v567 = vld [vmem:[#allocation2 + $0xde8] sm:$0xff]
    %v568 = vld [vmem:[#allocation2 + $0xdf0] sm:$0xff]
    %v569 = vld [vmem:[#allocation2 + $0xdf8] sm:$0xff]
    %v570 = vld [vmem:[#allocation4] sm:$0xff]
    %v572 = vperm.slane %v570, 0
    %v573 = vperm.slane %v570, 1
    %v574 = vperm.slane %v570, 2
    %v575 = vperm.slane %v570, 3
    %v576 = vperm.slane %v570, 4
    %v577 = vperm.slane %v570, 5
    %v578 = vperm.slane %v570, 6
    %v579 = vperm.slane %v570, 7
    %v596 = vunpack.c.l.b16 %v114
    %v597 = vunpack.c.h.b16 %v114
    %v598 = vunpack.c.l.b16 %v115
    %v599 = vunpack.c.h.b16 %v115
    %v600 = vunpack.c.l.b16 %v116
    %v601 = vunpack.c.h.b16 %v116
    %v602 = vunpack.c.l.b16 %v117
    %v603 = vunpack.c.l.b16 %v118
    %v604 = vunpack.c.h.b16 %v118
    %v605 = vunpack.c.l.b16 %v119
    %v606 = vunpack.c.h.b16 %v119
    %v607 = vunpack.c.l.b16 %v120
    %v608 = vunpack.c.h.b16 %v120
    %v609 = vunpack.c.l.b16 %v121
    %v610 = vpack.c.b16 %v603, %v596
    %v611 = vpack.c.b16 %v604, %v597
    %v612 = vpack.c.b16 %v605, %v598
    %v613 = vpack.c.b16 %v606, %v599
    %v614 = vpack.c.b16 %v607, %v600
    %v615 = vpack.c.b16 %v608, %v601
    %v616 = vpack.c.b16 %v609, %v602
    %v1072 = vunpack.c.l.b16 %v122
    %v1073 = vunpack.c.h.b16 %v122
    %v1074 = vunpack.c.l.b16 %v123
    %v1075 = vunpack.c.h.b16 %v123
    %v1076 = vunpack.c.l.b16 %v124
    %v1077 = vunpack.c.h.b16 %v124
    %v1078 = vunpack.c.l.b16 %v125
    %v1079 = vunpack.c.h.b16 %v125
    %v1080 = vunpack.c.l.b16 %v126
    %v1081 = vunpack.c.h.b16 %v126
    %v1082 = vunpack.c.l.b16 %v127
    %v1083 = vunpack.c.h.b16 %v127
    %v1084 = vunpack.c.l.b16 %v128
    %v1085 = vunpack.c.h.b16 %v128
    %v1086 = vunpack.c.l.b16 %v129
    %v1087 = vunpack.c.h.b16 %v129
    %v1088 = vunpack.c.l.b16 %v130
    %v1089 = vunpack.c.h.b16 %v130
    %v1090 = vunpack.c.l.b16 %v131
    %v1091 = vunpack.c.h.b16 %v131
    %v1092 = vunpack.c.l.b16 %v132
    %v1093 = vunpack.c.h.b16 %v132
    %v1094 = vunpack.c.l.b16 %v133
    %v1095 = vunpack.c.h.b16 %v133
    %v1096 = vunpack.c.l.b16 %v134
    %v1097 = vunpack.c.h.b16 %v134
    %v1098 = vunpack.c.l.b16 %v135
    %v1099 = vunpack.c.h.b16 %v135
    %v1100 = vunpack.c.l.b16 %v136
    %v1101 = vunpack.c.h.b16 %v136
    %v1102 = vunpack.c.l.b16 %v137
    %v1103 = vunpack.c.h.b16 %v137
    %v1104 = vunpack.c.l.b16 %v138
    %v1105 = vunpack.c.h.b16 %v138
    %v1106 = vunpack.c.l.b16 %v139
    %v1107 = vunpack.c.h.b16 %v139
    %v1108 = vunpack.c.l.b16 %v140
    %v1109 = vunpack.c.h.b16 %v140
    %v1110 = vunpack.c.l.b16 %v141
    %v1111 = vunpack.c.h.b16 %v141
    %v1112 = vunpack.c.l.b16 %v142
    %v1113 = vunpack.c.h.b16 %v142
    %v1114 = vunpack.c.l.b16 %v143
    %v1115 = vunpack.c.h.b16 %v143
    %v1116 = vunpack.c.l.b16 %v144
    %v1117 = vunpack.c.h.b16 %v144
    %v1118 = vunpack.c.l.b16 %v145
    %v1119 = vunpack.c.h.b16 %v145
    %v1120 = vunpack.c.l.b16 %v146
    %v1121 = vunpack.c.h.b16 %v146
    %v1122 = vunpack.c.l.b16 %v147
    %v1123 = vunpack.c.h.b16 %v147
    %v1124 = vunpack.c.l.b16 %v148
    %v1125 = vunpack.c.h.b16 %v148
    %v1126 = vunpack.c.l.b16 %v149
    %v1127 = vunpack.c.h.b16 %v149
    %v1128 = vunpack.c.l.b16 %v150
    %v1129 = vunpack.c.h.b16 %v150
    %v1130 = vunpack.c.l.b16 %v151
    %v1131 = vunpack.c.h.b16 %v151
    %v1132 = vunpack.c.l.b16 %v152
    %v1133 = vunpack.c.h.b16 %v152
    %v1134 = vunpack.c.l.b16 %v153
    %v1135 = vunpack.c.h.b16 %v153
    %v1136 = vunpack.c.l.b16 %v154
    %v1137 = vunpack.c.h.b16 %v154
    %v1138 = vunpack.c.l.b16 %v155
    %v1139 = vunpack.c.h.b16 %v155
    %v1140 = vunpack.c.l.b16 %v156
    %v1141 = vunpack.c.h.b16 %v156
    %v1142 = vunpack.c.l.b16 %v157
    %v1143 = vunpack.c.h.b16 %v157
    %v1144 = vunpack.c.l.b16 %v158
    %v1145 = vunpack.c.h.b16 %v158
    %v1146 = vunpack.c.l.b16 %v159
    %v1147 = vunpack.c.h.b16 %v159
    %v1148 = vunpack.c.l.b16 %v160
    %v1149 = vunpack.c.h.b16 %v160
    %v1150 = vunpack.c.l.b16 %v161
    %v1151 = vunpack.c.h.b16 %v161
    %v1152 = vunpack.c.l.b16 %v162
    %v1153 = vunpack.c.h.b16 %v162
    %v1154 = vunpack.c.l.b16 %v163
    %v1155 = vunpack.c.h.b16 %v163
    %v1156 = vunpack.c.l.b16 %v164
    %v1157 = vunpack.c.h.b16 %v164
    %v1158 = vunpack.c.l.b16 %v165
    %v1159 = vunpack.c.h.b16 %v165
    %v1160 = vunpack.c.l.b16 %v166
    %v1161 = vunpack.c.h.b16 %v166
    %v1162 = vunpack.c.l.b16 %v167
    %v1163 = vunpack.c.h.b16 %v167
    %v1164 = vunpack.c.l.b16 %v168
    %v1165 = vunpack.c.h.b16 %v168
    %v1166 = vunpack.c.l.b16 %v169
    %v1167 = vunpack.c.h.b16 %v169
    %v1168 = vunpack.c.l.b16 %v170
    %v1169 = vunpack.c.h.b16 %v170
    %v1170 = vunpack.c.l.b16 %v171
    %v1171 = vunpack.c.h.b16 %v171
    %v1172 = vunpack.c.l.b16 %v172
    %v1173 = vunpack.c.h.b16 %v172
    %v1174 = vunpack.c.l.b16 %v173
    %v1175 = vunpack.c.h.b16 %v173
    %v1176 = vunpack.c.l.b16 %v174
    %v1177 = vunpack.c.h.b16 %v174
    %v1178 = vunpack.c.l.b16 %v175
    %v1179 = vunpack.c.h.b16 %v175
    %v1180 = vunpack.c.l.b16 %v176
    %v1181 = vunpack.c.h.b16 %v176
    %v1182 = vunpack.c.l.b16 %v177
    %v1183 = vunpack.c.h.b16 %v177
    %v1184 = vunpack.c.l.b16 %v178
    %v1185 = vunpack.c.h.b16 %v178
    %v1186 = vunpack.c.l.b16 %v179
    %v1187 = vunpack.c.h.b16 %v179
    %v1188 = vunpack.c.l.b16 %v180
    %v1189 = vunpack.c.h.b16 %v180
    %v1190 = vunpack.c.l.b16 %v181
    %v1191 = vunpack.c.h.b16 %v181
    %v1192 = vunpack.c.l.b16 %v182
    %v1193 = vunpack.c.h.b16 %v182
    %v1194 = vunpack.c.l.b16 %v183
    %v1195 = vunpack.c.h.b16 %v183
    %v1196 = vunpack.c.l.b16 %v184
    %v1197 = vunpack.c.h.b16 %v184
    %v1198 = vunpack.c.l.b16 %v185
    %v1199 = vunpack.c.h.b16 %v185
    %v1200 = vunpack.c.l.b16 %v186
    %v1201 = vunpack.c.h.b16 %v186
    %v1202 = vunpack.c.l.b16 %v187
    %v1203 = vunpack.c.h.b16 %v187
    %v1204 = vunpack.c.l.b16 %v188
    %v1205 = vunpack.c.h.b16 %v188
    %v1206 = vunpack.c.l.b16 %v189
    %v1207 = vunpack.c.h.b16 %v189
    %v1208 = vunpack.c.l.b16 %v190
    %v1209 = vunpack.c.h.b16 %v190
    %v1210 = vunpack.c.l.b16 %v191
    %v1211 = vunpack.c.h.b16 %v191
    %v1212 = vunpack.c.l.b16 %v192
    %v1213 = vunpack.c.h.b16 %v192
    %v1214 = vunpack.c.l.b16 %v193
    %v1215 = vunpack.c.h.b16 %v193
    %v1216 = vunpack.c.l.b16 %v194
    %v1217 = vunpack.c.h.b16 %v194
    %v1218 = vunpack.c.l.b16 %v195
    %v1219 = vunpack.c.h.b16 %v195
    %v1220 = vunpack.c.l.b16 %v196
    %v1221 = vunpack.c.h.b16 %v196
    %v1222 = vunpack.c.l.b16 %v197
    %v1223 = vunpack.c.h.b16 %v197
    %v1224 = vunpack.c.l.b16 %v198
    %v1225 = vunpack.c.h.b16 %v198
    %v1226 = vunpack.c.l.b16 %v199
    %v1227 = vunpack.c.h.b16 %v199
    %v1228 = vunpack.c.l.b16 %v200
    %v1229 = vunpack.c.h.b16 %v200
    %v1230 = vunpack.c.l.b16 %v201
    %v1231 = vunpack.c.h.b16 %v201
    %v1232 = vunpack.c.l.b16 %v202
    %v1233 = vunpack.c.h.b16 %v202
    %v1234 = vunpack.c.l.b16 %v203
    %v1235 = vunpack.c.h.b16 %v203
    %v1236 = vunpack.c.l.b16 %v204
    %v1237 = vunpack.c.h.b16 %v204
    %v1238 = vunpack.c.l.b16 %v205
    %v1239 = vunpack.c.h.b16 %v205
    %v1240 = vunpack.c.l.b16 %v206
    %v1241 = vunpack.c.h.b16 %v206
    %v1242 = vunpack.c.l.b16 %v207
    %v1243 = vunpack.c.h.b16 %v207
    %v1244 = vunpack.c.l.b16 %v208
    %v1245 = vunpack.c.h.b16 %v208
    %v1246 = vunpack.c.l.b16 %v209
    %v1247 = vunpack.c.h.b16 %v209
    %v1248 = vunpack.c.l.b16 %v210
    %v1249 = vunpack.c.h.b16 %v210
    %v1250 = vunpack.c.l.b16 %v211
    %v1251 = vunpack.c.h.b16 %v211
    %v1252 = vunpack.c.l.b16 %v212
    %v1253 = vunpack.c.h.b16 %v212
    %v1254 = vunpack.c.l.b16 %v213
    %v1255 = vunpack.c.h.b16 %v213
    %v1256 = vunpack.c.l.b16 %v214
    %v1257 = vunpack.c.h.b16 %v214
    %v1258 = vunpack.c.l.b16 %v215
    %v1259 = vunpack.c.h.b16 %v215
    %v1260 = vunpack.c.l.b16 %v216
    %v1261 = vunpack.c.h.b16 %v216
    %v1262 = vunpack.c.l.b16 %v217
    %v1263 = vunpack.c.h.b16 %v217
    %v1264 = vunpack.c.l.b16 %v218
    %v1265 = vunpack.c.h.b16 %v218
    %v1266 = vunpack.c.l.b16 %v219
    %v1267 = vunpack.c.h.b16 %v219
    %v1268 = vunpack.c.l.b16 %v220
    %v1269 = vunpack.c.h.b16 %v220
    %v1270 = vunpack.c.l.b16 %v221
    %v1271 = vunpack.c.h.b16 %v221
    %v1272 = vunpack.c.l.b16 %v222
    %v1273 = vunpack.c.h.b16 %v222
    %v1274 = vunpack.c.l.b16 %v223
    %v1275 = vunpack.c.h.b16 %v223
    %v1276 = vunpack.c.l.b16 %v224
    %v1277 = vunpack.c.h.b16 %v224
    %v1278 = vunpack.c.l.b16 %v225
    %v1279 = vunpack.c.h.b16 %v225
    %v1280 = vunpack.c.l.b16 %v226
    %v1281 = vunpack.c.h.b16 %v226
    %v1282 = vunpack.c.l.b16 %v227
    %v1283 = vunpack.c.h.b16 %v227
    %v1284 = vunpack.c.l.b16 %v228
    %v1285 = vunpack.c.h.b16 %v228
    %v1286 = vunpack.c.l.b16 %v229
    %v1287 = vunpack.c.h.b16 %v229
    %v1288 = vunpack.c.l.b16 %v230
    %v1289 = vunpack.c.h.b16 %v230
    %v1290 = vunpack.c.l.b16 %v231
    %v1291 = vunpack.c.h.b16 %v231
    %v1292 = vunpack.c.l.b16 %v232
    %v1293 = vunpack.c.h.b16 %v232
    %v1294 = vunpack.c.l.b16 %v233
    %v1295 = vunpack.c.h.b16 %v233
    %v1296 = vunpack.c.l.b16 %v234
    %v1297 = vunpack.c.h.b16 %v234
    %v1298 = vunpack.c.l.b16 %v235
    %v1299 = vunpack.c.h.b16 %v235
    %v1300 = vunpack.c.l.b16 %v236
    %v1301 = vunpack.c.h.b16 %v236
    %v1302 = vunpack.c.l.b16 %v237
    %v1303 = vunpack.c.h.b16 %v237
    %v1304 = vunpack.c.l.b16 %v238
    %v1305 = vunpack.c.h.b16 %v238
    %v1306 = vunpack.c.l.b16 %v239
    %v1307 = vunpack.c.h.b16 %v239
    %v1308 = vunpack.c.l.b16 %v240
    %v1309 = vunpack.c.h.b16 %v240
    %v1310 = vunpack.c.l.b16 %v241
    %v1311 = vunpack.c.h.b16 %v241
    %v1312 = vunpack.c.l.b16 %v242
    %v1313 = vunpack.c.h.b16 %v242
    %v1314 = vunpack.c.l.b16 %v243
    %v1315 = vunpack.c.h.b16 %v243
    %v1316 = vunpack.c.l.b16 %v244
    %v1317 = vunpack.c.h.b16 %v244
    %v1318 = vunpack.c.l.b16 %v245
    %v1319 = vunpack.c.h.b16 %v245
    %v1320 = vunpack.c.l.b16 %v246
    %v1321 = vunpack.c.h.b16 %v246
    %v1322 = vunpack.c.l.b16 %v247
    %v1323 = vunpack.c.h.b16 %v247
    %v1324 = vunpack.c.l.b16 %v248
    %v1325 = vunpack.c.h.b16 %v248
    %v1326 = vunpack.c.l.b16 %v249
    %v1327 = vunpack.c.h.b16 %v249
    %v1328 = vunpack.c.l.b16 %v250
    %v1329 = vunpack.c.h.b16 %v250
    %v1330 = vunpack.c.l.b16 %v251
    %v1331 = vunpack.c.h.b16 %v251
    %v1332 = vunpack.c.l.b16 %v252
    %v1333 = vunpack.c.h.b16 %v252
    %v1334 = vunpack.c.l.b16 %v253
    %v1335 = vunpack.c.h.b16 %v253
    %v1336 = vunpack.c.l.b16 %v254
    %v1337 = vunpack.c.h.b16 %v254
    %v1338 = vunpack.c.l.b16 %v255
    %v1339 = vunpack.c.h.b16 %v255
    %v1340 = vunpack.c.l.b16 %v256
    %v1341 = vunpack.c.h.b16 %v256
    %v1342 = vunpack.c.l.b16 %v257
    %v1343 = vunpack.c.h.b16 %v257
    %v1344 = vunpack.c.l.b16 %v258
    %v1345 = vunpack.c.h.b16 %v258
    %v1346 = vunpack.c.l.b16 %v259
    %v1347 = vunpack.c.h.b16 %v259
    %v1348 = vunpack.c.l.b16 %v260
    %v1349 = vunpack.c.h.b16 %v260
    %v1350 = vunpack.c.l.b16 %v261
    %v1351 = vunpack.c.h.b16 %v261
    %v1352 = vunpack.c.l.b16 %v262
    %v1353 = vunpack.c.h.b16 %v262
    %v1354 = vunpack.c.l.b16 %v263
    %v1355 = vunpack.c.h.b16 %v263
    %v1356 = vunpack.c.l.b16 %v264
    %v1357 = vunpack.c.h.b16 %v264
    %v1358 = vunpack.c.l.b16 %v265
    %v1359 = vunpack.c.h.b16 %v265
    %v1360 = vunpack.c.l.b16 %v266
    %v1361 = vunpack.c.h.b16 %v266
    %v1362 = vunpack.c.l.b16 %v267
    %v1363 = vunpack.c.h.b16 %v267
    %v1364 = vunpack.c.l.b16 %v268
    %v1365 = vunpack.c.h.b16 %v268
    %v1366 = vunpack.c.l.b16 %v269
    %v1367 = vunpack.c.h.b16 %v269
    %v1368 = vunpack.c.l.b16 %v270
    %v1369 = vunpack.c.h.b16 %v270
    %v1370 = vunpack.c.l.b16 %v271
    %v1371 = vunpack.c.h.b16 %v271
    %v1372 = vunpack.c.l.b16 %v272
    %v1373 = vunpack.c.h.b16 %v272
    %v1374 = vunpack.c.l.b16 %v273
    %v1375 = vunpack.c.h.b16 %v273
    %v1376 = vunpack.c.l.b16 %v274
    %v1377 = vunpack.c.h.b16 %v274
    %v1378 = vunpack.c.l.b16 %v275
    %v1379 = vunpack.c.h.b16 %v275
    %v1380 = vunpack.c.l.b16 %v276
    %v1381 = vunpack.c.h.b16 %v276
    %v1382 = vunpack.c.l.b16 %v277
    %v1383 = vunpack.c.h.b16 %v277
    %v1384 = vunpack.c.l.b16 %v278
    %v1385 = vunpack.c.h.b16 %v278
    %v1386 = vunpack.c.l.b16 %v279
    %v1387 = vunpack.c.h.b16 %v279
    %v1388 = vunpack.c.l.b16 %v280
    %v1389 = vunpack.c.h.b16 %v280
    %v1390 = vunpack.c.l.b16 %v281
    %v1391 = vunpack.c.h.b16 %v281
    %v1392 = vunpack.c.l.b16 %v282
    %v1393 = vunpack.c.h.b16 %v282
    %v1394 = vunpack.c.l.b16 %v283
    %v1395 = vunpack.c.h.b16 %v283
    %v1396 = vunpack.c.l.b16 %v284
    %v1397 = vunpack.c.h.b16 %v284
    %v1398 = vunpack.c.l.b16 %v285
    %v1399 = vunpack.c.h.b16 %v285
    %v1400 = vunpack.c.l.b16 %v286
    %v1401 = vunpack.c.h.b16 %v286
    %v1402 = vunpack.c.l.b16 %v287
    %v1403 = vunpack.c.h.b16 %v287
    %v1404 = vunpack.c.l.b16 %v288
    %v1405 = vunpack.c.h.b16 %v288
    %v1406 = vunpack.c.l.b16 %v289
    %v1407 = vunpack.c.h.b16 %v289
    %v1408 = vunpack.c.l.b16 %v290
    %v1409 = vunpack.c.h.b16 %v290
    %v1410 = vunpack.c.l.b16 %v291
    %v1411 = vunpack.c.h.b16 %v291
    %v1412 = vunpack.c.l.b16 %v292
    %v1413 = vunpack.c.h.b16 %v292
    %v1414 = vunpack.c.l.b16 %v293
    %v1415 = vunpack.c.h.b16 %v293
    %v1416 = vunpack.c.l.b16 %v294
    %v1417 = vunpack.c.h.b16 %v294
    %v1418 = vunpack.c.l.b16 %v295
    %v1419 = vunpack.c.h.b16 %v295
    %v1420 = vunpack.c.l.b16 %v296
    %v1421 = vunpack.c.h.b16 %v296
    %v1422 = vunpack.c.l.b16 %v297
    %v1423 = vunpack.c.h.b16 %v297
    %v1424 = vunpack.c.l.b16 %v298
    %v1425 = vunpack.c.h.b16 %v298
    %v1426 = vunpack.c.l.b16 %v299
    %v1427 = vunpack.c.h.b16 %v299
    %v1428 = vunpack.c.l.b16 %v300
    %v1429 = vunpack.c.h.b16 %v300
    %v1430 = vunpack.c.l.b16 %v301
    %v1431 = vunpack.c.h.b16 %v301
    %v1432 = vunpack.c.l.b16 %v302
    %v1433 = vunpack.c.h.b16 %v302
    %v1434 = vunpack.c.l.b16 %v303
    %v1435 = vunpack.c.h.b16 %v303
    %v1436 = vunpack.c.l.b16 %v304
    %v1437 = vunpack.c.h.b16 %v304
    %v1438 = vunpack.c.l.b16 %v305
    %v1439 = vunpack.c.h.b16 %v305
    %v1440 = vunpack.c.l.b16 %v306
    %v1441 = vunpack.c.h.b16 %v306
    %v1442 = vunpack.c.l.b16 %v307
    %v1443 = vunpack.c.h.b16 %v307
    %v1444 = vunpack.c.l.b16 %v308
    %v1445 = vunpack.c.h.b16 %v308
    %v1446 = vunpack.c.l.b16 %v309
    %v1447 = vunpack.c.h.b16 %v309
    %v1448 = vunpack.c.l.b16 %v310
    %v1449 = vunpack.c.h.b16 %v310
    %v1450 = vunpack.c.l.b16 %v311
    %v1451 = vunpack.c.h.b16 %v311
    %v1452 = vunpack.c.l.b16 %v312
    %v1453 = vunpack.c.h.b16 %v312
    %v1454 = vunpack.c.l.b16 %v313
    %v1455 = vunpack.c.h.b16 %v313
    %v1456 = vunpack.c.l.b16 %v314
    %v1457 = vunpack.c.h.b16 %v314
    %v1458 = vunpack.c.l.b16 %v315
    %v1459 = vunpack.c.h.b16 %v315
    %v1460 = vunpack.c.l.b16 %v316
    %v1461 = vunpack.c.h.b16 %v316
    %v1462 = vunpack.c.l.b16 %v317
    %v1463 = vunpack.c.h.b16 %v317
    %v1464 = vunpack.c.l.b16 %v318
    %v1465 = vunpack.c.h.b16 %v318
    %v1466 = vunpack.c.l.b16 %v319
    %v1467 = vunpack.c.h.b16 %v319
    %v1468 = vunpack.c.l.b16 %v320
    %v1469 = vunpack.c.h.b16 %v320
    %v1470 = vunpack.c.l.b16 %v321
    %v1471 = vunpack.c.h.b16 %v321
    %v1472 = vunpack.c.l.b16 %v322
    %v1473 = vunpack.c.h.b16 %v322
    %v1474 = vunpack.c.l.b16 %v323
    %v1475 = vunpack.c.h.b16 %v323
    %v1476 = vunpack.c.l.b16 %v324
    %v1477 = vunpack.c.h.b16 %v324
    %v1478 = vunpack.c.l.b16 %v325
    %v1479 = vunpack.c.h.b16 %v325
    %v1480 = vunpack.c.l.b16 %v326
    %v1481 = vunpack.c.h.b16 %v326
    %v1482 = vunpack.c.l.b16 %v327
    %v1483 = vunpack.c.h.b16 %v327
    %v1484 = vunpack.c.l.b16 %v328
    %v1485 = vunpack.c.h.b16 %v328
    %v1486 = vunpack.c.l.b16 %v329
    %v1487 = vunpack.c.h.b16 %v329
    %v1488 = vunpack.c.l.b16 %v330
    %v1489 = vunpack.c.h.b16 %v330
    %v1490 = vunpack.c.l.b16 %v331
    %v1491 = vunpack.c.h.b16 %v331
    %v1492 = vunpack.c.l.b16 %v332
    %v1493 = vunpack.c.h.b16 %v332
    %v1494 = vunpack.c.l.b16 %v333
    %v1495 = vunpack.c.h.b16 %v333
    %v1496 = vunpack.c.l.b16 %v334
    %v1497 = vunpack.c.h.b16 %v334
    %v1498 = vunpack.c.l.b16 %v335
    %v1499 = vunpack.c.h.b16 %v335
    %v1500 = vunpack.c.l.b16 %v336
    %v1501 = vunpack.c.h.b16 %v336
    %v1502 = vunpack.c.l.b16 %v337
    %v1503 = vunpack.c.h.b16 %v337
    %v1504 = vunpack.c.l.b16 %v338
    %v1505 = vunpack.c.h.b16 %v338
    %v1506 = vunpack.c.l.b16 %v339
    %v1507 = vunpack.c.h.b16 %v339
    %v1508 = vunpack.c.l.b16 %v340
    %v1509 = vunpack.c.h.b16 %v340
    %v1510 = vunpack.c.l.b16 %v341
    %v1511 = vunpack.c.h.b16 %v341
    %v1512 = vunpack.c.l.b16 %v342
    %v1513 = vunpack.c.h.b16 %v342
    %v1514 = vunpack.c.l.b16 %v343
    %v1515 = vunpack.c.h.b16 %v343
    %v1516 = vunpack.c.l.b16 %v344
    %v1517 = vunpack.c.h.b16 %v344
    %v1518 = vunpack.c.l.b16 %v345
    %v1519 = vunpack.c.h.b16 %v345
    %v1520 = vunpack.c.l.b16 %v346
    %v1521 = vunpack.c.h.b16 %v346
    %v1522 = vunpack.c.l.b16 %v347
    %v1523 = vunpack.c.h.b16 %v347
    %v1524 = vunpack.c.l.b16 %v348
    %v1525 = vunpack.c.h.b16 %v348
    %v1526 = vunpack.c.l.b16 %v349
    %v1527 = vunpack.c.h.b16 %v349
    %v1528 = vunpack.c.l.b16 %v350
    %v1529 = vunpack.c.h.b16 %v350
    %v1530 = vunpack.c.l.b16 %v351
    %v1531 = vunpack.c.h.b16 %v351
    %v1532 = vunpack.c.l.b16 %v352
    %v1533 = vunpack.c.h.b16 %v352
    %v1534 = vunpack.c.l.b16 %v353
    %v1535 = vunpack.c.h.b16 %v353
    %v1536 = vunpack.c.l.b16 %v354
    %v1537 = vunpack.c.h.b16 %v354
    %v1538 = vunpack.c.l.b16 %v355
    %v1539 = vunpack.c.h.b16 %v355
    %v1540 = vunpack.c.l.b16 %v356
    %v1541 = vunpack.c.h.b16 %v356
    %v1542 = vunpack.c.l.b16 %v357
    %v1543 = vunpack.c.h.b16 %v357
    %v1544 = vunpack.c.l.b16 %v358
    %v1545 = vunpack.c.h.b16 %v358
    %v1546 = vunpack.c.l.b16 %v359
    %v1547 = vunpack.c.h.b16 %v359
    %v1548 = vunpack.c.l.b16 %v360
    %v1549 = vunpack.c.h.b16 %v360
    %v1550 = vunpack.c.l.b16 %v361
    %v1551 = vunpack.c.h.b16 %v361
    %v1552 = vunpack.c.l.b16 %v362
    %v1553 = vunpack.c.h.b16 %v362
    %v1554 = vunpack.c.l.b16 %v363
    %v1555 = vunpack.c.h.b16 %v363
    %v1556 = vunpack.c.l.b16 %v364
    %v1557 = vunpack.c.h.b16 %v364
    %v1558 = vunpack.c.l.b16 %v365
    %v1559 = vunpack.c.h.b16 %v365
    %v1560 = vunpack.c.l.b16 %v366
    %v1561 = vunpack.c.h.b16 %v366
    %v1562 = vunpack.c.l.b16 %v367
    %v1563 = vunpack.c.h.b16 %v367
    %v1564 = vunpack.c.l.b16 %v368
    %v1565 = vunpack.c.h.b16 %v368
    %v1566 = vunpack.c.l.b16 %v369
    %v1567 = vunpack.c.h.b16 %v369
    %v1568 = vunpack.c.l.b16 %v370
    %v1569 = vunpack.c.h.b16 %v370
    %v1570 = vunpack.c.l.b16 %v371
    %v1571 = vunpack.c.h.b16 %v371
    %v1572 = vunpack.c.l.b16 %v372
    %v1573 = vunpack.c.h.b16 %v372
    %v1574 = vunpack.c.l.b16 %v373
    %v1575 = vunpack.c.h.b16 %v373
    %v1576 = vunpack.c.l.b16 %v374
    %v1577 = vunpack.c.h.b16 %v374
    %v1578 = vunpack.c.l.b16 %v375
    %v1579 = vunpack.c.h.b16 %v375
    %v1580 = vunpack.c.l.b16 %v376
    %v1581 = vunpack.c.h.b16 %v376
    %v1582 = vunpack.c.l.b16 %v377
    %v1583 = vunpack.c.h.b16 %v377
    %v1584 = vunpack.c.l.b16 %v378
    %v1585 = vunpack.c.h.b16 %v378
    %v1586 = vunpack.c.l.b16 %v379
    %v1587 = vunpack.c.h.b16 %v379
    %v1588 = vunpack.c.l.b16 %v380
    %v1589 = vunpack.c.h.b16 %v380
    %v1590 = vunpack.c.l.b16 %v381
    %v1591 = vunpack.c.h.b16 %v381
    %v1592 = vunpack.c.l.b16 %v382
    %v1593 = vunpack.c.h.b16 %v382
    %v1594 = vunpack.c.l.b16 %v383
    %v1595 = vunpack.c.h.b16 %v383
    %v1596 = vunpack.c.l.b16 %v384
    %v1597 = vunpack.c.h.b16 %v384
    %v1598 = vunpack.c.l.b16 %v385
    %v1599 = vunpack.c.h.b16 %v385
    %v1600 = vunpack.c.l.b16 %v386
    %v1601 = vunpack.c.h.b16 %v386
    %v1602 = vunpack.c.l.b16 %v387
    %v1603 = vunpack.c.h.b16 %v387
    %v1604 = vunpack.c.l.b16 %v388
    %v1605 = vunpack.c.h.b16 %v388
    %v1606 = vunpack.c.l.b16 %v389
    %v1607 = vunpack.c.h.b16 %v389
    %v1608 = vunpack.c.l.b16 %v390
    %v1609 = vunpack.c.h.b16 %v390
    %v1610 = vunpack.c.l.b16 %v391
    %v1611 = vunpack.c.h.b16 %v391
    %v1612 = vunpack.c.l.b16 %v392
    %v1613 = vunpack.c.h.b16 %v392
    %v1614 = vunpack.c.l.b16 %v393
    %v1615 = vunpack.c.h.b16 %v393
    %v1616 = vunpack.c.l.b16 %v394
    %v1617 = vunpack.c.h.b16 %v394
    %v1618 = vunpack.c.l.b16 %v395
    %v1619 = vunpack.c.h.b16 %v395
    %v1620 = vunpack.c.l.b16 %v396
    %v1621 = vunpack.c.h.b16 %v396
    %v1622 = vunpack.c.l.b16 %v397
    %v1623 = vunpack.c.h.b16 %v397
    %v1624 = vunpack.c.l.b16 %v398
    %v1625 = vunpack.c.h.b16 %v398
    %v1626 = vunpack.c.l.b16 %v399
    %v1627 = vunpack.c.h.b16 %v399
    %v1628 = vunpack.c.l.b16 %v400
    %v1629 = vunpack.c.h.b16 %v400
    %v1630 = vunpack.c.l.b16 %v401
    %v1631 = vunpack.c.h.b16 %v401
    %v1632 = vunpack.c.l.b16 %v402
    %v1633 = vunpack.c.h.b16 %v402
    %v1634 = vunpack.c.l.b16 %v403
    %v1635 = vunpack.c.h.b16 %v403
    %v1636 = vunpack.c.l.b16 %v404
    %v1637 = vunpack.c.h.b16 %v404
    %v1638 = vunpack.c.l.b16 %v405
    %v1639 = vunpack.c.h.b16 %v405
    %v1640 = vunpack.c.l.b16 %v406
    %v1641 = vunpack.c.h.b16 %v406
    %v1642 = vunpack.c.l.b16 %v407
    %v1643 = vunpack.c.h.b16 %v407
    %v1644 = vunpack.c.l.b16 %v408
    %v1645 = vunpack.c.h.b16 %v408
    %v1646 = vunpack.c.l.b16 %v409
    %v1647 = vunpack.c.h.b16 %v409
    %v1648 = vunpack.c.l.b16 %v410
    %v1649 = vunpack.c.h.b16 %v410
    %v1650 = vunpack.c.l.b16 %v411
    %v1651 = vunpack.c.h.b16 %v411
    %v1652 = vunpack.c.l.b16 %v412
    %v1653 = vunpack.c.h.b16 %v412
    %v1654 = vunpack.c.l.b16 %v413
    %v1655 = vunpack.c.h.b16 %v413
    %v1656 = vunpack.c.l.b16 %v414
    %v1657 = vunpack.c.h.b16 %v414
    %v1658 = vunpack.c.l.b16 %v415
    %v1659 = vunpack.c.h.b16 %v415
    %v1660 = vunpack.c.l.b16 %v416
    %v1661 = vunpack.c.h.b16 %v416
    %v1662 = vunpack.c.l.b16 %v417
    %v1663 = vunpack.c.h.b16 %v417
    %v1664 = vunpack.c.l.b16 %v418
    %v1665 = vunpack.c.h.b16 %v418
    %v1666 = vunpack.c.l.b16 %v419
    %v1667 = vunpack.c.h.b16 %v419
    %v1668 = vunpack.c.l.b16 %v420
    %v1669 = vunpack.c.h.b16 %v420
    %v1670 = vunpack.c.l.b16 %v421
    %v1671 = vunpack.c.h.b16 %v421
    %v1672 = vunpack.c.l.b16 %v422
    %v1673 = vunpack.c.h.b16 %v422
    %v1674 = vunpack.c.l.b16 %v423
    %v1675 = vunpack.c.h.b16 %v423
    %v1676 = vunpack.c.l.b16 %v424
    %v1677 = vunpack.c.h.b16 %v424
    %v1678 = vunpack.c.l.b16 %v425
    %v1679 = vunpack.c.h.b16 %v425
    %v1680 = vunpack.c.l.b16 %v426
    %v1681 = vunpack.c.h.b16 %v426
    %v1682 = vunpack.c.l.b16 %v427
    %v1683 = vunpack.c.h.b16 %v427
    %v1684 = vunpack.c.l.b16 %v428
    %v1685 = vunpack.c.h.b16 %v428
    %v1686 = vunpack.c.l.b16 %v429
    %v1687 = vunpack.c.h.b16 %v429
    %v1688 = vunpack.c.l.b16 %v430
    %v1689 = vunpack.c.h.b16 %v430
    %v1690 = vunpack.c.l.b16 %v431
    %v1691 = vunpack.c.h.b16 %v431
    %v1692 = vunpack.c.l.b16 %v432
    %v1693 = vunpack.c.h.b16 %v432
    %v1694 = vunpack.c.l.b16 %v433
    %v1695 = vunpack.c.h.b16 %v433
    %v1696 = vunpack.c.l.b16 %v434
    %v1697 = vunpack.c.h.b16 %v434
    %v1698 = vunpack.c.l.b16 %v435
    %v1699 = vunpack.c.h.b16 %v435
    %v1700 = vunpack.c.l.b16 %v436
    %v1701 = vunpack.c.h.b16 %v436
    %v1702 = vunpack.c.l.b16 %v437
    %v1703 = vunpack.c.h.b16 %v437
    %v1704 = vunpack.c.l.b16 %v438
    %v1705 = vunpack.c.h.b16 %v438
    %v1706 = vunpack.c.l.b16 %v439
    %v1707 = vunpack.c.h.b16 %v439
    %v1708 = vunpack.c.l.b16 %v440
    %v1709 = vunpack.c.h.b16 %v440
    %v1710 = vunpack.c.l.b16 %v441
    %v1711 = vunpack.c.h.b16 %v441
    %v1712 = vunpack.c.l.b16 %v442
    %v1713 = vunpack.c.h.b16 %v442
    %v1714 = vunpack.c.l.b16 %v443
    %v1715 = vunpack.c.h.b16 %v443
    %v1716 = vunpack.c.l.b16 %v444
    %v1717 = vunpack.c.h.b16 %v444
    %v1718 = vunpack.c.l.b16 %v445
    %v1719 = vunpack.c.h.b16 %v445
    %v1720 = vunpack.c.l.b16 %v446
    %v1721 = vunpack.c.h.b16 %v446
    %v1722 = vunpack.c.l.b16 %v447
    %v1723 = vunpack.c.h.b16 %v447
    %v1724 = vunpack.c.l.b16 %v448
    %v1725 = vunpack.c.h.b16 %v448
    %v1726 = vunpack.c.l.b16 %v449
    %v1727 = vunpack.c.h.b16 %v449
    %v1728 = vunpack.c.l.b16 %v450
    %v1729 = vunpack.c.h.b16 %v450
    %v1730 = vunpack.c.l.b16 %v451
    %v1731 = vunpack.c.h.b16 %v451
    %v1732 = vunpack.c.l.b16 %v452
    %v1733 = vunpack.c.h.b16 %v452
    %v1734 = vunpack.c.l.b16 %v453
    %v1735 = vunpack.c.h.b16 %v453
    %v1736 = vunpack.c.l.b16 %v454
    %v1737 = vunpack.c.h.b16 %v454
    %v1738 = vunpack.c.l.b16 %v455
    %v1739 = vunpack.c.h.b16 %v455
    %v1740 = vunpack.c.l.b16 %v456
    %v1741 = vunpack.c.h.b16 %v456
    %v1742 = vunpack.c.l.b16 %v457
    %v1743 = vunpack.c.h.b16 %v457
    %v1744 = vunpack.c.l.b16 %v458
    %v1745 = vunpack.c.h.b16 %v458
    %v1746 = vunpack.c.l.b16 %v459
    %v1747 = vunpack.c.h.b16 %v459
    %v1748 = vunpack.c.l.b16 %v460
    %v1749 = vunpack.c.h.b16 %v460
    %v1750 = vunpack.c.l.b16 %v461
    %v1751 = vunpack.c.h.b16 %v461
    %v1752 = vunpack.c.l.b16 %v462
    %v1753 = vunpack.c.h.b16 %v462
    %v1754 = vunpack.c.l.b16 %v463
    %v1755 = vunpack.c.h.b16 %v463
    %v1756 = vunpack.c.l.b16 %v464
    %v1757 = vunpack.c.h.b16 %v464
    %v1758 = vunpack.c.l.b16 %v465
    %v1759 = vunpack.c.h.b16 %v465
    %v1760 = vunpack.c.l.b16 %v466
    %v1761 = vunpack.c.h.b16 %v466
    %v1762 = vunpack.c.l.b16 %v467
    %v1763 = vunpack.c.h.b16 %v467
    %v1764 = vunpack.c.l.b16 %v468
    %v1765 = vunpack.c.h.b16 %v468
    %v1766 = vunpack.c.l.b16 %v469
    %v1767 = vunpack.c.h.b16 %v469
    %v1768 = vunpack.c.l.b16 %v470
    %v1769 = vunpack.c.h.b16 %v470
    %v1770 = vunpack.c.l.b16 %v471
    %v1771 = vunpack.c.h.b16 %v471
    %v1772 = vunpack.c.l.b16 %v472
    %v1773 = vunpack.c.h.b16 %v472
    %v1774 = vunpack.c.l.b16 %v473
    %v1775 = vunpack.c.h.b16 %v473
    %v1776 = vunpack.c.l.b16 %v474
    %v1777 = vunpack.c.h.b16 %v474
    %v1778 = vunpack.c.l.b16 %v475
    %v1779 = vunpack.c.h.b16 %v475
    %v1780 = vunpack.c.l.b16 %v476
    %v1781 = vunpack.c.h.b16 %v476
    %v1782 = vunpack.c.l.b16 %v477
    %v1783 = vunpack.c.h.b16 %v477
    %v1784 = vunpack.c.l.b16 %v478
    %v1785 = vunpack.c.h.b16 %v478
    %v1786 = vunpack.c.l.b16 %v479
    %v1787 = vunpack.c.h.b16 %v479
    %v1788 = vunpack.c.l.b16 %v480
    %v1789 = vunpack.c.h.b16 %v480
    %v1790 = vunpack.c.l.b16 %v481
    %v1791 = vunpack.c.h.b16 %v481
    %v1792 = vunpack.c.l.b16 %v482
    %v1793 = vunpack.c.h.b16 %v482
    %v1794 = vunpack.c.l.b16 %v483
    %v1795 = vunpack.c.h.b16 %v483
    %v1796 = vunpack.c.l.b16 %v484
    %v1797 = vunpack.c.h.b16 %v484
    %v1798 = vunpack.c.l.b16 %v485
    %v1799 = vunpack.c.h.b16 %v485
    %v1800 = vunpack.c.l.b16 %v486
    %v1801 = vunpack.c.h.b16 %v486
    %v1802 = vunpack.c.l.b16 %v487
    %v1803 = vunpack.c.h.b16 %v487
    %v1804 = vunpack.c.l.b16 %v488
    %v1805 = vunpack.c.h.b16 %v488
    %v1806 = vunpack.c.l.b16 %v489
    %v1807 = vunpack.c.h.b16 %v489
    %v1808 = vunpack.c.l.b16 %v490
    %v1809 = vunpack.c.h.b16 %v490
    %v1810 = vunpack.c.l.b16 %v491
    %v1811 = vunpack.c.h.b16 %v491
    %v1812 = vunpack.c.l.b16 %v492
    %v1813 = vunpack.c.h.b16 %v492
    %v1814 = vunpack.c.l.b16 %v493
    %v1815 = vunpack.c.h.b16 %v493
    %v1816 = vunpack.c.l.b16 %v494
    %v1817 = vunpack.c.h.b16 %v494
    %v1818 = vunpack.c.l.b16 %v495
    %v1819 = vunpack.c.h.b16 %v495
    %v1820 = vunpack.c.l.b16 %v496
    %v1821 = vunpack.c.h.b16 %v496
    %v1822 = vunpack.c.l.b16 %v497
    %v1823 = vunpack.c.h.b16 %v497
    %v1824 = vunpack.c.l.b16 %v498
    %v1825 = vunpack.c.h.b16 %v498
    %v1826 = vunpack.c.l.b16 %v499
    %v1827 = vunpack.c.h.b16 %v499
    %v1828 = vunpack.c.l.b16 %v500
    %v1829 = vunpack.c.h.b16 %v500
    %v1830 = vunpack.c.l.b16 %v501
    %v1831 = vunpack.c.h.b16 %v501
    %v1832 = vunpack.c.l.b16 %v502
    %v1833 = vunpack.c.h.b16 %v502
    %v1834 = vunpack.c.l.b16 %v503
    %v1835 = vunpack.c.h.b16 %v503
    %v1836 = vunpack.c.l.b16 %v504
    %v1837 = vunpack.c.h.b16 %v504
    %v1838 = vunpack.c.l.b16 %v505
    %v1839 = vunpack.c.h.b16 %v505
    %v1840 = vunpack.c.l.b16 %v506
    %v1841 = vunpack.c.h.b16 %v506
    %v1842 = vunpack.c.l.b16 %v507
    %v1843 = vunpack.c.h.b16 %v507
    %v1844 = vunpack.c.l.b16 %v508
    %v1845 = vunpack.c.h.b16 %v508
    %v1846 = vunpack.c.l.b16 %v509
    %v1847 = vunpack.c.h.b16 %v509
    %v1848 = vunpack.c.l.b16 %v510
    %v1849 = vunpack.c.h.b16 %v510
    %v1850 = vunpack.c.l.b16 %v511
    %v1851 = vunpack.c.h.b16 %v511
    %v1852 = vunpack.c.l.b16 %v512
    %v1853 = vunpack.c.h.b16 %v512
    %v1854 = vunpack.c.l.b16 %v513
    %v1855 = vunpack.c.h.b16 %v513
    %v1856 = vunpack.c.l.b16 %v514
    %v1857 = vunpack.c.h.b16 %v514
    %v1858 = vunpack.c.l.b16 %v515
    %v1859 = vunpack.c.h.b16 %v515
    %v1860 = vunpack.c.l.b16 %v516
    %v1861 = vunpack.c.h.b16 %v516
    %v1862 = vunpack.c.l.b16 %v517
    %v1863 = vunpack.c.h.b16 %v517
    %v1864 = vunpack.c.l.b16 %v518
    %v1865 = vunpack.c.h.b16 %v518
    %v1866 = vunpack.c.l.b16 %v519
    %v1867 = vunpack.c.h.b16 %v519
    %v1868 = vunpack.c.l.b16 %v520
    %v1869 = vunpack.c.h.b16 %v520
    %v1870 = vunpack.c.l.b16 %v521
    %v1871 = vunpack.c.h.b16 %v521
    %v1872 = vunpack.c.l.b16 %v522
    %v1873 = vunpack.c.h.b16 %v522
    %v1874 = vunpack.c.l.b16 %v523
    %v1875 = vunpack.c.h.b16 %v523
    %v1876 = vunpack.c.l.b16 %v524
    %v1877 = vunpack.c.h.b16 %v524
    %v1878 = vunpack.c.l.b16 %v525
    %v1879 = vunpack.c.h.b16 %v525
    %v1880 = vunpack.c.l.b16 %v526
    %v1881 = vunpack.c.h.b16 %v526
    %v1882 = vunpack.c.l.b16 %v527
    %v1883 = vunpack.c.h.b16 %v527
    %v1884 = vunpack.c.l.b16 %v528
    %v1885 = vunpack.c.h.b16 %v528
    %v1886 = vunpack.c.l.b16 %v529
    %v1887 = vunpack.c.h.b16 %v529
    %v1888 = vunpack.c.l.b16 %v530
    %v1889 = vunpack.c.h.b16 %v530
    %v1890 = vunpack.c.l.b16 %v531
    %v1891 = vunpack.c.h.b16 %v531
    %v1892 = vunpack.c.l.b16 %v532
    %v1893 = vunpack.c.h.b16 %v532
    %v1894 = vunpack.c.l.b16 %v533
    %v1895 = vunpack.c.h.b16 %v533
    %v1896 = vunpack.c.l.b16 %v534
    %v1897 = vunpack.c.h.b16 %v534
    %v1898 = vunpack.c.l.b16 %v535
    %v1899 = vunpack.c.h.b16 %v535
    %v1900 = vunpack.c.l.b16 %v536
    %v1901 = vunpack.c.h.b16 %v536
    %v1902 = vunpack.c.l.b16 %v537
    %v1903 = vunpack.c.h.b16 %v537
    %v1904 = vunpack.c.l.b16 %v538
    %v1905 = vunpack.c.h.b16 %v538
    %v1906 = vunpack.c.l.b16 %v539
    %v1907 = vunpack.c.h.b16 %v539
    %v1908 = vunpack.c.l.b16 %v540
    %v1909 = vunpack.c.h.b16 %v540
    %v1910 = vunpack.c.l.b16 %v541
    %v1911 = vunpack.c.h.b16 %v541
    %v1912 = vunpack.c.l.b16 %v542
    %v1913 = vunpack.c.h.b16 %v542
    %v1914 = vunpack.c.l.b16 %v543
    %v1915 = vunpack.c.h.b16 %v543
    %v1916 = vunpack.c.l.b16 %v544
    %v1917 = vunpack.c.h.b16 %v544
    %v1918 = vunpack.c.l.b16 %v545
    %v1919 = vunpack.c.h.b16 %v545
    %v1920 = vunpack.c.l.b16 %v546
    %v1921 = vunpack.c.h.b16 %v546
    %v1922 = vunpack.c.l.b16 %v547
    %v1923 = vunpack.c.h.b16 %v547
    %v1924 = vunpack.c.l.b16 %v548
    %v1925 = vunpack.c.h.b16 %v548
    %v1926 = vunpack.c.l.b16 %v549
    %v1927 = vunpack.c.h.b16 %v549
    %v1928 = vunpack.c.l.b16 %v550
    %v1929 = vunpack.c.h.b16 %v550
    %v1930 = vunpack.c.l.b16 %v551
    %v1931 = vunpack.c.h.b16 %v551
    %v1932 = vunpack.c.l.b16 %v552
    %v1933 = vunpack.c.h.b16 %v552
    %v1934 = vunpack.c.l.b16 %v553
    %v1935 = vunpack.c.h.b16 %v553
    %v1936 = vunpack.c.l.b16 %v554
    %v1937 = vunpack.c.h.b16 %v554
    %v1938 = vunpack.c.l.b16 %v555
    %v1939 = vunpack.c.h.b16 %v555
    %v1940 = vunpack.c.l.b16 %v556
    %v1941 = vunpack.c.h.b16 %v556
    %v1942 = vunpack.c.l.b16 %v557
    %v1943 = vunpack.c.h.b16 %v557
    %v1944 = vunpack.c.l.b16 %v558
    %v1945 = vunpack.c.h.b16 %v558
    %v1946 = vunpack.c.l.b16 %v559
    %v1947 = vunpack.c.h.b16 %v559
    %v1948 = vunpack.c.l.b16 %v560
    %v1949 = vunpack.c.h.b16 %v560
    %v1950 = vunpack.c.l.b16 %v561
    %v1951 = vunpack.c.h.b16 %v561
    %v1952 = vunpack.c.l.b16 %v562
    %v1953 = vunpack.c.h.b16 %v562
    %v1954 = vunpack.c.l.b16 %v563
    %v1955 = vunpack.c.h.b16 %v563
    %v1956 = vunpack.c.l.b16 %v564
    %v1957 = vunpack.c.h.b16 %v564
    %v1958 = vunpack.c.l.b16 %v565
    %v1959 = vunpack.c.h.b16 %v565
    %v1960 = vunpack.c.l.b16 %v566
    %v1961 = vunpack.c.h.b16 %v566
    %v1962 = vunpack.c.l.b16 %v567
    %v1963 = vunpack.c.h.b16 %v567
    %v1964 = vunpack.c.l.b16 %v568
    %v1965 = vunpack.c.h.b16 %v568
    %v1966 = vunpack.c.l.b16 %v569
    %v1967 = vunpack.c.h.b16 %v569
    %v1968 = vpack.c.b16 %v1080, %v1072
    %v1969 = vpack.c.b16 %v1081, %v1073
    %v1970 = vpack.c.b16 %v1082, %v1074
    %v1971 = vpack.c.b16 %v1083, %v1075
    %v1972 = vpack.c.b16 %v1084, %v1076
    %v1973 = vpack.c.b16 %v1085, %v1077
    %v1974 = vpack.c.b16 %v1086, %v1078
    %v1975 = vpack.c.b16 %v1087, %v1079
    %v1976 = vpack.c.b16 %v1096, %v1088
    %v1977 = vpack.c.b16 %v1097, %v1089
    %v1978 = vpack.c.b16 %v1098, %v1090
    %v1979 = vpack.c.b16 %v1099, %v1091
    %v1980 = vpack.c.b16 %v1100, %v1092
    %v1981 = vpack.c.b16 %v1101, %v1093
    %v1982 = vpack.c.b16 %v1102, %v1094
    %v1983 = vpack.c.b16 %v1103, %v1095
    %v1984 = vpack.c.b16 %v1112, %v1104
    %v1985 = vpack.c.b16 %v1113, %v1105
    %v1986 = vpack.c.b16 %v1114, %v1106
    %v1987 = vpack.c.b16 %v1115, %v1107
    %v1988 = vpack.c.b16 %v1116, %v1108
    %v1989 = vpack.c.b16 %v1117, %v1109
    %v1990 = vpack.c.b16 %v1118, %v1110
    %v1991 = vpack.c.b16 %v1119, %v1111
    %v1992 = vpack.c.b16 %v1128, %v1120
    %v1993 = vpack.c.b16 %v1129, %v1121
    %v1994 = vpack.c.b16 %v1130, %v1122
    %v1995 = vpack.c.b16 %v1131, %v1123
    %v1996 = vpack.c.b16 %v1132, %v1124
    %v1997 = vpack.c.b16 %v1133, %v1125
    %v1998 = vpack.c.b16 %v1134, %v1126
    %v1999 = vpack.c.b16 %v1135, %v1127
    %v2000 = vpack.c.b16 %v1144, %v1136
    %v2001 = vpack.c.b16 %v1145, %v1137
    %v2002 = vpack.c.b16 %v1146, %v1138
    %v2003 = vpack.c.b16 %v1147, %v1139
    %v2004 = vpack.c.b16 %v1148, %v1140
    %v2005 = vpack.c.b16 %v1149, %v1141
    %v2006 = vpack.c.b16 %v1150, %v1142
    %v2007 = vpack.c.b16 %v1151, %v1143
    %v2008 = vpack.c.b16 %v1160, %v1152
    %v2009 = vpack.c.b16 %v1161, %v1153
    %v2010 = vpack.c.b16 %v1162, %v1154
    %v2011 = vpack.c.b16 %v1163, %v1155
    %v2012 = vpack.c.b16 %v1164, %v1156
    %v2013 = vpack.c.b16 %v1165, %v1157
    %v2014 = vpack.c.b16 %v1166, %v1158
    %v2015 = vpack.c.b16 %v1167, %v1159
    %v2016 = vpack.c.b16 %v1176, %v1168
    %v2017 = vpack.c.b16 %v1177, %v1169
    %v2018 = vpack.c.b16 %v1178, %v1170
    %v2019 = vpack.c.b16 %v1179, %v1171
    %v2020 = vpack.c.b16 %v1180, %v1172
    %v2021 = vpack.c.b16 %v1181, %v1173
    %v2022 = vpack.c.b16 %v1182, %v1174
    %v2023 = vpack.c.b16 %v1183, %v1175
    %v2024 = vpack.c.b16 %v1192, %v1184
    %v2025 = vpack.c.b16 %v1193, %v1185
    %v2026 = vpack.c.b16 %v1194, %v1186
    %v2027 = vpack.c.b16 %v1195, %v1187
    %v2028 = vpack.c.b16 %v1196, %v1188
    %v2029 = vpack.c.b16 %v1197, %v1189
    %v2030 = vpack.c.b16 %v1198, %v1190
    %v2031 = vpack.c.b16 %v1199, %v1191
    %v2032 = vpack.c.b16 %v1208, %v1200
    %v2033 = vpack.c.b16 %v1209, %v1201
    %v2034 = vpack.c.b16 %v1210, %v1202
    %v2035 = vpack.c.b16 %v1211, %v1203
    %v2036 = vpack.c.b16 %v1212, %v1204
    %v2037 = vpack.c.b16 %v1213, %v1205
    %v2038 = vpack.c.b16 %v1214, %v1206
    %v2039 = vpack.c.b16 %v1215, %v1207
    %v2040 = vpack.c.b16 %v1224, %v1216
    %v2041 = vpack.c.b16 %v1225, %v1217
    %v2042 = vpack.c.b16 %v1226, %v1218
    %v2043 = vpack.c.b16 %v1227, %v1219
    %v2044 = vpack.c.b16 %v1228, %v1220
    %v2045 = vpack.c.b16 %v1229, %v1221
    %v2046 = vpack.c.b16 %v1230, %v1222
    %v2047 = vpack.c.b16 %v1231, %v1223
    %v2048 = vpack.c.b16 %v1240, %v1232
    %v2049 = vpack.c.b16 %v1241, %v1233
    %v2050 = vpack.c.b16 %v1242, %v1234
    %v2051 = vpack.c.b16 %v1243, %v1235
    %v2052 = vpack.c.b16 %v1244, %v1236
    %v2053 = vpack.c.b16 %v1245, %v1237
    %v2054 = vpack.c.b16 %v1246, %v1238
    %v2055 = vpack.c.b16 %v1247, %v1239
    %v2056 = vpack.c.b16 %v1256, %v1248
    %v2057 = vpack.c.b16 %v1257, %v1249
    %v2058 = vpack.c.b16 %v1258, %v1250
    %v2059 = vpack.c.b16 %v1259, %v1251
    %v2060 = vpack.c.b16 %v1260, %v1252
    %v2061 = vpack.c.b16 %v1261, %v1253
    %v2062 = vpack.c.b16 %v1262, %v1254
    %v2063 = vpack.c.b16 %v1263, %v1255
    %v2064 = vpack.c.b16 %v1272, %v1264
    %v2065 = vpack.c.b16 %v1273, %v1265
    %v2066 = vpack.c.b16 %v1274, %v1266
    %v2067 = vpack.c.b16 %v1275, %v1267
    %v2068 = vpack.c.b16 %v1276, %v1268
    %v2069 = vpack.c.b16 %v1277, %v1269
    %v2070 = vpack.c.b16 %v1278, %v1270
    %v2071 = vpack.c.b16 %v1279, %v1271
    %v2072 = vpack.c.b16 %v1288, %v1280
    %v2073 = vpack.c.b16 %v1289, %v1281
    %v2074 = vpack.c.b16 %v1290, %v1282
    %v2075 = vpack.c.b16 %v1291, %v1283
    %v2076 = vpack.c.b16 %v1292, %v1284
    %v2077 = vpack.c.b16 %v1293, %v1285
    %v2078 = vpack.c.b16 %v1294, %v1286
    %v2079 = vpack.c.b16 %v1295, %v1287
    %v2080 = vpack.c.b16 %v1304, %v1296
    %v2081 = vpack.c.b16 %v1305, %v1297
    %v2082 = vpack.c.b16 %v1306, %v1298
    %v2083 = vpack.c.b16 %v1307, %v1299
    %v2084 = vpack.c.b16 %v1308, %v1300
    %v2085 = vpack.c.b16 %v1309, %v1301
    %v2086 = vpack.c.b16 %v1310, %v1302
    %v2087 = vpack.c.b16 %v1311, %v1303
    %v2088 = vpack.c.b16 %v1320, %v1312
    %v2089 = vpack.c.b16 %v1321, %v1313
    %v2090 = vpack.c.b16 %v1322, %v1314
    %v2091 = vpack.c.b16 %v1323, %v1315
    %v2092 = vpack.c.b16 %v1324, %v1316
    %v2093 = vpack.c.b16 %v1325, %v1317
    %v2094 = vpack.c.b16 %v1326, %v1318
    %v2095 = vpack.c.b16 %v1327, %v1319
    %v2096 = vpack.c.b16 %v1336, %v1328
    %v2097 = vpack.c.b16 %v1337, %v1329
    %v2098 = vpack.c.b16 %v1338, %v1330
    %v2099 = vpack.c.b16 %v1339, %v1331
    %v2100 = vpack.c.b16 %v1340, %v1332
    %v2101 = vpack.c.b16 %v1341, %v1333
    %v2102 = vpack.c.b16 %v1342, %v1334
    %v2103 = vpack.c.b16 %v1343, %v1335
    %v2104 = vpack.c.b16 %v1352, %v1344
    %v2105 = vpack.c.b16 %v1353, %v1345
    %v2106 = vpack.c.b16 %v1354, %v1346
    %v2107 = vpack.c.b16 %v1355, %v1347
    %v2108 = vpack.c.b16 %v1356, %v1348
    %v2109 = vpack.c.b16 %v1357, %v1349
    %v2110 = vpack.c.b16 %v1358, %v1350
    %v2111 = vpack.c.b16 %v1359, %v1351
    %v2112 = vpack.c.b16 %v1368, %v1360
    %v2113 = vpack.c.b16 %v1369, %v1361
    %v2114 = vpack.c.b16 %v1370, %v1362
    %v2115 = vpack.c.b16 %v1371, %v1363
    %v2116 = vpack.c.b16 %v1372, %v1364
    %v2117 = vpack.c.b16 %v1373, %v1365
    %v2118 = vpack.c.b16 %v1374, %v1366
    %v2119 = vpack.c.b16 %v1375, %v1367
    %v2120 = vpack.c.b16 %v1384, %v1376
    %v2121 = vpack.c.b16 %v1385, %v1377
    %v2122 = vpack.c.b16 %v1386, %v1378
    %v2123 = vpack.c.b16 %v1387, %v1379
    %v2124 = vpack.c.b16 %v1388, %v1380
    %v2125 = vpack.c.b16 %v1389, %v1381
    %v2126 = vpack.c.b16 %v1390, %v1382
    %v2127 = vpack.c.b16 %v1391, %v1383
    %v2128 = vpack.c.b16 %v1400, %v1392
    %v2129 = vpack.c.b16 %v1401, %v1393
    %v2130 = vpack.c.b16 %v1402, %v1394
    %v2131 = vpack.c.b16 %v1403, %v1395
    %v2132 = vpack.c.b16 %v1404, %v1396
    %v2133 = vpack.c.b16 %v1405, %v1397
    %v2134 = vpack.c.b16 %v1406, %v1398
    %v2135 = vpack.c.b16 %v1407, %v1399
    %v2136 = vpack.c.b16 %v1416, %v1408
    %v2137 = vpack.c.b16 %v1417, %v1409
    %v2138 = vpack.c.b16 %v1418, %v1410
    %v2139 = vpack.c.b16 %v1419, %v1411
    %v2140 = vpack.c.b16 %v1420, %v1412
    %v2141 = vpack.c.b16 %v1421, %v1413
    %v2142 = vpack.c.b16 %v1422, %v1414
    %v2143 = vpack.c.b16 %v1423, %v1415
    %v2144 = vpack.c.b16 %v1432, %v1424
    %v2145 = vpack.c.b16 %v1433, %v1425
    %v2146 = vpack.c.b16 %v1434, %v1426
    %v2147 = vpack.c.b16 %v1435, %v1427
    %v2148 = vpack.c.b16 %v1436, %v1428
    %v2149 = vpack.c.b16 %v1437, %v1429
    %v2150 = vpack.c.b16 %v1438, %v1430
    %v2151 = vpack.c.b16 %v1439, %v1431
    %v2152 = vpack.c.b16 %v1448, %v1440
    %v2153 = vpack.c.b16 %v1449, %v1441
    %v2154 = vpack.c.b16 %v1450, %v1442
    %v2155 = vpack.c.b16 %v1451, %v1443
    %v2156 = vpack.c.b16 %v1452, %v1444
    %v2157 = vpack.c.b16 %v1453, %v1445
    %v2158 = vpack.c.b16 %v1454, %v1446
    %v2159 = vpack.c.b16 %v1455, %v1447
    %v2160 = vpack.c.b16 %v1464, %v1456
    %v2161 = vpack.c.b16 %v1465, %v1457
    %v2162 = vpack.c.b16 %v1466, %v1458
    %v2163 = vpack.c.b16 %v1467, %v1459
    %v2164 = vpack.c.b16 %v1468, %v1460
    %v2165 = vpack.c.b16 %v1469, %v1461
    %v2166 = vpack.c.b16 %v1470, %v1462
    %v2167 = vpack.c.b16 %v1471, %v1463
    %v2168 = vpack.c.b16 %v1480, %v1472
    %v2169 = vpack.c.b16 %v1481, %v1473
    %v2170 = vpack.c.b16 %v1482, %v1474
    %v2171 = vpack.c.b16 %v1483, %v1475
    %v2172 = vpack.c.b16 %v1484, %v1476
    %v2173 = vpack.c.b16 %v1485, %v1477
    %v2174 = vpack.c.b16 %v1486, %v1478
    %v2175 = vpack.c.b16 %v1487, %v1479
    %v2176 = vpack.c.b16 %v1496, %v1488
    %v2177 = vpack.c.b16 %v1497, %v1489
    %v2178 = vpack.c.b16 %v1498, %v1490
    %v2179 = vpack.c.b16 %v1499, %v1491
    %v2180 = vpack.c.b16 %v1500, %v1492
    %v2181 = vpack.c.b16 %v1501, %v1493
    %v2182 = vpack.c.b16 %v1502, %v1494
    %v2183 = vpack.c.b16 %v1503, %v1495
    %v2184 = vpack.c.b16 %v1512, %v1504
    %v2185 = vpack.c.b16 %v1513, %v1505
    %v2186 = vpack.c.b16 %v1514, %v1506
    %v2187 = vpack.c.b16 %v1515, %v1507
    %v2188 = vpack.c.b16 %v1516, %v1508
    %v2189 = vpack.c.b16 %v1517, %v1509
    %v2190 = vpack.c.b16 %v1518, %v1510
    %v2191 = vpack.c.b16 %v1519, %v1511
    %v2192 = vpack.c.b16 %v1528, %v1520
    %v2193 = vpack.c.b16 %v1529, %v1521
    %v2194 = vpack.c.b16 %v1530, %v1522
    %v2195 = vpack.c.b16 %v1531, %v1523
    %v2196 = vpack.c.b16 %v1532, %v1524
    %v2197 = vpack.c.b16 %v1533, %v1525
    %v2198 = vpack.c.b16 %v1534, %v1526
    %v2199 = vpack.c.b16 %v1535, %v1527
    %v2200 = vpack.c.b16 %v1544, %v1536
    %v2201 = vpack.c.b16 %v1545, %v1537
    %v2202 = vpack.c.b16 %v1546, %v1538
    %v2203 = vpack.c.b16 %v1547, %v1539
    %v2204 = vpack.c.b16 %v1548, %v1540
    %v2205 = vpack.c.b16 %v1549, %v1541
    %v2206 = vpack.c.b16 %v1550, %v1542
    %v2207 = vpack.c.b16 %v1551, %v1543
    %v2208 = vpack.c.b16 %v1560, %v1552
    %v2209 = vpack.c.b16 %v1561, %v1553
    %v2210 = vpack.c.b16 %v1562, %v1554
    %v2211 = vpack.c.b16 %v1563, %v1555
    %v2212 = vpack.c.b16 %v1564, %v1556
    %v2213 = vpack.c.b16 %v1565, %v1557
    %v2214 = vpack.c.b16 %v1566, %v1558
    %v2215 = vpack.c.b16 %v1567, %v1559
    %v2216 = vpack.c.b16 %v1576, %v1568
    %v2217 = vpack.c.b16 %v1577, %v1569
    %v2218 = vpack.c.b16 %v1578, %v1570
    %v2219 = vpack.c.b16 %v1579, %v1571
    %v2220 = vpack.c.b16 %v1580, %v1572
    %v2221 = vpack.c.b16 %v1581, %v1573
    %v2222 = vpack.c.b16 %v1582, %v1574
    %v2223 = vpack.c.b16 %v1583, %v1575
    %v2224 = vpack.c.b16 %v1592, %v1584
    %v2225 = vpack.c.b16 %v1593, %v1585
    %v2226 = vpack.c.b16 %v1594, %v1586
    %v2227 = vpack.c.b16 %v1595, %v1587
    %v2228 = vpack.c.b16 %v1596, %v1588
    %v2229 = vpack.c.b16 %v1597, %v1589
    %v2230 = vpack.c.b16 %v1598, %v1590
    %v2231 = vpack.c.b16 %v1599, %v1591
    %v2232 = vpack.c.b16 %v1608, %v1600
    %v2233 = vpack.c.b16 %v1609, %v1601
    %v2234 = vpack.c.b16 %v1610, %v1602
    %v2235 = vpack.c.b16 %v1611, %v1603
    %v2236 = vpack.c.b16 %v1612, %v1604
    %v2237 = vpack.c.b16 %v1613, %v1605
    %v2238 = vpack.c.b16 %v1614, %v1606
    %v2239 = vpack.c.b16 %v1615, %v1607
    %v2240 = vpack.c.b16 %v1624, %v1616
    %v2241 = vpack.c.b16 %v1625, %v1617
    %v2242 = vpack.c.b16 %v1626, %v1618
    %v2243 = vpack.c.b16 %v1627, %v1619
    %v2244 = vpack.c.b16 %v1628, %v1620
    %v2245 = vpack.c.b16 %v1629, %v1621
    %v2246 = vpack.c.b16 %v1630, %v1622
    %v2247 = vpack.c.b16 %v1631, %v1623
    %v2248 = vpack.c.b16 %v1640, %v1632
    %v2249 = vpack.c.b16 %v1641, %v1633
    %v2250 = vpack.c.b16 %v1642, %v1634
    %v2251 = vpack.c.b16 %v1643, %v1635
    %v2252 = vpack.c.b16 %v1644, %v1636
    %v2253 = vpack.c.b16 %v1645, %v1637
    %v2254 = vpack.c.b16 %v1646, %v1638
    %v2255 = vpack.c.b16 %v1647, %v1639
    %v2256 = vpack.c.b16 %v1656, %v1648
    %v2257 = vpack.c.b16 %v1657, %v1649
    %v2258 = vpack.c.b16 %v1658, %v1650
    %v2259 = vpack.c.b16 %v1659, %v1651
    %v2260 = vpack.c.b16 %v1660, %v1652
    %v2261 = vpack.c.b16 %v1661, %v1653
    %v2262 = vpack.c.b16 %v1662, %v1654
    %v2263 = vpack.c.b16 %v1663, %v1655
    %v2264 = vpack.c.b16 %v1672, %v1664
    %v2265 = vpack.c.b16 %v1673, %v1665
    %v2266 = vpack.c.b16 %v1674, %v1666
    %v2267 = vpack.c.b16 %v1675, %v1667
    %v2268 = vpack.c.b16 %v1676, %v1668
    %v2269 = vpack.c.b16 %v1677, %v1669
    %v2270 = vpack.c.b16 %v1678, %v1670
    %v2271 = vpack.c.b16 %v1679, %v1671
    %v2272 = vpack.c.b16 %v1688, %v1680
    %v2273 = vpack.c.b16 %v1689, %v1681
    %v2274 = vpack.c.b16 %v1690, %v1682
    %v2275 = vpack.c.b16 %v1691, %v1683
    %v2276 = vpack.c.b16 %v1692, %v1684
    %v2277 = vpack.c.b16 %v1693, %v1685
    %v2278 = vpack.c.b16 %v1694, %v1686
    %v2279 = vpack.c.b16 %v1695, %v1687
    %v2280 = vpack.c.b16 %v1704, %v1696
    %v2281 = vpack.c.b16 %v1705, %v1697
    %v2282 = vpack.c.b16 %v1706, %v1698
    %v2283 = vpack.c.b16 %v1707, %v1699
    %v2284 = vpack.c.b16 %v1708, %v1700
    %v2285 = vpack.c.b16 %v1709, %v1701
    %v2286 = vpack.c.b16 %v1710, %v1702
    %v2287 = vpack.c.b16 %v1711, %v1703
    %v2288 = vpack.c.b16 %v1720, %v1712
    %v2289 = vpack.c.b16 %v1721, %v1713
    %v2290 = vpack.c.b16 %v1722, %v1714
    %v2291 = vpack.c.b16 %v1723, %v1715
    %v2292 = vpack.c.b16 %v1724, %v1716
    %v2293 = vpack.c.b16 %v1725, %v1717
    %v2294 = vpack.c.b16 %v1726, %v1718
    %v2295 = vpack.c.b16 %v1727, %v1719
    %v2296 = vpack.c.b16 %v1736, %v1728
    %v2297 = vpack.c.b16 %v1737, %v1729
    %v2298 = vpack.c.b16 %v1738, %v1730
    %v2299 = vpack.c.b16 %v1739, %v1731
    %v2300 = vpack.c.b16 %v1740, %v1732
    %v2301 = vpack.c.b16 %v1741, %v1733
    %v2302 = vpack.c.b16 %v1742, %v1734
    %v2303 = vpack.c.b16 %v1743, %v1735
    %v2304 = vpack.c.b16 %v1752, %v1744
    %v2305 = vpack.c.b16 %v1753, %v1745
    %v2306 = vpack.c.b16 %v1754, %v1746
    %v2307 = vpack.c.b16 %v1755, %v1747
    %v2308 = vpack.c.b16 %v1756, %v1748
    %v2309 = vpack.c.b16 %v1757, %v1749
    %v2310 = vpack.c.b16 %v1758, %v1750
    %v2311 = vpack.c.b16 %v1759, %v1751
    %v2312 = vpack.c.b16 %v1768, %v1760
    %v2313 = vpack.c.b16 %v1769, %v1761
    %v2314 = vpack.c.b16 %v1770, %v1762
    %v2315 = vpack.c.b16 %v1771, %v1763
    %v2316 = vpack.c.b16 %v1772, %v1764
    %v2317 = vpack.c.b16 %v1773, %v1765
    %v2318 = vpack.c.b16 %v1774, %v1766
    %v2319 = vpack.c.b16 %v1775, %v1767
    %v2320 = vpack.c.b16 %v1784, %v1776
    %v2321 = vpack.c.b16 %v1785, %v1777
    %v2322 = vpack.c.b16 %v1786, %v1778
    %v2323 = vpack.c.b16 %v1787, %v1779
    %v2324 = vpack.c.b16 %v1788, %v1780
    %v2325 = vpack.c.b16 %v1789, %v1781
    %v2326 = vpack.c.b16 %v1790, %v1782
    %v2327 = vpack.c.b16 %v1791, %v1783
    %v2328 = vpack.c.b16 %v1800, %v1792
    %v2329 = vpack.c.b16 %v1801, %v1793
    %v2330 = vpack.c.b16 %v1802, %v1794
    %v2331 = vpack.c.b16 %v1803, %v1795
    %v2332 = vpack.c.b16 %v1804, %v1796
    %v2333 = vpack.c.b16 %v1805, %v1797
    %v2334 = vpack.c.b16 %v1806, %v1798
    %v2335 = vpack.c.b16 %v1807, %v1799
    %v2336 = vpack.c.b16 %v1816, %v1808
    %v2337 = vpack.c.b16 %v1817, %v1809
    %v2338 = vpack.c.b16 %v1818, %v1810
    %v2339 = vpack.c.b16 %v1819, %v1811
    %v2340 = vpack.c.b16 %v1820, %v1812
    %v2341 = vpack.c.b16 %v1821, %v1813
    %v2342 = vpack.c.b16 %v1822, %v1814
    %v2343 = vpack.c.b16 %v1823, %v1815
    %v2344 = vpack.c.b16 %v1832, %v1824
    %v2345 = vpack.c.b16 %v1833, %v1825
    %v2346 = vpack.c.b16 %v1834, %v1826
    %v2347 = vpack.c.b16 %v1835, %v1827
    %v2348 = vpack.c.b16 %v1836, %v1828
    %v2349 = vpack.c.b16 %v1837, %v1829
    %v2350 = vpack.c.b16 %v1838, %v1830
    %v2351 = vpack.c.b16 %v1839, %v1831
    %v2352 = vpack.c.b16 %v1848, %v1840
    %v2353 = vpack.c.b16 %v1849, %v1841
    %v2354 = vpack.c.b16 %v1850, %v1842
    %v2355 = vpack.c.b16 %v1851, %v1843
    %v2356 = vpack.c.b16 %v1852, %v1844
    %v2357 = vpack.c.b16 %v1853, %v1845
    %v2358 = vpack.c.b16 %v1854, %v1846
    %v2359 = vpack.c.b16 %v1855, %v1847
    %v2360 = vpack.c.b16 %v1864, %v1856
    %v2361 = vpack.c.b16 %v1865, %v1857
    %v2362 = vpack.c.b16 %v1866, %v1858
    %v2363 = vpack.c.b16 %v1867, %v1859
    %v2364 = vpack.c.b16 %v1868, %v1860
    %v2365 = vpack.c.b16 %v1869, %v1861
    %v2366 = vpack.c.b16 %v1870, %v1862
    %v2367 = vpack.c.b16 %v1871, %v1863
    %v2368 = vpack.c.b16 %v1880, %v1872
    %v2369 = vpack.c.b16 %v1881, %v1873
    %v2370 = vpack.c.b16 %v1882, %v1874
    %v2371 = vpack.c.b16 %v1883, %v1875
    %v2372 = vpack.c.b16 %v1884, %v1876
    %v2373 = vpack.c.b16 %v1885, %v1877
    %v2374 = vpack.c.b16 %v1886, %v1878
    %v2375 = vpack.c.b16 %v1887, %v1879
    %v2376 = vpack.c.b16 %v1896, %v1888
    %v2377 = vpack.c.b16 %v1897, %v1889
    %v2378 = vpack.c.b16 %v1898, %v1890
    %v2379 = vpack.c.b16 %v1899, %v1891
    %v2380 = vpack.c.b16 %v1900, %v1892
    %v2381 = vpack.c.b16 %v1901, %v1893
    %v2382 = vpack.c.b16 %v1902, %v1894
    %v2383 = vpack.c.b16 %v1903, %v1895
    %v2384 = vpack.c.b16 %v1912, %v1904
    %v2385 = vpack.c.b16 %v1913, %v1905
    %v2386 = vpack.c.b16 %v1914, %v1906
    %v2387 = vpack.c.b16 %v1915, %v1907
    %v2388 = vpack.c.b16 %v1916, %v1908
    %v2389 = vpack.c.b16 %v1917, %v1909
    %v2390 = vpack.c.b16 %v1918, %v1910
    %v2391 = vpack.c.b16 %v1919, %v1911
    %v2392 = vpack.c.b16 %v1928, %v1920
    %v2393 = vpack.c.b16 %v1929, %v1921
    %v2394 = vpack.c.b16 %v1930, %v1922
    %v2395 = vpack.c.b16 %v1931, %v1923
    %v2396 = vpack.c.b16 %v1932, %v1924
    %v2397 = vpack.c.b16 %v1933, %v1925
    %v2398 = vpack.c.b16 %v1934, %v1926
    %v2399 = vpack.c.b16 %v1935, %v1927
    %v2400 = vpack.c.b16 %v1944, %v1936
    %v2401 = vpack.c.b16 %v1945, %v1937
    %v2402 = vpack.c.b16 %v1946, %v1938
    %v2403 = vpack.c.b16 %v1947, %v1939
    %v2404 = vpack.c.b16 %v1948, %v1940
    %v2405 = vpack.c.b16 %v1949, %v1941
    %v2406 = vpack.c.b16 %v1950, %v1942
    %v2407 = vpack.c.b16 %v1951, %v1943
    %v2408 = vpack.c.b16 %v1960, %v1952
    %v2409 = vpack.c.b16 %v1961, %v1953
    %v2410 = vpack.c.b16 %v1962, %v1954
    %v2411 = vpack.c.b16 %v1963, %v1955
    %v2412 = vpack.c.b16 %v1964, %v1956
    %v2413 = vpack.c.b16 %v1965, %v1957
    %v2414 = vpack.c.b16 %v1966, %v1958
    %v2415 = vpack.c.b16 %v1967, %v1959
    %2864 = vmatpush.bf16.msra.mxu0 %v2024
    %2865 = vmatpush.bf16.msra.mxu0 %v2016
    %2866 = vmatpush.bf16.msra.mxu0 %v2008
    %2867 = vmatpush.bf16.msra.mxu0 %v2000
    %2868 = vmatpush.bf16.msra.mxu0 %v1992
    %2869 = vmatpush.bf16.msra.mxu0 %v1984
    %2870 = vmatpush.bf16.msra.mxu0 %v1976
    %2871 = vmatpush.bf16.msra.mxu0 %v1968
    %2872 = vmatmul.bf16.gmra.mxu0 %v610
    %v2873 = vpop.f32.mrf.mxu0
    %v2874 = vadd.f32 %v572, %v2873
    %v2875 = vpop.f32.mrf.mxu0
    %v2876 = vadd.f32 %v572, %v2875
    %2877 = vdwg.mxu0
    %2878 = vmatpush.bf16.msra.mxu0 %v2088
    %2879 = vmatpush.bf16.msra.mxu0 %v2080
    %2880 = vmatpush.bf16.msra.mxu0 %v2072
    %2881 = vmatpush.bf16.msra.mxu0 %v2064
    %2882 = vmatpush.bf16.msra.mxu0 %v2056
    %2883 = vmatpush.bf16.msra.mxu0 %v2048
    %2884 = vmatpush.bf16.msra.mxu0 %v2040
    %2885 = vmatpush.bf16.msra.mxu0 %v2032
    %2886 = vmatmul.bf16.gmra.mxu0 %v611
    %v2887 = vpop.f32.mrf.mxu0
    %v2888 = vadd.f32 %v2874, %v2887
    %v2889 = vpop.f32.mrf.mxu0
    %v2890 = vadd.f32 %v2876, %v2889
    %2891 = vdwg.mxu0
    %2892 = vmatpush.bf16.msra.mxu0 %v2152
    %2893 = vmatpush.bf16.msra.mxu0 %v2144
    %2894 = vmatpush.bf16.msra.mxu0 %v2136
    %2895 = vmatpush.bf16.msra.mxu0 %v2128
    %2896 = vmatpush.bf16.msra.mxu0 %v2120
    %2897 = vmatpush.bf16.msra.mxu0 %v2112
    %2898 = vmatpush.bf16.msra.mxu0 %v2104
    %2899 = vmatpush.bf16.msra.mxu0 %v2096
    %2900 = vmatmul.bf16.gmra.mxu0 %v612
    %v2901 = vpop.f32.mrf.mxu0
    %v2902 = vadd.f32 %v2888, %v2901
    %v2903 = vpop.f32.mrf.mxu0
    %v2904 = vadd.f32 %v2890, %v2903
    %2905 = vdwg.mxu0
    %2906 = vmatpush.bf16.msra.mxu0 %v2216
    %2907 = vmatpush.bf16.msra.mxu0 %v2208
    %2908 = vmatpush.bf16.msra.mxu0 %v2200
    %2909 = vmatpush.bf16.msra.mxu0 %v2192
    %2910 = vmatpush.bf16.msra.mxu0 %v2184
    %2911 = vmatpush.bf16.msra.mxu0 %v2176
    %2912 = vmatpush.bf16.msra.mxu0 %v2168
    %2913 = vmatpush.bf16.msra.mxu0 %v2160
    %2914 = vmatmul.bf16.gmra.mxu0 %v613
    %v2915 = vpop.f32.mrf.mxu0
    %v2916 = vadd.f32 %v2902, %v2915
    %v2917 = vpop.f32.mrf.mxu0
    %v2918 = vadd.f32 %v2904, %v2917
    %2919 = vdwg.mxu0
    %2920 = vmatpush.bf16.msra.mxu0 %v2280
    %2921 = vmatpush.bf16.msra.mxu0 %v2272
    %2922 = vmatpush.bf16.msra.mxu0 %v2264
    %2923 = vmatpush.bf16.msra.mxu0 %v2256
    %2924 = vmatpush.bf16.msra.mxu0 %v2248
    %2925 = vmatpush.bf16.msra.mxu0 %v2240
    %2926 = vmatpush.bf16.msra.mxu0 %v2232
    %2927 = vmatpush.bf16.msra.mxu0 %v2224
    %2928 = vmatmul.bf16.gmra.mxu0 %v614
    %v2929 = vpop.f32.mrf.mxu0
    %v2930 = vadd.f32 %v2916, %v2929
    %v2931 = vpop.f32.mrf.mxu0
    %v2932 = vadd.f32 %v2918, %v2931
    %2933 = vdwg.mxu0
    %2934 = vmatpush.bf16.msra.mxu0 %v2344
    %2935 = vmatpush.bf16.msra.mxu0 %v2336
    %2936 = vmatpush.bf16.msra.mxu0 %v2328
    %2937 = vmatpush.bf16.msra.mxu0 %v2320
    %2938 = vmatpush.bf16.msra.mxu0 %v2312
    %2939 = vmatpush.bf16.msra.mxu0 %v2304
    %2940 = vmatpush.bf16.msra.mxu0 %v2296
    %2941 = vmatpush.bf16.msra.mxu0 %v2288
    %2942 = vmatmul.bf16.gmra.mxu0 %v615
    %v2943 = vpop.f32.mrf.mxu0
    %v2944 = vadd.f32 %v2930, %v2943
    %v2945 = vpop.f32.mrf.mxu0
    %v2946 = vadd.f32 %v2932, %v2945
    %2947 = vdwg.mxu0
    %2948 = vmatpush.bf16.msra.mxu0 %v2408
    %2949 = vmatpush.bf16.msra.mxu0 %v2400
    %2950 = vmatpush.bf16.msra.mxu0 %v2392
    %2951 = vmatpush.bf16.msra.mxu0 %v2384
    %2952 = vmatpush.bf16.msra.mxu0 %v2376
    %2953 = vmatpush.bf16.msra.mxu0 %v2368
    %2954 = vmatpush.bf16.msra.mxu0 %v2360
    %2955 = vmatpush.bf16.msra.mxu0 %v2352
    %2956 = vmatmul.bf16.gmra.mxu0 %v616
    %v2957 = vpop.f32.mrf.mxu0
    %v2958 = vadd.f32 %v2944, %v2957
    %v2959 = vpop.f32.mrf.mxu0
    %v2960 = vadd.f32 %v2946, %v2959
    %2961 = vdwg.mxu0
    %2962 = vmatpush.bf16.msra.mxu0 %v2025
    %2963 = vmatpush.bf16.msra.mxu0 %v2017
    %2964 = vmatpush.bf16.msra.mxu0 %v2009
    %2965 = vmatpush.bf16.msra.mxu0 %v2001
    %2966 = vmatpush.bf16.msra.mxu0 %v1993
    %2967 = vmatpush.bf16.msra.mxu0 %v1985
    %2968 = vmatpush.bf16.msra.mxu0 %v1977
    %2969 = vmatpush.bf16.msra.mxu0 %v1969
    %2970 = vmatmul.bf16.gmra.mxu0 %v610
    %v2971 = vpop.f32.mrf.mxu0
    %v2972 = vadd.f32 %v573, %v2971
    %v2973 = vpop.f32.mrf.mxu0
    %v2974 = vadd.f32 %v573, %v2973
    %2975 = vdwg.mxu0
    %2976 = vmatpush.bf16.msra.mxu0 %v2089
    %2977 = vmatpush.bf16.msra.mxu0 %v2081
    %2978 = vmatpush.bf16.msra.mxu0 %v2073
    %2979 = vmatpush.bf16.msra.mxu0 %v2065
    %2980 = vmatpush.bf16.msra.mxu0 %v2057
    %2981 = vmatpush.bf16.msra.mxu0 %v2049
    %2982 = vmatpush.bf16.msra.mxu0 %v2041
    %2983 = vmatpush.bf16.msra.mxu0 %v2033
    %2984 = vmatmul.bf16.gmra.mxu0 %v611
    %v2985 = vpop.f32.mrf.mxu0
    %v2986 = vadd.f32 %v2972, %v2985
    %v2987 = vpop.f32.mrf.mxu0
    %v2988 = vadd.f32 %v2974, %v2987
    %2989 = vdwg.mxu0
    %2990 = vmatpush.bf16.msra.mxu0 %v2153
    %2991 = vmatpush.bf16.msra.mxu0 %v2145
    %2992 = vmatpush.bf16.msra.mxu0 %v2137
    %2993 = vmatpush.bf16.msra.mxu0 %v2129
    %2994 = vmatpush.bf16.msra.mxu0 %v2121
    %2995 = vmatpush.bf16.msra.mxu0 %v2113
    %2996 = vmatpush.bf16.msra.mxu0 %v2105
    %2997 = vmatpush.bf16.msra.mxu0 %v2097
    %2998 = vmatmul.bf16.gmra.mxu0 %v612
    %v2999 = vpop.f32.mrf.mxu0
    %v3000 = vadd.f32 %v2986, %v2999
    %v3001 = vpop.f32.mrf.mxu0
    %v3002 = vadd.f32 %v2988, %v3001
    %3003 = vdwg.mxu0
    %3004 = vmatpush.bf16.msra.mxu0 %v2217
    %3005 = vmatpush.bf16.msra.mxu0 %v2209
    %3006 = vmatpush.bf16.msra.mxu0 %v2201
    %3007 = vmatpush.bf16.msra.mxu0 %v2193
    %3008 = vmatpush.bf16.msra.mxu0 %v2185
    %3009 = vmatpush.bf16.msra.mxu0 %v2177
    %3010 = vmatpush.bf16.msra.mxu0 %v2169
    %3011 = vmatpush.bf16.msra.mxu0 %v2161
    %3012 = vmatmul.bf16.gmra.mxu0 %v613
    %v3013 = vpop.f32.mrf.mxu0
    %v3014 = vadd.f32 %v3000, %v3013
    %v3015 = vpop.f32.mrf.mxu0
    %v3016 = vadd.f32 %v3002, %v3015
    %3017 = vdwg.mxu0
    %3018 = vmatpush.bf16.msra.mxu0 %v2281
    %3019 = vmatpush.bf16.msra.mxu0 %v2273
    %3020 = vmatpush.bf16.msra.mxu0 %v2265
    %3021 = vmatpush.bf16.msra.mxu0 %v2257
    %3022 = vmatpush.bf16.msra.mxu0 %v2249
    %3023 = vmatpush.bf16.msra.mxu0 %v2241
    %3024 = vmatpush.bf16.msra.mxu0 %v2233
    %3025 = vmatpush.bf16.msra.mxu0 %v2225
    %3026 = vmatmul.bf16.gmra.mxu0 %v614
    %v3027 = vpop.f32.mrf.mxu0
    %v3028 = vadd.f32 %v3014, %v3027
    %v3029 = vpop.f32.mrf.mxu0
    %v3030 = vadd.f32 %v3016, %v3029
    %3031 = vdwg.mxu0
    %3032 = vmatpush.bf16.msra.mxu0 %v2345
    %3033 = vmatpush.bf16.msra.mxu0 %v2337
    %3034 = vmatpush.bf16.msra.mxu0 %v2329
    %3035 = vmatpush.bf16.msra.mxu0 %v2321
    %3036 = vmatpush.bf16.msra.mxu0 %v2313
    %3037 = vmatpush.bf16.msra.mxu0 %v2305
    %3038 = vmatpush.bf16.msra.mxu0 %v2297
    %3039 = vmatpush.bf16.msra.mxu0 %v2289
    %3040 = vmatmul.bf16.gmra.mxu0 %v615
    %v3041 = vpop.f32.mrf.mxu0
    %v3042 = vadd.f32 %v3028, %v3041
    %v3043 = vpop.f32.mrf.mxu0
    %v3044 = vadd.f32 %v3030, %v3043
    %3045 = vdwg.mxu0
    %3046 = vmatpush.bf16.msra.mxu0 %v2409
    %3047 = vmatpush.bf16.msra.mxu0 %v2401
    %3048 = vmatpush.bf16.msra.mxu0 %v2393
    %3049 = vmatpush.bf16.msra.mxu0 %v2385
    %3050 = vmatpush.bf16.msra.mxu0 %v2377
    %3051 = vmatpush.bf16.msra.mxu0 %v2369
    %3052 = vmatpush.bf16.msra.mxu0 %v2361
    %3053 = vmatpush.bf16.msra.mxu0 %v2353
    %3054 = vmatmul.bf16.gmra.mxu0 %v616
    %v3055 = vpop.f32.mrf.mxu0
    %v3056 = vadd.f32 %v3042, %v3055
    %v3057 = vpop.f32.mrf.mxu0
    %v3058 = vadd.f32 %v3044, %v3057
    %3059 = vdwg.mxu0
    %3060 = vmatpush.bf16.msra.mxu0 %v2026
    %3061 = vmatpush.bf16.msra.mxu0 %v2018
    %3062 = vmatpush.bf16.msra.mxu0 %v2010
    %3063 = vmatpush.bf16.msra.mxu0 %v2002
    %3064 = vmatpush.bf16.msra.mxu0 %v1994
    %3065 = vmatpush.bf16.msra.mxu0 %v1986
    %3066 = vmatpush.bf16.msra.mxu0 %v1978
    %3067 = vmatpush.bf16.msra.mxu0 %v1970
    %3068 = vmatmul.bf16.gmra.mxu0 %v610
    %v3069 = vpop.f32.mrf.mxu0
    %v3070 = vadd.f32 %v574, %v3069
    %v3071 = vpop.f32.mrf.mxu0
    %v3072 = vadd.f32 %v574, %v3071
    %3073 = vdwg.mxu0
    %3074 = vmatpush.bf16.msra.mxu0 %v2090
    %3075 = vmatpush.bf16.msra.mxu0 %v2082
    %3076 = vmatpush.bf16.msra.mxu0 %v2074
    %3077 = vmatpush.bf16.msra.mxu0 %v2066
    %3078 = vmatpush.bf16.msra.mxu0 %v2058
    %3079 = vmatpush.bf16.msra.mxu0 %v2050
    %3080 = vmatpush.bf16.msra.mxu0 %v2042
    %3081 = vmatpush.bf16.msra.mxu0 %v2034
    %3082 = vmatmul.bf16.gmra.mxu0 %v611
    %v3083 = vpop.f32.mrf.mxu0
    %v3084 = vadd.f32 %v3070, %v3083
    %v3085 = vpop.f32.mrf.mxu0
    %v3086 = vadd.f32 %v3072, %v3085
    %3087 = vdwg.mxu0
    %3088 = vmatpush.bf16.msra.mxu0 %v2154
    %3089 = vmatpush.bf16.msra.mxu0 %v2146
    %3090 = vmatpush.bf16.msra.mxu0 %v2138
    %3091 = vmatpush.bf16.msra.mxu0 %v2130
    %3092 = vmatpush.bf16.msra.mxu0 %v2122
    %3093 = vmatpush.bf16.msra.mxu0 %v2114
    %3094 = vmatpush.bf16.msra.mxu0 %v2106
    %3095 = vmatpush.bf16.msra.mxu0 %v2098
    %3096 = vmatmul.bf16.gmra.mxu0 %v612
    %v3097 = vpop.f32.mrf.mxu0
    %v3098 = vadd.f32 %v3084, %v3097
    %v3099 = vpop.f32.mrf.mxu0
    %v3100 = vadd.f32 %v3086, %v3099
    %3101 = vdwg.mxu0
    %3102 = vmatpush.bf16.msra.mxu0 %v2218
    %3103 = vmatpush.bf16.msra.mxu0 %v2210
    %3104 = vmatpush.bf16.msra.mxu0 %v2202
    %3105 = vmatpush.bf16.msra.mxu0 %v2194
    %3106 = vmatpush.bf16.msra.mxu0 %v2186
    %3107 = vmatpush.bf16.msra.mxu0 %v2178
    %3108 = vmatpush.bf16.msra.mxu0 %v2170
    %3109 = vmatpush.bf16.msra.mxu0 %v2162
    %3110 = vmatmul.bf16.gmra.mxu0 %v613
    %v3111 = vpop.f32.mrf.mxu0
    %v3112 = vadd.f32 %v3098, %v3111
    %v3113 = vpop.f32.mrf.mxu0
    %v3114 = vadd.f32 %v3100, %v3113
    %3115 = vdwg.mxu0
    %3116 = vmatpush.bf16.msra.mxu0 %v2282
    %3117 = vmatpush.bf16.msra.mxu0 %v2274
    %3118 = vmatpush.bf16.msra.mxu0 %v2266
    %3119 = vmatpush.bf16.msra.mxu0 %v2258
    %3120 = vmatpush.bf16.msra.mxu0 %v2250
    %3121 = vmatpush.bf16.msra.mxu0 %v2242
    %3122 = vmatpush.bf16.msra.mxu0 %v2234
    %3123 = vmatpush.bf16.msra.mxu0 %v2226
    %3124 = vmatmul.bf16.gmra.mxu0 %v614
    %v3125 = vpop.f32.mrf.mxu0
    %v3126 = vadd.f32 %v3112, %v3125
    %v3127 = vpop.f32.mrf.mxu0
    %v3128 = vadd.f32 %v3114, %v3127
    %3129 = vdwg.mxu0
    %3130 = vmatpush.bf16.msra.mxu0 %v2346
    %3131 = vmatpush.bf16.msra.mxu0 %v2338
    %3132 = vmatpush.bf16.msra.mxu0 %v2330
    %3133 = vmatpush.bf16.msra.mxu0 %v2322
    %3134 = vmatpush.bf16.msra.mxu0 %v2314
    %3135 = vmatpush.bf16.msra.mxu0 %v2306
    %3136 = vmatpush.bf16.msra.mxu0 %v2298
    %3137 = vmatpush.bf16.msra.mxu0 %v2290
    %3138 = vmatmul.bf16.gmra.mxu0 %v615
    %v3139 = vpop.f32.mrf.mxu0
    %v3140 = vadd.f32 %v3126, %v3139
    %v3141 = vpop.f32.mrf.mxu0
    %v3142 = vadd.f32 %v3128, %v3141
    %3143 = vdwg.mxu0
    %3144 = vmatpush.bf16.msra.mxu0 %v2410
    %3145 = vmatpush.bf16.msra.mxu0 %v2402
    %3146 = vmatpush.bf16.msra.mxu0 %v2394
    %3147 = vmatpush.bf16.msra.mxu0 %v2386
    %3148 = vmatpush.bf16.msra.mxu0 %v2378
    %3149 = vmatpush.bf16.msra.mxu0 %v2370
    %3150 = vmatpush.bf16.msra.mxu0 %v2362
    %3151 = vmatpush.bf16.msra.mxu0 %v2354
    %3152 = vmatmul.bf16.gmra.mxu0 %v616
    %v3153 = vpop.f32.mrf.mxu0
    %v3154 = vadd.f32 %v3140, %v3153
    %v3155 = vpop.f32.mrf.mxu0
    %v3156 = vadd.f32 %v3142, %v3155
    %3157 = vdwg.mxu0
    %3158 = vmatpush.bf16.msra.mxu0 %v2027
    %3159 = vmatpush.bf16.msra.mxu0 %v2019
    %3160 = vmatpush.bf16.msra.mxu0 %v2011
    %3161 = vmatpush.bf16.msra.mxu0 %v2003
    %3162 = vmatpush.bf16.msra.mxu0 %v1995
    %3163 = vmatpush.bf16.msra.mxu0 %v1987
    %3164 = vmatpush.bf16.msra.mxu0 %v1979
    %3165 = vmatpush.bf16.msra.mxu0 %v1971
    %3166 = vmatmul.bf16.gmra.mxu0 %v610
    %v3167 = vpop.f32.mrf.mxu0
    %v3168 = vadd.f32 %v575, %v3167
    %v3169 = vpop.f32.mrf.mxu0
    %v3170 = vadd.f32 %v575, %v3169
    %3171 = vdwg.mxu0
    %3172 = vmatpush.bf16.msra.mxu0 %v2091
    %3173 = vmatpush.bf16.msra.mxu0 %v2083
    %3174 = vmatpush.bf16.msra.mxu0 %v2075
    %3175 = vmatpush.bf16.msra.mxu0 %v2067
    %3176 = vmatpush.bf16.msra.mxu0 %v2059
    %3177 = vmatpush.bf16.msra.mxu0 %v2051
    %3178 = vmatpush.bf16.msra.mxu0 %v2043
    %3179 = vmatpush.bf16.msra.mxu0 %v2035
    %3180 = vmatmul.bf16.gmra.mxu0 %v611
    %v3181 = vpop.f32.mrf.mxu0
    %v3182 = vadd.f32 %v3168, %v3181
    %v3183 = vpop.f32.mrf.mxu0
    %v3184 = vadd.f32 %v3170, %v3183
    %3185 = vdwg.mxu0
    %3186 = vmatpush.bf16.msra.mxu0 %v2155
    %3187 = vmatpush.bf16.msra.mxu0 %v2147
    %3188 = vmatpush.bf16.msra.mxu0 %v2139
    %3189 = vmatpush.bf16.msra.mxu0 %v2131
    %3190 = vmatpush.bf16.msra.mxu0 %v2123
    %3191 = vmatpush.bf16.msra.mxu0 %v2115
    %3192 = vmatpush.bf16.msra.mxu0 %v2107
    %3193 = vmatpush.bf16.msra.mxu0 %v2099
    %3194 = vmatmul.bf16.gmra.mxu0 %v612
    %v3195 = vpop.f32.mrf.mxu0
    %v3196 = vadd.f32 %v3182, %v3195
    %v3197 = vpop.f32.mrf.mxu0
    %v3198 = vadd.f32 %v3184, %v3197
    %3199 = vdwg.mxu0
    %3200 = vmatpush.bf16.msra.mxu0 %v2219
    %3201 = vmatpush.bf16.msra.mxu0 %v2211
    %3202 = vmatpush.bf16.msra.mxu0 %v2203
    %3203 = vmatpush.bf16.msra.mxu0 %v2195
    %3204 = vmatpush.bf16.msra.mxu0 %v2187
    %3205 = vmatpush.bf16.msra.mxu0 %v2179
    %3206 = vmatpush.bf16.msra.mxu0 %v2171
    %3207 = vmatpush.bf16.msra.mxu0 %v2163
    %3208 = vmatmul.bf16.gmra.mxu0 %v613
    %v3209 = vpop.f32.mrf.mxu0
    %v3210 = vadd.f32 %v3196, %v3209
    %v3211 = vpop.f32.mrf.mxu0
    %v3212 = vadd.f32 %v3198, %v3211
    %3213 = vdwg.mxu0
    %3214 = vmatpush.bf16.msra.mxu0 %v2283
    %3215 = vmatpush.bf16.msra.mxu0 %v2275
    %3216 = vmatpush.bf16.msra.mxu0 %v2267
    %3217 = vmatpush.bf16.msra.mxu0 %v2259
    %3218 = vmatpush.bf16.msra.mxu0 %v2251
    %3219 = vmatpush.bf16.msra.mxu0 %v2243
    %3220 = vmatpush.bf16.msra.mxu0 %v2235
    %3221 = vmatpush.bf16.msra.mxu0 %v2227
    %3222 = vmatmul.bf16.gmra.mxu0 %v614
    %v3223 = vpop.f32.mrf.mxu0
    %v3224 = vadd.f32 %v3210, %v3223
    %v3225 = vpop.f32.mrf.mxu0
    %v3226 = vadd.f32 %v3212, %v3225
    %3227 = vdwg.mxu0
    %3228 = vmatpush.bf16.msra.mxu0 %v2347
    %3229 = vmatpush.bf16.msra.mxu0 %v2339
    %3230 = vmatpush.bf16.msra.mxu0 %v2331
    %3231 = vmatpush.bf16.msra.mxu0 %v2323
    %3232 = vmatpush.bf16.msra.mxu0 %v2315
    %3233 = vmatpush.bf16.msra.mxu0 %v2307
    %3234 = vmatpush.bf16.msra.mxu0 %v2299
    %3235 = vmatpush.bf16.msra.mxu0 %v2291
    %3236 = vmatmul.bf16.gmra.mxu0 %v615
    %v3237 = vpop.f32.mrf.mxu0
    %v3238 = vadd.f32 %v3224, %v3237
    %v3239 = vpop.f32.mrf.mxu0
    %v3240 = vadd.f32 %v3226, %v3239
    %3241 = vdwg.mxu0
    %3242 = vmatpush.bf16.msra.mxu0 %v2411
    %3243 = vmatpush.bf16.msra.mxu0 %v2403
    %3244 = vmatpush.bf16.msra.mxu0 %v2395
    %3245 = vmatpush.bf16.msra.mxu0 %v2387
    %3246 = vmatpush.bf16.msra.mxu0 %v2379
    %3247 = vmatpush.bf16.msra.mxu0 %v2371
    %3248 = vmatpush.bf16.msra.mxu0 %v2363
    %3249 = vmatpush.bf16.msra.mxu0 %v2355
    %3250 = vmatmul.bf16.gmra.mxu0 %v616
    %v3251 = vpop.f32.mrf.mxu0
    %v3252 = vadd.f32 %v3238, %v3251
    %v3253 = vpop.f32.mrf.mxu0
    %v3254 = vadd.f32 %v3240, %v3253
    %3255 = vdwg.mxu0
    %3256 = vmatpush.bf16.msra.mxu0 %v2028
    %3257 = vmatpush.bf16.msra.mxu0 %v2020
    %3258 = vmatpush.bf16.msra.mxu0 %v2012
    %3259 = vmatpush.bf16.msra.mxu0 %v2004
    %3260 = vmatpush.bf16.msra.mxu0 %v1996
    %3261 = vmatpush.bf16.msra.mxu0 %v1988
    %3262 = vmatpush.bf16.msra.mxu0 %v1980
    %3263 = vmatpush.bf16.msra.mxu0 %v1972
    %3264 = vmatmul.bf16.gmra.mxu0 %v610
    %v3265 = vpop.f32.mrf.mxu0
    %v3266 = vadd.f32 %v576, %v3265
    %v3267 = vpop.f32.mrf.mxu0
    %v3268 = vadd.f32 %v576, %v3267
    %3269 = vdwg.mxu0
    %3270 = vmatpush.bf16.msra.mxu0 %v2092
    %3271 = vmatpush.bf16.msra.mxu0 %v2084
    %3272 = vmatpush.bf16.msra.mxu0 %v2076
    %3273 = vmatpush.bf16.msra.mxu0 %v2068
    %3274 = vmatpush.bf16.msra.mxu0 %v2060
    %3275 = vmatpush.bf16.msra.mxu0 %v2052
    %3276 = vmatpush.bf16.msra.mxu0 %v2044
    %3277 = vmatpush.bf16.msra.mxu0 %v2036
    %3278 = vmatmul.bf16.gmra.mxu0 %v611
    %v3279 = vpop.f32.mrf.mxu0
    %v3280 = vadd.f32 %v3266, %v3279
    %v3281 = vpop.f32.mrf.mxu0
    %v3282 = vadd.f32 %v3268, %v3281
    %3283 = vdwg.mxu0
    %3284 = vmatpush.bf16.msra.mxu0 %v2156
    %3285 = vmatpush.bf16.msra.mxu0 %v2148
    %3286 = vmatpush.bf16.msra.mxu0 %v2140
    %3287 = vmatpush.bf16.msra.mxu0 %v2132
    %3288 = vmatpush.bf16.msra.mxu0 %v2124
    %3289 = vmatpush.bf16.msra.mxu0 %v2116
    %3290 = vmatpush.bf16.msra.mxu0 %v2108
    %3291 = vmatpush.bf16.msra.mxu0 %v2100
    %3292 = vmatmul.bf16.gmra.mxu0 %v612
    %v3293 = vpop.f32.mrf.mxu0
    %v3294 = vadd.f32 %v3280, %v3293
    %v3295 = vpop.f32.mrf.mxu0
    %v3296 = vadd.f32 %v3282, %v3295
    %3297 = vdwg.mxu0
    %3298 = vmatpush.bf16.msra.mxu0 %v2220
    %3299 = vmatpush.bf16.msra.mxu0 %v2212
    %3300 = vmatpush.bf16.msra.mxu0 %v2204
    %3301 = vmatpush.bf16.msra.mxu0 %v2196
    %3302 = vmatpush.bf16.msra.mxu0 %v2188
    %3303 = vmatpush.bf16.msra.mxu0 %v2180
    %3304 = vmatpush.bf16.msra.mxu0 %v2172
    %3305 = vmatpush.bf16.msra.mxu0 %v2164
    %3306 = vmatmul.bf16.gmra.mxu0 %v613
    %v3307 = vpop.f32.mrf.mxu0
    %v3308 = vadd.f32 %v3294, %v3307
    %v3309 = vpop.f32.mrf.mxu0
    %v3310 = vadd.f32 %v3296, %v3309
    %3311 = vdwg.mxu0
    %3312 = vmatpush.bf16.msra.mxu0 %v2284
    %3313 = vmatpush.bf16.msra.mxu0 %v2276
    %3314 = vmatpush.bf16.msra.mxu0 %v2268
    %3315 = vmatpush.bf16.msra.mxu0 %v2260
    %3316 = vmatpush.bf16.msra.mxu0 %v2252
    %3317 = vmatpush.bf16.msra.mxu0 %v2244
    %3318 = vmatpush.bf16.msra.mxu0 %v2236
    %3319 = vmatpush.bf16.msra.mxu0 %v2228
    %3320 = vmatmul.bf16.gmra.mxu0 %v614
    %v3321 = vpop.f32.mrf.mxu0
    %v3322 = vadd.f32 %v3308, %v3321
    %v3323 = vpop.f32.mrf.mxu0
    %v3324 = vadd.f32 %v3310, %v3323
    %3325 = vdwg.mxu0
    %3326 = vmatpush.bf16.msra.mxu0 %v2348
    %3327 = vmatpush.bf16.msra.mxu0 %v2340
    %3328 = vmatpush.bf16.msra.mxu0 %v2332
    %3329 = vmatpush.bf16.msra.mxu0 %v2324
    %3330 = vmatpush.bf16.msra.mxu0 %v2316
    %3331 = vmatpush.bf16.msra.mxu0 %v2308
    %3332 = vmatpush.bf16.msra.mxu0 %v2300
    %3333 = vmatpush.bf16.msra.mxu0 %v2292
    %3334 = vmatmul.bf16.gmra.mxu0 %v615
    %v3335 = vpop.f32.mrf.mxu0
    %v3336 = vadd.f32 %v3322, %v3335
    %v3337 = vpop.f32.mrf.mxu0
    %v3338 = vadd.f32 %v3324, %v3337
    %3339 = vdwg.mxu0
    %3340 = vmatpush.bf16.msra.mxu0 %v2412
    %3341 = vmatpush.bf16.msra.mxu0 %v2404
    %3342 = vmatpush.bf16.msra.mxu0 %v2396
    %3343 = vmatpush.bf16.msra.mxu0 %v2388
    %3344 = vmatpush.bf16.msra.mxu0 %v2380
    %3345 = vmatpush.bf16.msra.mxu0 %v2372
    %3346 = vmatpush.bf16.msra.mxu0 %v2364
    %3347 = vmatpush.bf16.msra.mxu0 %v2356
    %3348 = vmatmul.bf16.gmra.mxu0 %v616
    %v3349 = vpop.f32.mrf.mxu0
    %v3350 = vadd.f32 %v3336, %v3349
    %v3351 = vpop.f32.mrf.mxu0
    %v3352 = vadd.f32 %v3338, %v3351
    %3353 = vdwg.mxu0
    %3354 = vmatpush.bf16.msra.mxu0 %v2029
    %3355 = vmatpush.bf16.msra.mxu0 %v2021
    %3356 = vmatpush.bf16.msra.mxu0 %v2013
    %3357 = vmatpush.bf16.msra.mxu0 %v2005
    %3358 = vmatpush.bf16.msra.mxu0 %v1997
    %3359 = vmatpush.bf16.msra.mxu0 %v1989
    %3360 = vmatpush.bf16.msra.mxu0 %v1981
    %3361 = vmatpush.bf16.msra.mxu0 %v1973
    %3362 = vmatmul.bf16.gmra.mxu0 %v610
    %v3363 = vpop.f32.mrf.mxu0
    %v3364 = vadd.f32 %v577, %v3363
    %v3365 = vpop.f32.mrf.mxu0
    %v3366 = vadd.f32 %v577, %v3365
    %3367 = vdwg.mxu0
    %3368 = vmatpush.bf16.msra.mxu0 %v2093
    %3369 = vmatpush.bf16.msra.mxu0 %v2085
    %3370 = vmatpush.bf16.msra.mxu0 %v2077
    %3371 = vmatpush.bf16.msra.mxu0 %v2069
    %3372 = vmatpush.bf16.msra.mxu0 %v2061
    %3373 = vmatpush.bf16.msra.mxu0 %v2053
    %3374 = vmatpush.bf16.msra.mxu0 %v2045
    %3375 = vmatpush.bf16.msra.mxu0 %v2037
    %3376 = vmatmul.bf16.gmra.mxu0 %v611
    %v3377 = vpop.f32.mrf.mxu0
    %v3378 = vadd.f32 %v3364, %v3377
    %v3379 = vpop.f32.mrf.mxu0
    %v3380 = vadd.f32 %v3366, %v3379
    %3381 = vdwg.mxu0
    %3382 = vmatpush.bf16.msra.mxu0 %v2157
    %3383 = vmatpush.bf16.msra.mxu0 %v2149
    %3384 = vmatpush.bf16.msra.mxu0 %v2141
    %3385 = vmatpush.bf16.msra.mxu0 %v2133
    %3386 = vmatpush.bf16.msra.mxu0 %v2125
    %3387 = vmatpush.bf16.msra.mxu0 %v2117
    %3388 = vmatpush.bf16.msra.mxu0 %v2109
    %3389 = vmatpush.bf16.msra.mxu0 %v2101
    %3390 = vmatmul.bf16.gmra.mxu0 %v612
    %v3391 = vpop.f32.mrf.mxu0
    %v3392 = vadd.f32 %v3378, %v3391
    %v3393 = vpop.f32.mrf.mxu0
    %v3394 = vadd.f32 %v3380, %v3393
    %3395 = vdwg.mxu0
    %3396 = vmatpush.bf16.msra.mxu0 %v2221
    %3397 = vmatpush.bf16.msra.mxu0 %v2213
    %3398 = vmatpush.bf16.msra.mxu0 %v2205
    %3399 = vmatpush.bf16.msra.mxu0 %v2197
    %3400 = vmatpush.bf16.msra.mxu0 %v2189
    %3401 = vmatpush.bf16.msra.mxu0 %v2181
    %3402 = vmatpush.bf16.msra.mxu0 %v2173
    %3403 = vmatpush.bf16.msra.mxu0 %v2165
    %3404 = vmatmul.bf16.gmra.mxu0 %v613
    %v3405 = vpop.f32.mrf.mxu0
    %v3406 = vadd.f32 %v3392, %v3405
    %v3407 = vpop.f32.mrf.mxu0
    %v3408 = vadd.f32 %v3394, %v3407
    %3409 = vdwg.mxu0
    %3410 = vmatpush.bf16.msra.mxu0 %v2285
    %3411 = vmatpush.bf16.msra.mxu0 %v2277
    %3412 = vmatpush.bf16.msra.mxu0 %v2269
    %3413 = vmatpush.bf16.msra.mxu0 %v2261
    %3414 = vmatpush.bf16.msra.mxu0 %v2253
    %3415 = vmatpush.bf16.msra.mxu0 %v2245
    %3416 = vmatpush.bf16.msra.mxu0 %v2237
    %3417 = vmatpush.bf16.msra.mxu0 %v2229
    %3418 = vmatmul.bf16.gmra.mxu0 %v614
    %v3419 = vpop.f32.mrf.mxu0
    %v3420 = vadd.f32 %v3406, %v3419
    %v3421 = vpop.f32.mrf.mxu0
    %v3422 = vadd.f32 %v3408, %v3421
    %3423 = vdwg.mxu0
    %3424 = vmatpush.bf16.msra.mxu0 %v2349
    %3425 = vmatpush.bf16.msra.mxu0 %v2341
    %3426 = vmatpush.bf16.msra.mxu0 %v2333
    %3427 = vmatpush.bf16.msra.mxu0 %v2325
    %3428 = vmatpush.bf16.msra.mxu0 %v2317
    %3429 = vmatpush.bf16.msra.mxu0 %v2309
    %3430 = vmatpush.bf16.msra.mxu0 %v2301
    %3431 = vmatpush.bf16.msra.mxu0 %v2293
    %3432 = vmatmul.bf16.gmra.mxu0 %v615
    %v3433 = vpop.f32.mrf.mxu0
    %v3434 = vadd.f32 %v3420, %v3433
    %v3435 = vpop.f32.mrf.mxu0
    %v3436 = vadd.f32 %v3422, %v3435
    %3437 = vdwg.mxu0
    %3438 = vmatpush.bf16.msra.mxu0 %v2413
    %3439 = vmatpush.bf16.msra.mxu0 %v2405
    %3440 = vmatpush.bf16.msra.mxu0 %v2397
    %3441 = vmatpush.bf16.msra.mxu0 %v2389
    %3442 = vmatpush.bf16.msra.mxu0 %v2381
    %3443 = vmatpush.bf16.msra.mxu0 %v2373
    %3444 = vmatpush.bf16.msra.mxu0 %v2365
    %3445 = vmatpush.bf16.msra.mxu0 %v2357
    %3446 = vmatmul.bf16.gmra.mxu0 %v616
    %v3447 = vpop.f32.mrf.mxu0
    %v3448 = vadd.f32 %v3434, %v3447
    %v3449 = vpop.f32.mrf.mxu0
    %v3450 = vadd.f32 %v3436, %v3449
    %3451 = vdwg.mxu0
    %3452 = vmatpush.bf16.msra.mxu0 %v2030
    %3453 = vmatpush.bf16.msra.mxu0 %v2022
    %3454 = vmatpush.bf16.msra.mxu0 %v2014
    %3455 = vmatpush.bf16.msra.mxu0 %v2006
    %3456 = vmatpush.bf16.msra.mxu0 %v1998
    %3457 = vmatpush.bf16.msra.mxu0 %v1990
    %3458 = vmatpush.bf16.msra.mxu0 %v1982
    %3459 = vmatpush.bf16.msra.mxu0 %v1974
    %3460 = vmatmul.bf16.gmra.mxu0 %v610
    %v3461 = vpop.f32.mrf.mxu0
    %v3462 = vadd.f32 %v578, %v3461
    %v3463 = vpop.f32.mrf.mxu0
    %v3464 = vadd.f32 %v578, %v3463
    %3465 = vdwg.mxu0
    %3466 = vmatpush.bf16.msra.mxu0 %v2094
    %3467 = vmatpush.bf16.msra.mxu0 %v2086
    %3468 = vmatpush.bf16.msra.mxu0 %v2078
    %3469 = vmatpush.bf16.msra.mxu0 %v2070
    %3470 = vmatpush.bf16.msra.mxu0 %v2062
    %3471 = vmatpush.bf16.msra.mxu0 %v2054
    %3472 = vmatpush.bf16.msra.mxu0 %v2046
    %3473 = vmatpush.bf16.msra.mxu0 %v2038
    %3474 = vmatmul.bf16.gmra.mxu0 %v611
    %v3475 = vpop.f32.mrf.mxu0
    %v3476 = vadd.f32 %v3462, %v3475
    %v3477 = vpop.f32.mrf.mxu0
    %v3478 = vadd.f32 %v3464, %v3477
    %3479 = vdwg.mxu0
    %3480 = vmatpush.bf16.msra.mxu0 %v2158
    %3481 = vmatpush.bf16.msra.mxu0 %v2150
    %3482 = vmatpush.bf16.msra.mxu0 %v2142
    %3483 = vmatpush.bf16.msra.mxu0 %v2134
    %3484 = vmatpush.bf16.msra.mxu0 %v2126
    %3485 = vmatpush.bf16.msra.mxu0 %v2118
    %3486 = vmatpush.bf16.msra.mxu0 %v2110
    %3487 = vmatpush.bf16.msra.mxu0 %v2102
    %3488 = vmatmul.bf16.gmra.mxu0 %v612
    %v3489 = vpop.f32.mrf.mxu0
    %v3490 = vadd.f32 %v3476, %v3489
    %v3491 = vpop.f32.mrf.mxu0
    %v3492 = vadd.f32 %v3478, %v3491
    %3493 = vdwg.mxu0
    %3494 = vmatpush.bf16.msra.mxu0 %v2222
    %3495 = vmatpush.bf16.msra.mxu0 %v2214
    %3496 = vmatpush.bf16.msra.mxu0 %v2206
    %3497 = vmatpush.bf16.msra.mxu0 %v2198
    %3498 = vmatpush.bf16.msra.mxu0 %v2190
    %3499 = vmatpush.bf16.msra.mxu0 %v2182
    %3500 = vmatpush.bf16.msra.mxu0 %v2174
    %3501 = vmatpush.bf16.msra.mxu0 %v2166
    %3502 = vmatmul.bf16.gmra.mxu0 %v613
    %v3503 = vpop.f32.mrf.mxu0
    %v3504 = vadd.f32 %v3490, %v3503
    %v3505 = vpop.f32.mrf.mxu0
    %v3506 = vadd.f32 %v3492, %v3505
    %3507 = vdwg.mxu0
    %3508 = vmatpush.bf16.msra.mxu0 %v2286
    %3509 = vmatpush.bf16.msra.mxu0 %v2278
    %3510 = vmatpush.bf16.msra.mxu0 %v2270
    %3511 = vmatpush.bf16.msra.mxu0 %v2262
    %3512 = vmatpush.bf16.msra.mxu0 %v2254
    %3513 = vmatpush.bf16.msra.mxu0 %v2246
    %3514 = vmatpush.bf16.msra.mxu0 %v2238
    %3515 = vmatpush.bf16.msra.mxu0 %v2230
    %3516 = vmatmul.bf16.gmra.mxu0 %v614
    %v3517 = vpop.f32.mrf.mxu0
    %v3518 = vadd.f32 %v3504, %v3517
    %v3519 = vpop.f32.mrf.mxu0
    %v3520 = vadd.f32 %v3506, %v3519
    %3521 = vdwg.mxu0
    %3522 = vmatpush.bf16.msra.mxu0 %v2350
    %3523 = vmatpush.bf16.msra.mxu0 %v2342
    %3524 = vmatpush.bf16.msra.mxu0 %v2334
    %3525 = vmatpush.bf16.msra.mxu0 %v2326
    %3526 = vmatpush.bf16.msra.mxu0 %v2318
    %3527 = vmatpush.bf16.msra.mxu0 %v2310
    %3528 = vmatpush.bf16.msra.mxu0 %v2302
    %3529 = vmatpush.bf16.msra.mxu0 %v2294
    %3530 = vmatmul.bf16.gmra.mxu0 %v615
    %v3531 = vpop.f32.mrf.mxu0
    %v3532 = vadd.f32 %v3518, %v3531
    %v3533 = vpop.f32.mrf.mxu0
    %v3534 = vadd.f32 %v3520, %v3533
    %3535 = vdwg.mxu0
    %3536 = vmatpush.bf16.msra.mxu0 %v2414
    %3537 = vmatpush.bf16.msra.mxu0 %v2406
    %3538 = vmatpush.bf16.msra.mxu0 %v2398
    %3539 = vmatpush.bf16.msra.mxu0 %v2390
    %3540 = vmatpush.bf16.msra.mxu0 %v2382
    %3541 = vmatpush.bf16.msra.mxu0 %v2374
    %3542 = vmatpush.bf16.msra.mxu0 %v2366
    %3543 = vmatpush.bf16.msra.mxu0 %v2358
    %3544 = vmatmul.bf16.gmra.mxu0 %v616
    %v3545 = vpop.f32.mrf.mxu0
    %v3546 = vadd.f32 %v3532, %v3545
    %v3547 = vpop.f32.mrf.mxu0
    %v3548 = vadd.f32 %v3534, %v3547
    %3549 = vdwg.mxu0
    %3550 = vmatpush.bf16.msra.mxu0 %v2031
    %3551 = vmatpush.bf16.msra.mxu0 %v2023
    %3552 = vmatpush.bf16.msra.mxu0 %v2015
    %3553 = vmatpush.bf16.msra.mxu0 %v2007
    %3554 = vmatpush.bf16.msra.mxu0 %v1999
    %3555 = vmatpush.bf16.msra.mxu0 %v1991
    %3556 = vmatpush.bf16.msra.mxu0 %v1983
    %3557 = vmatpush.bf16.msra.mxu0 %v1975
    %3558 = vmatmul.bf16.gmra.mxu0 %v610
    %v3559 = vpop.f32.mrf.mxu0
    %v3560 = vadd.f32 %v579, %v3559
    %v3561 = vpop.f32.mrf.mxu0
    %v3562 = vadd.f32 %v579, %v3561
    %3563 = vdwg.mxu0
    %3564 = vmatpush.bf16.msra.mxu0 %v2095
    %3565 = vmatpush.bf16.msra.mxu0 %v2087
    %3566 = vmatpush.bf16.msra.mxu0 %v2079
    %3567 = vmatpush.bf16.msra.mxu0 %v2071
    %3568 = vmatpush.bf16.msra.mxu0 %v2063
    %3569 = vmatpush.bf16.msra.mxu0 %v2055
    %3570 = vmatpush.bf16.msra.mxu0 %v2047
    %3571 = vmatpush.bf16.msra.mxu0 %v2039
    %3572 = vmatmul.bf16.gmra.mxu0 %v611
    %v3573 = vpop.f32.mrf.mxu0
    %v3574 = vadd.f32 %v3560, %v3573
    %v3575 = vpop.f32.mrf.mxu0
    %v3576 = vadd.f32 %v3562, %v3575
    %3577 = vdwg.mxu0
    %3578 = vmatpush.bf16.msra.mxu0 %v2159
    %3579 = vmatpush.bf16.msra.mxu0 %v2151
    %3580 = vmatpush.bf16.msra.mxu0 %v2143
    %3581 = vmatpush.bf16.msra.mxu0 %v2135
    %3582 = vmatpush.bf16.msra.mxu0 %v2127
    %3583 = vmatpush.bf16.msra.mxu0 %v2119
    %3584 = vmatpush.bf16.msra.mxu0 %v2111
    %3585 = vmatpush.bf16.msra.mxu0 %v2103
    %3586 = vmatmul.bf16.gmra.mxu0 %v612
    %v3587 = vpop.f32.mrf.mxu0
    %v3588 = vadd.f32 %v3574, %v3587
    %v3589 = vpop.f32.mrf.mxu0
    %v3590 = vadd.f32 %v3576, %v3589
    %3591 = vdwg.mxu0
    %3592 = vmatpush.bf16.msra.mxu0 %v2223
    %3593 = vmatpush.bf16.msra.mxu0 %v2215
    %3594 = vmatpush.bf16.msra.mxu0 %v2207
    %3595 = vmatpush.bf16.msra.mxu0 %v2199
    %3596 = vmatpush.bf16.msra.mxu0 %v2191
    %3597 = vmatpush.bf16.msra.mxu0 %v2183
    %3598 = vmatpush.bf16.msra.mxu0 %v2175
    %3599 = vmatpush.bf16.msra.mxu0 %v2167
    %3600 = vmatmul.bf16.gmra.mxu0 %v613
    %v3601 = vpop.f32.mrf.mxu0
    %v3602 = vadd.f32 %v3588, %v3601
    %v3603 = vpop.f32.mrf.mxu0
    %v3604 = vadd.f32 %v3590, %v3603
    %3605 = vdwg.mxu0
    %3606 = vmatpush.bf16.msra.mxu0 %v2287
    %3607 = vmatpush.bf16.msra.mxu0 %v2279
    %3608 = vmatpush.bf16.msra.mxu0 %v2271
    %3609 = vmatpush.bf16.msra.mxu0 %v2263
    %3610 = vmatpush.bf16.msra.mxu0 %v2255
    %3611 = vmatpush.bf16.msra.mxu0 %v2247
    %3612 = vmatpush.bf16.msra.mxu0 %v2239
    %3613 = vmatpush.bf16.msra.mxu0 %v2231
    %3614 = vmatmul.bf16.gmra.mxu0 %v614
    %v3615 = vpop.f32.mrf.mxu0
    %v3616 = vadd.f32 %v3602, %v3615
    %v3617 = vpop.f32.mrf.mxu0
    %v3618 = vadd.f32 %v3604, %v3617
    %3619 = vdwg.mxu0
    %3620 = vmatpush.bf16.msra.mxu0 %v2351
    %3621 = vmatpush.bf16.msra.mxu0 %v2343
    %3622 = vmatpush.bf16.msra.mxu0 %v2335
    %3623 = vmatpush.bf16.msra.mxu0 %v2327
    %3624 = vmatpush.bf16.msra.mxu0 %v2319
    %3625 = vmatpush.bf16.msra.mxu0 %v2311
    %3626 = vmatpush.bf16.msra.mxu0 %v2303
    %3627 = vmatpush.bf16.msra.mxu0 %v2295
    %3628 = vmatmul.bf16.gmra.mxu0 %v615
    %v3629 = vpop.f32.mrf.mxu0
    %v3630 = vadd.f32 %v3616, %v3629
    %v3631 = vpop.f32.mrf.mxu0
    %v3632 = vadd.f32 %v3618, %v3631
    %3633 = vdwg.mxu0
    %3634 = vmatpush.bf16.msra.mxu0 %v2415
    %3635 = vmatpush.bf16.msra.mxu0 %v2407
    %3636 = vmatpush.bf16.msra.mxu0 %v2399
    %3637 = vmatpush.bf16.msra.mxu0 %v2391
    %3638 = vmatpush.bf16.msra.mxu0 %v2383
    %3639 = vmatpush.bf16.msra.mxu0 %v2375
    %3640 = vmatpush.bf16.msra.mxu0 %v2367
    %3641 = vmatpush.bf16.msra.mxu0 %v2359
    %3642 = vmatmul.bf16.gmra.mxu0 %v616
    %v3643 = vpop.f32.mrf.mxu0
    %v3644 = vadd.f32 %v3630, %v3643
    %v3645 = vpop.f32.mrf.mxu0
    %v3646 = vadd.f32 %v3632, %v3645
    %3647 = vdwg.mxu0
    %v3648 = vmax.f32 %v2958, 0.0
    %v3649 = vmax.f32 %v3056, 0.0
    %v3650 = vmax.f32 %v3154, 0.0
    %v3651 = vmax.f32 %v3252, 0.0
    %v3652 = vmax.f32 %v3350, 0.0
    %v3653 = vmax.f32 %v3448, 0.0
    %v3654 = vmax.f32 %v3546, 0.0
    %v3655 = vmax.f32 %v3644, 0.0
    %v3656 = vmax.f32 %v2960, 0.0
    %v3657 = vmax.f32 %v3058, 0.0
    %v3658 = vmax.f32 %v3156, 0.0
    %v3659 = vmax.f32 %v3254, 0.0
    %v3660 = vmax.f32 %v3352, 0.0
    %v3661 = vmax.f32 %v3450, 0.0
    %v3662 = vmax.f32 %v3548, 0.0
    %v3663 = vmax.f32 %v3646, 0.0
    %v3664 = vpack.c.bf16 %v3656, %v3648
    %v3665 = vpack.c.bf16 %v3657, %v3649
    %v3666 = vpack.c.bf16 %v3658, %v3650
    %v3667 = vpack.c.bf16 %v3659, %v3651
    %v3668 = vpack.c.bf16 %v3660, %v3652
    %v3669 = vpack.c.bf16 %v3661, %v3653
    %v3670 = vpack.c.bf16 %v3662, %v3654
    %v3671 = vpack.c.bf16 %v3663, %v3655
    %v3672 = vld [vmem:[#allocation6] sm:$0xff]
    %v3673 = vld [vmem:[#allocation6 + $0x8] sm:$0xff]
    %v3674 = vld [vmem:[#allocation6 + $0x10] sm:$0xff]
    %v3675 = vld [vmem:[#allocation6 + $0x18] sm:$0xff]
    %v3676 = vld [vmem:[#allocation6 + $0x20] sm:$0xff]
    %v3677 = vld [vmem:[#allocation6 + $0x28] sm:$0xff]
    %v3678 = vld [vmem:[#allocation6 + $0x30] sm:$0xff]
    %v3679 = vld [vmem:[#allocation6 + $0x38] sm:$0xff]
    %v3680 = vld [vmem:[#allocation6 + $0x40] sm:$0xff]
    %v3681 = vld [vmem:[#allocation6 + $0x48] sm:$0xff]
    %v3682 = vld [vmem:[#allocation6 + $0x50] sm:$0xff]
    %v3683 = vld [vmem:[#allocation6 + $0x58] sm:$0xff]
    %v3684 = vld [vmem:[#allocation6 + $0x60] sm:$0xff]
    %v3685 = vld [vmem:[#allocation6 + $0x68] sm:$0xff]
    %v3686 = vld [vmem:[#allocation6 + $0x70] sm:$0xff]
    %v3687 = vld [vmem:[#allocation6 + $0x78] sm:$0xff]
    %v3688 = vld [vmem:[#allocation6 + $0x80] sm:$0xff]
    %v3689 = vld [vmem:[#allocation6 + $0x88] sm:$0xff]
    %v3690 = vld [vmem:[#allocation6 + $0x90] sm:$0xff]
    %v3691 = vld [vmem:[#allocation6 + $0x98] sm:$0xff]
    %v3692 = vld [vmem:[#allocation6 + $0xa0] sm:$0xff]
    %v3693 = vld [vmem:[#allocation6 + $0xa8] sm:$0xff]
    %v3694 = vld [vmem:[#allocation6 + $0xb0] sm:$0xff]
    %v3695 = vld [vmem:[#allocation6 + $0xb8] sm:$0xff]
    %v3696 = vld [vmem:[#allocation6 + $0xc0] sm:$0xff]
    %v3697 = vld [vmem:[#allocation6 + $0xc8] sm:$0xff]
    %v3698 = vld [vmem:[#allocation6 + $0xd0] sm:$0xff]
    %v3699 = vld [vmem:[#allocation6 + $0xd8] sm:$0xff]
    %v3700 = vld [vmem:[#allocation6 + $0xe0] sm:$0xff]
    %v3701 = vld [vmem:[#allocation6 + $0xe8] sm:$0xff]
    %v3702 = vld [vmem:[#allocation6 + $0xf0] sm:$0xff]
    %v3703 = vld [vmem:[#allocation6 + $0xf8] sm:$0xff]
    %v3704 = vld [vmem:[#allocation6 + $0x100] sm:$0xff]
    %v3705 = vld [vmem:[#allocation6 + $0x108] sm:$0xff]
    %v3706 = vld [vmem:[#allocation6 + $0x110] sm:$0xff]
    %v3707 = vld [vmem:[#allocation6 + $0x118] sm:$0xff]
    %v3708 = vld [vmem:[#allocation6 + $0x120] sm:$0xff]
    %v3709 = vld [vmem:[#allocation6 + $0x128] sm:$0xff]
    %v3710 = vld [vmem:[#allocation6 + $0x130] sm:$0xff]
    %v3711 = vld [vmem:[#allocation6 + $0x138] sm:$0xff]
    %v3712 = vld [vmem:[#allocation6 + $0x140] sm:$0xff]
    %v3713 = vld [vmem:[#allocation6 + $0x148] sm:$0xff]
    %v3714 = vld [vmem:[#allocation6 + $0x150] sm:$0xff]
    %v3715 = vld [vmem:[#allocation6 + $0x158] sm:$0xff]
    %v3716 = vld [vmem:[#allocation6 + $0x160] sm:$0xff]
    %v3717 = vld [vmem:[#allocation6 + $0x168] sm:$0xff]
    %v3718 = vld [vmem:[#allocation6 + $0x170] sm:$0xff]
    %v3719 = vld [vmem:[#allocation6 + $0x178] sm:$0xff]
    %v3720 = vld [vmem:[#allocation6 + $0x180] sm:$0xff]
    %v3721 = vld [vmem:[#allocation6 + $0x188] sm:$0xff]
    %v3722 = vld [vmem:[#allocation6 + $0x190] sm:$0xff]
    %v3723 = vld [vmem:[#allocation6 + $0x198] sm:$0xff]
    %v3724 = vld [vmem:[#allocation6 + $0x1a0] sm:$0xff]
    %v3725 = vld [vmem:[#allocation6 + $0x1a8] sm:$0xff]
    %v3726 = vld [vmem:[#allocation6 + $0x1b0] sm:$0xff]
    %v3727 = vld [vmem:[#allocation6 + $0x1b8] sm:$0xff]
    %v3728 = vld [vmem:[#allocation6 + $0x1c0] sm:$0xff]
    %v3729 = vld [vmem:[#allocation6 + $0x1c8] sm:$0xff]
    %v3730 = vld [vmem:[#allocation6 + $0x1d0] sm:$0xff]
    %v3731 = vld [vmem:[#allocation6 + $0x1d8] sm:$0xff]
    %v3732 = vld [vmem:[#allocation6 + $0x1e0] sm:$0xff]
    %v3733 = vld [vmem:[#allocation6 + $0x1e8] sm:$0xff]
    %v3734 = vld [vmem:[#allocation6 + $0x1f0] sm:$0xff]
    %v3735 = vld [vmem:[#allocation6 + $0x1f8] sm:$0xff]
    %v3736 = vld [vmem:[#allocation6 + $0x200] sm:$0xff]
    %v3737 = vld [vmem:[#allocation6 + $0x208] sm:$0xff]
    %v3738 = vld [vmem:[#allocation6 + $0x210] sm:$0xff]
    %v3739 = vld [vmem:[#allocation6 + $0x218] sm:$0xff]
    %v3740 = vld [vmem:[#allocation6 + $0x220] sm:$0xff]
    %v3741 = vld [vmem:[#allocation6 + $0x228] sm:$0xff]
    %v3742 = vld [vmem:[#allocation6 + $0x230] sm:$0xff]
    %v3743 = vld [vmem:[#allocation6 + $0x238] sm:$0xff]
    %v3744 = vld [vmem:[#allocation6 + $0x240] sm:$0xff]
    %v3745 = vld [vmem:[#allocation6 + $0x248] sm:$0xff]
    %v3746 = vld [vmem:[#allocation6 + $0x250] sm:$0xff]
    %v3747 = vld [vmem:[#allocation6 + $0x258] sm:$0xff]
    %v3748 = vld [vmem:[#allocation6 + $0x260] sm:$0xff]
    %v3749 = vld [vmem:[#allocation6 + $0x268] sm:$0xff]
    %v3750 = vld [vmem:[#allocation6 + $0x270] sm:$0xff]
    %v3751 = vld [vmem:[#allocation6 + $0x278] sm:$0xff]
    %v3752 = vld [vmem:[#allocation6 + $0x280] sm:$0xff]
    %v3753 = vld [vmem:[#allocation6 + $0x288] sm:$0xff]
    %v3754 = vld [vmem:[#allocation6 + $0x290] sm:$0xff]
    %v3755 = vld [vmem:[#allocation6 + $0x298] sm:$0xff]
    %v3756 = vld [vmem:[#allocation6 + $0x2a0] sm:$0xff]
    %v3757 = vld [vmem:[#allocation6 + $0x2a8] sm:$0xff]
    %v3758 = vld [vmem:[#allocation6 + $0x2b0] sm:$0xff]
    %v3759 = vld [vmem:[#allocation6 + $0x2b8] sm:$0xff]
    %v3760 = vld [vmem:[#allocation6 + $0x2c0] sm:$0xff]
    %v3761 = vld [vmem:[#allocation6 + $0x2c8] sm:$0xff]
    %v3762 = vld [vmem:[#allocation6 + $0x2d0] sm:$0xff]
    %v3763 = vld [vmem:[#allocation6 + $0x2d8] sm:$0xff]
    %v3764 = vld [vmem:[#allocation6 + $0x2e0] sm:$0xff]
    %v3765 = vld [vmem:[#allocation6 + $0x2e8] sm:$0xff]
    %v3766 = vld [vmem:[#allocation6 + $0x2f0] sm:$0xff]
    %v3767 = vld [vmem:[#allocation6 + $0x2f8] sm:$0xff]
    %v3768 = vld [vmem:[#allocation6 + $0x300] sm:$0xff]
    %v3769 = vld [vmem:[#allocation6 + $0x308] sm:$0xff]
    %v3770 = vld [vmem:[#allocation6 + $0x310] sm:$0xff]
    %v3771 = vld [vmem:[#allocation6 + $0x318] sm:$0xff]
    %v3772 = vld [vmem:[#allocation6 + $0x320] sm:$0xff]
    %v3773 = vld [vmem:[#allocation6 + $0x328] sm:$0xff]
    %v3774 = vld [vmem:[#allocation6 + $0x330] sm:$0xff]
    %v3775 = vld [vmem:[#allocation6 + $0x338] sm:$0xff]
    %v3776 = vld [vmem:[#allocation6 + $0x340] sm:$0xff]
    %v3777 = vld [vmem:[#allocation6 + $0x348] sm:$0xff]
    %v3778 = vld [vmem:[#allocation6 + $0x350] sm:$0xff]
    %v3779 = vld [vmem:[#allocation6 + $0x358] sm:$0xff]
    %v3780 = vld [vmem:[#allocation6 + $0x360] sm:$0xff]
    %v3781 = vld [vmem:[#allocation6 + $0x368] sm:$0xff]
    %v3782 = vld [vmem:[#allocation6 + $0x370] sm:$0xff]
    %v3783 = vld [vmem:[#allocation6 + $0x378] sm:$0xff]
    %v3784 = vld [vmem:[#allocation6 + $0x380] sm:$0xff]
    %v3785 = vld [vmem:[#allocation6 + $0x388] sm:$0xff]
    %v3786 = vld [vmem:[#allocation6 + $0x390] sm:$0xff]
    %v3787 = vld [vmem:[#allocation6 + $0x398] sm:$0xff]
    %v3788 = vld [vmem:[#allocation6 + $0x3a0] sm:$0xff]
    %v3789 = vld [vmem:[#allocation6 + $0x3a8] sm:$0xff]
    %v3790 = vld [vmem:[#allocation6 + $0x3b0] sm:$0xff]
    %v3791 = vld [vmem:[#allocation6 + $0x3b8] sm:$0xff]
    %v3792 = vld [vmem:[#allocation6 + $0x3c0] sm:$0xff]
    %v3793 = vld [vmem:[#allocation6 + $0x3c8] sm:$0xff]
    %v3794 = vld [vmem:[#allocation6 + $0x3d0] sm:$0xff]
    %v3795 = vld [vmem:[#allocation6 + $0x3d8] sm:$0xff]
    %v3796 = vld [vmem:[#allocation6 + $0x3e0] sm:$0xff]
    %v3797 = vld [vmem:[#allocation6 + $0x3e8] sm:$0xff]
    %v3798 = vld [vmem:[#allocation6 + $0x3f0] sm:$0xff]
    %v3799 = vld [vmem:[#allocation6 + $0x3f8] sm:$0xff]
    %v3800 = vld [vmem:[#allocation6 + $0x400] sm:$0xff]
    %v3801 = vld [vmem:[#allocation6 + $0x408] sm:$0xff]
    %v3802 = vld [vmem:[#allocation6 + $0x410] sm:$0xff]
    %v3803 = vld [vmem:[#allocation6 + $0x418] sm:$0xff]
    %v3804 = vld [vmem:[#allocation6 + $0x420] sm:$0xff]
    %v3805 = vld [vmem:[#allocation6 + $0x428] sm:$0xff]
    %v3806 = vld [vmem:[#allocation6 + $0x430] sm:$0xff]
    %v3807 = vld [vmem:[#allocation6 + $0x438] sm:$0xff]
    %v3808 = vld [vmem:[#allocation6 + $0x440] sm:$0xff]
    %v3809 = vld [vmem:[#allocation6 + $0x448] sm:$0xff]
    %v3810 = vld [vmem:[#allocation6 + $0x450] sm:$0xff]
    %v3811 = vld [vmem:[#allocation6 + $0x458] sm:$0xff]
    %v3812 = vld [vmem:[#allocation6 + $0x460] sm:$0xff]
    %v3813 = vld [vmem:[#allocation6 + $0x468] sm:$0xff]
    %v3814 = vld [vmem:[#allocation6 + $0x470] sm:$0xff]
    %v3815 = vld [vmem:[#allocation6 + $0x478] sm:$0xff]
    %v3816 = vld [vmem:[#allocation6 + $0x480] sm:$0xff]
    %v3817 = vld [vmem:[#allocation6 + $0x488] sm:$0xff]
    %v3818 = vld [vmem:[#allocation6 + $0x490] sm:$0xff]
    %v3819 = vld [vmem:[#allocation6 + $0x498] sm:$0xff]
    %v3820 = vld [vmem:[#allocation6 + $0x4a0] sm:$0xff]
    %v3821 = vld [vmem:[#allocation6 + $0x4a8] sm:$0xff]
    %v3822 = vld [vmem:[#allocation6 + $0x4b0] sm:$0xff]
    %v3823 = vld [vmem:[#allocation6 + $0x4b8] sm:$0xff]
    %v3824 = vld [vmem:[#allocation6 + $0x4c0] sm:$0xff]
    %v3825 = vld [vmem:[#allocation6 + $0x4c8] sm:$0xff]
    %v3826 = vld [vmem:[#allocation6 + $0x4d0] sm:$0xff]
    %v3827 = vld [vmem:[#allocation6 + $0x4d8] sm:$0xff]
    %v3828 = vld [vmem:[#allocation6 + $0x4e0] sm:$0xff]
    %v3829 = vld [vmem:[#allocation6 + $0x4e8] sm:$0xff]
    %v3830 = vld [vmem:[#allocation6 + $0x4f0] sm:$0xff]
    %v3831 = vld [vmem:[#allocation6 + $0x4f8] sm:$0xff]
    %v3832 = vld [vmem:[#allocation6 + $0x500] sm:$0xff]
    %v3833 = vld [vmem:[#allocation6 + $0x508] sm:$0xff]
    %v3834 = vld [vmem:[#allocation6 + $0x510] sm:$0xff]
    %v3835 = vld [vmem:[#allocation6 + $0x518] sm:$0xff]
    %v3836 = vld [vmem:[#allocation6 + $0x520] sm:$0xff]
    %v3837 = vld [vmem:[#allocation6 + $0x528] sm:$0xff]
    %v3838 = vld [vmem:[#allocation6 + $0x530] sm:$0xff]
    %v3839 = vld [vmem:[#allocation6 + $0x538] sm:$0xff]
    %v3840 = vld [vmem:[#allocation6 + $0x540] sm:$0xff]
    %v3841 = vld [vmem:[#allocation6 + $0x548] sm:$0xff]
    %v3842 = vld [vmem:[#allocation6 + $0x550] sm:$0xff]
    %v3843 = vld [vmem:[#allocation6 + $0x558] sm:$0xff]
    %v3844 = vld [vmem:[#allocation6 + $0x560] sm:$0xff]
    %v3845 = vld [vmem:[#allocation6 + $0x568] sm:$0xff]
    %v3846 = vld [vmem:[#allocation6 + $0x570] sm:$0xff]
    %v3847 = vld [vmem:[#allocation6 + $0x578] sm:$0xff]
    %v3848 = vld [vmem:[#allocation6 + $0x580] sm:$0xff]
    %v3849 = vld [vmem:[#allocation6 + $0x588] sm:$0xff]
    %v3850 = vld [vmem:[#allocation6 + $0x590] sm:$0xff]
    %v3851 = vld [vmem:[#allocation6 + $0x598] sm:$0xff]
    %v3852 = vld [vmem:[#allocation6 + $0x5a0] sm:$0xff]
    %v3853 = vld [vmem:[#allocation6 + $0x5a8] sm:$0xff]
    %v3854 = vld [vmem:[#allocation6 + $0x5b0] sm:$0xff]
    %v3855 = vld [vmem:[#allocation6 + $0x5b8] sm:$0xff]
    %v3856 = vld [vmem:[#allocation6 + $0x5c0] sm:$0xff]
    %v3857 = vld [vmem:[#allocation6 + $0x5c8] sm:$0xff]
    %v3858 = vld [vmem:[#allocation6 + $0x5d0] sm:$0xff]
    %v3859 = vld [vmem:[#allocation6 + $0x5d8] sm:$0xff]
    %v3860 = vld [vmem:[#allocation6 + $0x5e0] sm:$0xff]
    %v3861 = vld [vmem:[#allocation6 + $0x5e8] sm:$0xff]
    %v3862 = vld [vmem:[#allocation6 + $0x5f0] sm:$0xff]
    %v3863 = vld [vmem:[#allocation6 + $0x5f8] sm:$0xff]
    %v3864 = vld [vmem:[#allocation6 + $0x600] sm:$0xff]
    %v3865 = vld [vmem:[#allocation6 + $0x608] sm:$0xff]
    %v3866 = vld [vmem:[#allocation6 + $0x610] sm:$0xff]
    %v3867 = vld [vmem:[#allocation6 + $0x618] sm:$0xff]
    %v3868 = vld [vmem:[#allocation6 + $0x620] sm:$0xff]
    %v3869 = vld [vmem:[#allocation6 + $0x628] sm:$0xff]
    %v3870 = vld [vmem:[#allocation6 + $0x630] sm:$0xff]
    %v3871 = vld [vmem:[#allocation6 + $0x638] sm:$0xff]
    %v3872 = vld [vmem:[#allocation6 + $0x640] sm:$0xff]
    %v3873 = vld [vmem:[#allocation6 + $0x648] sm:$0xff]
    %v3874 = vld [vmem:[#allocation6 + $0x650] sm:$0xff]
    %v3875 = vld [vmem:[#allocation6 + $0x658] sm:$0xff]
    %v3876 = vld [vmem:[#allocation6 + $0x660] sm:$0xff]
    %v3877 = vld [vmem:[#allocation6 + $0x668] sm:$0xff]
    %v3878 = vld [vmem:[#allocation6 + $0x670] sm:$0xff]
    %v3879 = vld [vmem:[#allocation6 + $0x678] sm:$0xff]
    %v3880 = vld [vmem:[#allocation6 + $0x680] sm:$0xff]
    %v3881 = vld [vmem:[#allocation6 + $0x688] sm:$0xff]
    %v3882 = vld [vmem:[#allocation6 + $0x690] sm:$0xff]
    %v3883 = vld [vmem:[#allocation6 + $0x698] sm:$0xff]
    %v3884 = vld [vmem:[#allocation6 + $0x6a0] sm:$0xff]
    %v3885 = vld [vmem:[#allocation6 + $0x6a8] sm:$0xff]
    %v3886 = vld [vmem:[#allocation6 + $0x6b0] sm:$0xff]
    %v3887 = vld [vmem:[#allocation6 + $0x6b8] sm:$0xff]
    %v3888 = vld [vmem:[#allocation6 + $0x6c0] sm:$0xff]
    %v3889 = vld [vmem:[#allocation6 + $0x6c8] sm:$0xff]
    %v3890 = vld [vmem:[#allocation6 + $0x6d0] sm:$0xff]
    %v3891 = vld [vmem:[#allocation6 + $0x6d8] sm:$0xff]
    %v3892 = vld [vmem:[#allocation6 + $0x6e0] sm:$0xff]
    %v3893 = vld [vmem:[#allocation6 + $0x6e8] sm:$0xff]
    %v3894 = vld [vmem:[#allocation6 + $0x6f0] sm:$0xff]
    %v3895 = vld [vmem:[#allocation6 + $0x6f8] sm:$0xff]
    %v3896 = vld [vmem:[#allocation6 + $0x700] sm:$0xff]
    %v3897 = vld [vmem:[#allocation6 + $0x708] sm:$0xff]
    %v3898 = vld [vmem:[#allocation6 + $0x710] sm:$0xff]
    %v3899 = vld [vmem:[#allocation6 + $0x718] sm:$0xff]
    %v3900 = vld [vmem:[#allocation6 + $0x720] sm:$0xff]
    %v3901 = vld [vmem:[#allocation6 + $0x728] sm:$0xff]
    %v3902 = vld [vmem:[#allocation6 + $0x730] sm:$0xff]
    %v3903 = vld [vmem:[#allocation6 + $0x738] sm:$0xff]
    %v3904 = vld [vmem:[#allocation6 + $0x740] sm:$0xff]
    %v3905 = vld [vmem:[#allocation6 + $0x748] sm:$0xff]
    %v3906 = vld [vmem:[#allocation6 + $0x750] sm:$0xff]
    %v3907 = vld [vmem:[#allocation6 + $0x758] sm:$0xff]
    %v3908 = vld [vmem:[#allocation6 + $0x760] sm:$0xff]
    %v3909 = vld [vmem:[#allocation6 + $0x768] sm:$0xff]
    %v3910 = vld [vmem:[#allocation6 + $0x770] sm:$0xff]
    %v3911 = vld [vmem:[#allocation6 + $0x778] sm:$0xff]
    %v3912 = vld [vmem:[#allocation6 + $0x780] sm:$0xff]
    %v3913 = vld [vmem:[#allocation6 + $0x788] sm:$0xff]
    %v3914 = vld [vmem:[#allocation6 + $0x790] sm:$0xff]
    %v3915 = vld [vmem:[#allocation6 + $0x798] sm:$0xff]
    %v3916 = vld [vmem:[#allocation6 + $0x7a0] sm:$0xff]
    %v3917 = vld [vmem:[#allocation6 + $0x7a8] sm:$0xff]
    %v3918 = vld [vmem:[#allocation6 + $0x7b0] sm:$0xff]
    %v3919 = vld [vmem:[#allocation6 + $0x7b8] sm:$0xff]
    %v3920 = vld [vmem:[#allocation6 + $0x7c0] sm:$0xff]
    %v3921 = vld [vmem:[#allocation6 + $0x7c8] sm:$0xff]
    %v3922 = vld [vmem:[#allocation6 + $0x7d0] sm:$0xff]
    %v3923 = vld [vmem:[#allocation6 + $0x7d8] sm:$0xff]
    %v3924 = vld [vmem:[#allocation6 + $0x7e0] sm:$0xff]
    %v3925 = vld [vmem:[#allocation6 + $0x7e8] sm:$0xff]
    %v3926 = vld [vmem:[#allocation6 + $0x7f0] sm:$0xff]
    %v3927 = vld [vmem:[#allocation6 + $0x7f8] sm:$0xff]
    %v3928 = vld [vmem:[#allocation7] sm:$0xf]
    %v3930 = vperm.slane %v3928, 0
    %v3931 = vperm.slane %v3928, 1
    %v3932 = vperm.slane %v3928, 2
    %v3933 = vperm.slane %v3928, 3
    %v4194 = vunpack.c.l.b16 %v3672
    %v4195 = vunpack.c.h.b16 %v3672
    %v4196 = vunpack.c.l.b16 %v3673
    %v4197 = vunpack.c.h.b16 %v3673
    %v4198 = vunpack.c.l.b16 %v3674
    %v4199 = vunpack.c.h.b16 %v3674
    %v4200 = vunpack.c.l.b16 %v3675
    %v4201 = vunpack.c.h.b16 %v3675
    %v4202 = vunpack.c.l.b16 %v3676
    %v4203 = vunpack.c.h.b16 %v3676
    %v4204 = vunpack.c.l.b16 %v3677
    %v4205 = vunpack.c.h.b16 %v3677
    %v4206 = vunpack.c.l.b16 %v3678
    %v4207 = vunpack.c.h.b16 %v3678
    %v4208 = vunpack.c.l.b16 %v3679
    %v4209 = vunpack.c.h.b16 %v3679
    %v4210 = vunpack.c.l.b16 %v3680
    %v4211 = vunpack.c.h.b16 %v3680
    %v4212 = vunpack.c.l.b16 %v3681
    %v4213 = vunpack.c.h.b16 %v3681
    %v4214 = vunpack.c.l.b16 %v3682
    %v4215 = vunpack.c.h.b16 %v3682
    %v4216 = vunpack.c.l.b16 %v3683
    %v4217 = vunpack.c.h.b16 %v3683
    %v4218 = vunpack.c.l.b16 %v3684
    %v4219 = vunpack.c.h.b16 %v3684
    %v4220 = vunpack.c.l.b16 %v3685
    %v4221 = vunpack.c.h.b16 %v3685
    %v4222 = vunpack.c.l.b16 %v3686
    %v4223 = vunpack.c.h.b16 %v3686
    %v4224 = vunpack.c.l.b16 %v3687
    %v4225 = vunpack.c.h.b16 %v3687
    %v4226 = vunpack.c.l.b16 %v3688
    %v4227 = vunpack.c.h.b16 %v3688
    %v4228 = vunpack.c.l.b16 %v3689
    %v4229 = vunpack.c.h.b16 %v3689
    %v4230 = vunpack.c.l.b16 %v3690
    %v4231 = vunpack.c.h.b16 %v3690
    %v4232 = vunpack.c.l.b16 %v3691
    %v4233 = vunpack.c.h.b16 %v3691
    %v4234 = vunpack.c.l.b16 %v3692
    %v4235 = vunpack.c.h.b16 %v3692
    %v4236 = vunpack.c.l.b16 %v3693
    %v4237 = vunpack.c.h.b16 %v3693
    %v4238 = vunpack.c.l.b16 %v3694
    %v4239 = vunpack.c.h.b16 %v3694
    %v4240 = vunpack.c.l.b16 %v3695
    %v4241 = vunpack.c.h.b16 %v3695
    %v4242 = vunpack.c.l.b16 %v3696
    %v4243 = vunpack.c.h.b16 %v3696
    %v4244 = vunpack.c.l.b16 %v3697
    %v4245 = vunpack.c.h.b16 %v3697
    %v4246 = vunpack.c.l.b16 %v3698
    %v4247 = vunpack.c.h.b16 %v3698
    %v4248 = vunpack.c.l.b16 %v3699
    %v4249 = vunpack.c.h.b16 %v3699
    %v4250 = vunpack.c.l.b16 %v3700
    %v4251 = vunpack.c.h.b16 %v3700
    %v4252 = vunpack.c.l.b16 %v3701
    %v4253 = vunpack.c.h.b16 %v3701
    %v4254 = vunpack.c.l.b16 %v3702
    %v4255 = vunpack.c.h.b16 %v3702
    %v4256 = vunpack.c.l.b16 %v3703
    %v4257 = vunpack.c.h.b16 %v3703
    %v4258 = vunpack.c.l.b16 %v3704
    %v4259 = vunpack.c.h.b16 %v3704
    %v4260 = vunpack.c.l.b16 %v3705
    %v4261 = vunpack.c.h.b16 %v3705
    %v4262 = vunpack.c.l.b16 %v3706
    %v4263 = vunpack.c.h.b16 %v3706
    %v4264 = vunpack.c.l.b16 %v3707
    %v4265 = vunpack.c.h.b16 %v3707
    %v4266 = vunpack.c.l.b16 %v3708
    %v4267 = vunpack.c.h.b16 %v3708
    %v4268 = vunpack.c.l.b16 %v3709
    %v4269 = vunpack.c.h.b16 %v3709
    %v4270 = vunpack.c.l.b16 %v3710
    %v4271 = vunpack.c.h.b16 %v3710
    %v4272 = vunpack.c.l.b16 %v3711
    %v4273 = vunpack.c.h.b16 %v3711
    %v4274 = vunpack.c.l.b16 %v3712
    %v4275 = vunpack.c.h.b16 %v3712
    %v4276 = vunpack.c.l.b16 %v3713
    %v4277 = vunpack.c.h.b16 %v3713
    %v4278 = vunpack.c.l.b16 %v3714
    %v4279 = vunpack.c.h.b16 %v3714
    %v4280 = vunpack.c.l.b16 %v3715
    %v4281 = vunpack.c.h.b16 %v3715
    %v4282 = vunpack.c.l.b16 %v3716
    %v4283 = vunpack.c.h.b16 %v3716
    %v4284 = vunpack.c.l.b16 %v3717
    %v4285 = vunpack.c.h.b16 %v3717
    %v4286 = vunpack.c.l.b16 %v3718
    %v4287 = vunpack.c.h.b16 %v3718
    %v4288 = vunpack.c.l.b16 %v3719
    %v4289 = vunpack.c.h.b16 %v3719
    %v4290 = vunpack.c.l.b16 %v3720
    %v4291 = vunpack.c.h.b16 %v3720
    %v4292 = vunpack.c.l.b16 %v3721
    %v4293 = vunpack.c.h.b16 %v3721
    %v4294 = vunpack.c.l.b16 %v3722
    %v4295 = vunpack.c.h.b16 %v3722
    %v4296 = vunpack.c.l.b16 %v3723
    %v4297 = vunpack.c.h.b16 %v3723
    %v4298 = vunpack.c.l.b16 %v3724
    %v4299 = vunpack.c.h.b16 %v3724
    %v4300 = vunpack.c.l.b16 %v3725
    %v4301 = vunpack.c.h.b16 %v3725
    %v4302 = vunpack.c.l.b16 %v3726
    %v4303 = vunpack.c.h.b16 %v3726
    %v4304 = vunpack.c.l.b16 %v3727
    %v4305 = vunpack.c.h.b16 %v3727
    %v4306 = vunpack.c.l.b16 %v3728
    %v4307 = vunpack.c.h.b16 %v3728
    %v4308 = vunpack.c.l.b16 %v3729
    %v4309 = vunpack.c.h.b16 %v3729
    %v4310 = vunpack.c.l.b16 %v3730
    %v4311 = vunpack.c.h.b16 %v3730
    %v4312 = vunpack.c.l.b16 %v3731
    %v4313 = vunpack.c.h.b16 %v3731
    %v4314 = vunpack.c.l.b16 %v3732
    %v4315 = vunpack.c.h.b16 %v3732
    %v4316 = vunpack.c.l.b16 %v3733
    %v4317 = vunpack.c.h.b16 %v3733
    %v4318 = vunpack.c.l.b16 %v3734
    %v4319 = vunpack.c.h.b16 %v3734
    %v4320 = vunpack.c.l.b16 %v3735
    %v4321 = vunpack.c.h.b16 %v3735
    %v4322 = vunpack.c.l.b16 %v3736
    %v4323 = vunpack.c.h.b16 %v3736
    %v4324 = vunpack.c.l.b16 %v3737
    %v4325 = vunpack.c.h.b16 %v3737
    %v4326 = vunpack.c.l.b16 %v3738
    %v4327 = vunpack.c.h.b16 %v3738
    %v4328 = vunpack.c.l.b16 %v3739
    %v4329 = vunpack.c.h.b16 %v3739
    %v4330 = vunpack.c.l.b16 %v3740
    %v4331 = vunpack.c.h.b16 %v3740
    %v4332 = vunpack.c.l.b16 %v3741
    %v4333 = vunpack.c.h.b16 %v3741
    %v4334 = vunpack.c.l.b16 %v3742
    %v4335 = vunpack.c.h.b16 %v3742
    %v4336 = vunpack.c.l.b16 %v3743
    %v4337 = vunpack.c.h.b16 %v3743
    %v4338 = vunpack.c.l.b16 %v3744
    %v4339 = vunpack.c.h.b16 %v3744
    %v4340 = vunpack.c.l.b16 %v3745
    %v4341 = vunpack.c.h.b16 %v3745
    %v4342 = vunpack.c.l.b16 %v3746
    %v4343 = vunpack.c.h.b16 %v3746
    %v4344 = vunpack.c.l.b16 %v3747
    %v4345 = vunpack.c.h.b16 %v3747
    %v4346 = vunpack.c.l.b16 %v3748
    %v4347 = vunpack.c.h.b16 %v3748
    %v4348 = vunpack.c.l.b16 %v3749
    %v4349 = vunpack.c.h.b16 %v3749
    %v4350 = vunpack.c.l.b16 %v3750
    %v4351 = vunpack.c.h.b16 %v3750
    %v4352 = vunpack.c.l.b16 %v3751
    %v4353 = vunpack.c.h.b16 %v3751
    %v4354 = vunpack.c.l.b16 %v3752
    %v4355 = vunpack.c.h.b16 %v3752
    %v4356 = vunpack.c.l.b16 %v3753
    %v4357 = vunpack.c.h.b16 %v3753
    %v4358 = vunpack.c.l.b16 %v3754
    %v4359 = vunpack.c.h.b16 %v3754
    %v4360 = vunpack.c.l.b16 %v3755
    %v4361 = vunpack.c.h.b16 %v3755
    %v4362 = vunpack.c.l.b16 %v3756
    %v4363 = vunpack.c.h.b16 %v3756
    %v4364 = vunpack.c.l.b16 %v3757
    %v4365 = vunpack.c.h.b16 %v3757
    %v4366 = vunpack.c.l.b16 %v3758
    %v4367 = vunpack.c.h.b16 %v3758
    %v4368 = vunpack.c.l.b16 %v3759
    %v4369 = vunpack.c.h.b16 %v3759
    %v4370 = vunpack.c.l.b16 %v3760
    %v4371 = vunpack.c.h.b16 %v3760
    %v4372 = vunpack.c.l.b16 %v3761
    %v4373 = vunpack.c.h.b16 %v3761
    %v4374 = vunpack.c.l.b16 %v3762
    %v4375 = vunpack.c.h.b16 %v3762
    %v4376 = vunpack.c.l.b16 %v3763
    %v4377 = vunpack.c.h.b16 %v3763
    %v4378 = vunpack.c.l.b16 %v3764
    %v4379 = vunpack.c.h.b16 %v3764
    %v4380 = vunpack.c.l.b16 %v3765
    %v4381 = vunpack.c.h.b16 %v3765
    %v4382 = vunpack.c.l.b16 %v3766
    %v4383 = vunpack.c.h.b16 %v3766
    %v4384 = vunpack.c.l.b16 %v3767
    %v4385 = vunpack.c.h.b16 %v3767
    %v4386 = vunpack.c.l.b16 %v3768
    %v4387 = vunpack.c.h.b16 %v3768
    %v4388 = vunpack.c.l.b16 %v3769
    %v4389 = vunpack.c.h.b16 %v3769
    %v4390 = vunpack.c.l.b16 %v3770
    %v4391 = vunpack.c.h.b16 %v3770
    %v4392 = vunpack.c.l.b16 %v3771
    %v4393 = vunpack.c.h.b16 %v3771
    %v4394 = vunpack.c.l.b16 %v3772
    %v4395 = vunpack.c.h.b16 %v3772
    %v4396 = vunpack.c.l.b16 %v3773
    %v4397 = vunpack.c.h.b16 %v3773
    %v4398 = vunpack.c.l.b16 %v3774
    %v4399 = vunpack.c.h.b16 %v3774
    %v4400 = vunpack.c.l.b16 %v3775
    %v4401 = vunpack.c.h.b16 %v3775
    %v4402 = vunpack.c.l.b16 %v3776
    %v4403 = vunpack.c.h.b16 %v3776
    %v4404 = vunpack.c.l.b16 %v3777
    %v4405 = vunpack.c.h.b16 %v3777
    %v4406 = vunpack.c.l.b16 %v3778
    %v4407 = vunpack.c.h.b16 %v3778
    %v4408 = vunpack.c.l.b16 %v3779
    %v4409 = vunpack.c.h.b16 %v3779
    %v4410 = vunpack.c.l.b16 %v3780
    %v4411 = vunpack.c.h.b16 %v3780
    %v4412 = vunpack.c.l.b16 %v3781
    %v4413 = vunpack.c.h.b16 %v3781
    %v4414 = vunpack.c.l.b16 %v3782
    %v4415 = vunpack.c.h.b16 %v3782
    %v4416 = vunpack.c.l.b16 %v3783
    %v4417 = vunpack.c.h.b16 %v3783
    %v4418 = vunpack.c.l.b16 %v3784
    %v4419 = vunpack.c.h.b16 %v3784
    %v4420 = vunpack.c.l.b16 %v3785
    %v4421 = vunpack.c.h.b16 %v3785
    %v4422 = vunpack.c.l.b16 %v3786
    %v4423 = vunpack.c.h.b16 %v3786
    %v4424 = vunpack.c.l.b16 %v3787
    %v4425 = vunpack.c.h.b16 %v3787
    %v4426 = vunpack.c.l.b16 %v3788
    %v4427 = vunpack.c.h.b16 %v3788
    %v4428 = vunpack.c.l.b16 %v3789
    %v4429 = vunpack.c.h.b16 %v3789
    %v4430 = vunpack.c.l.b16 %v3790
    %v4431 = vunpack.c.h.b16 %v3790
    %v4432 = vunpack.c.l.b16 %v3791
    %v4433 = vunpack.c.h.b16 %v3791
    %v4434 = vunpack.c.l.b16 %v3792
    %v4435 = vunpack.c.h.b16 %v3792
    %v4436 = vunpack.c.l.b16 %v3793
    %v4437 = vunpack.c.h.b16 %v3793
    %v4438 = vunpack.c.l.b16 %v3794
    %v4439 = vunpack.c.h.b16 %v3794
    %v4440 = vunpack.c.l.b16 %v3795
    %v4441 = vunpack.c.h.b16 %v3795
    %v4442 = vunpack.c.l.b16 %v3796
    %v4443 = vunpack.c.h.b16 %v3796
    %v4444 = vunpack.c.l.b16 %v3797
    %v4445 = vunpack.c.h.b16 %v3797
    %v4446 = vunpack.c.l.b16 %v3798
    %v4447 = vunpack.c.h.b16 %v3798
    %v4448 = vunpack.c.l.b16 %v3799
    %v4449 = vunpack.c.h.b16 %v3799
    %v4450 = vunpack.c.l.b16 %v3800
    %v4451 = vunpack.c.h.b16 %v3800
    %v4452 = vunpack.c.l.b16 %v3801
    %v4453 = vunpack.c.h.b16 %v3801
    %v4454 = vunpack.c.l.b16 %v3802
    %v4455 = vunpack.c.h.b16 %v3802
    %v4456 = vunpack.c.l.b16 %v3803
    %v4457 = vunpack.c.h.b16 %v3803
    %v4458 = vunpack.c.l.b16 %v3804
    %v4459 = vunpack.c.h.b16 %v3804
    %v4460 = vunpack.c.l.b16 %v3805
    %v4461 = vunpack.c.h.b16 %v3805
    %v4462 = vunpack.c.l.b16 %v3806
    %v4463 = vunpack.c.h.b16 %v3806
    %v4464 = vunpack.c.l.b16 %v3807
    %v4465 = vunpack.c.h.b16 %v3807
    %v4466 = vunpack.c.l.b16 %v3808
    %v4467 = vunpack.c.h.b16 %v3808
    %v4468 = vunpack.c.l.b16 %v3809
    %v4469 = vunpack.c.h.b16 %v3809
    %v4470 = vunpack.c.l.b16 %v3810
    %v4471 = vunpack.c.h.b16 %v3810
    %v4472 = vunpack.c.l.b16 %v3811
    %v4473 = vunpack.c.h.b16 %v3811
    %v4474 = vunpack.c.l.b16 %v3812
    %v4475 = vunpack.c.h.b16 %v3812
    %v4476 = vunpack.c.l.b16 %v3813
    %v4477 = vunpack.c.h.b16 %v3813
    %v4478 = vunpack.c.l.b16 %v3814
    %v4479 = vunpack.c.h.b16 %v3814
    %v4480 = vunpack.c.l.b16 %v3815
    %v4481 = vunpack.c.h.b16 %v3815
    %v4482 = vunpack.c.l.b16 %v3816
    %v4483 = vunpack.c.h.b16 %v3816
    %v4484 = vunpack.c.l.b16 %v3817
    %v4485 = vunpack.c.h.b16 %v3817
    %v4486 = vunpack.c.l.b16 %v3818
    %v4487 = vunpack.c.h.b16 %v3818
    %v4488 = vunpack.c.l.b16 %v3819
    %v4489 = vunpack.c.h.b16 %v3819
    %v4490 = vunpack.c.l.b16 %v3820
    %v4491 = vunpack.c.h.b16 %v3820
    %v4492 = vunpack.c.l.b16 %v3821
    %v4493 = vunpack.c.h.b16 %v3821
    %v4494 = vunpack.c.l.b16 %v3822
    %v4495 = vunpack.c.h.b16 %v3822
    %v4496 = vunpack.c.l.b16 %v3823
    %v4497 = vunpack.c.h.b16 %v3823
    %v4498 = vunpack.c.l.b16 %v3824
    %v4499 = vunpack.c.h.b16 %v3824
    %v4500 = vunpack.c.l.b16 %v3825
    %v4501 = vunpack.c.h.b16 %v3825
    %v4502 = vunpack.c.l.b16 %v3826
    %v4503 = vunpack.c.h.b16 %v3826
    %v4504 = vunpack.c.l.b16 %v3827
    %v4505 = vunpack.c.h.b16 %v3827
    %v4506 = vunpack.c.l.b16 %v3828
    %v4507 = vunpack.c.h.b16 %v3828
    %v4508 = vunpack.c.l.b16 %v3829
    %v4509 = vunpack.c.h.b16 %v3829
    %v4510 = vunpack.c.l.b16 %v3830
    %v4511 = vunpack.c.h.b16 %v3830
    %v4512 = vunpack.c.l.b16 %v3831
    %v4513 = vunpack.c.h.b16 %v3831
    %v4514 = vunpack.c.l.b16 %v3832
    %v4515 = vunpack.c.h.b16 %v3832
    %v4516 = vunpack.c.l.b16 %v3833
    %v4517 = vunpack.c.h.b16 %v3833
    %v4518 = vunpack.c.l.b16 %v3834
    %v4519 = vunpack.c.h.b16 %v3834
    %v4520 = vunpack.c.l.b16 %v3835
    %v4521 = vunpack.c.h.b16 %v3835
    %v4522 = vunpack.c.l.b16 %v3836
    %v4523 = vunpack.c.h.b16 %v3836
    %v4524 = vunpack.c.l.b16 %v3837
    %v4525 = vunpack.c.h.b16 %v3837
    %v4526 = vunpack.c.l.b16 %v3838
    %v4527 = vunpack.c.h.b16 %v3838
    %v4528 = vunpack.c.l.b16 %v3839
    %v4529 = vunpack.c.h.b16 %v3839
    %v4530 = vunpack.c.l.b16 %v3840
    %v4531 = vunpack.c.h.b16 %v3840
    %v4532 = vunpack.c.l.b16 %v3841
    %v4533 = vunpack.c.h.b16 %v3841
    %v4534 = vunpack.c.l.b16 %v3842
    %v4535 = vunpack.c.h.b16 %v3842
    %v4536 = vunpack.c.l.b16 %v3843
    %v4537 = vunpack.c.h.b16 %v3843
    %v4538 = vunpack.c.l.b16 %v3844
    %v4539 = vunpack.c.h.b16 %v3844
    %v4540 = vunpack.c.l.b16 %v3845
    %v4541 = vunpack.c.h.b16 %v3845
    %v4542 = vunpack.c.l.b16 %v3846
    %v4543 = vunpack.c.h.b16 %v3846
    %v4544 = vunpack.c.l.b16 %v3847
    %v4545 = vunpack.c.h.b16 %v3847
    %v4546 = vunpack.c.l.b16 %v3848
    %v4547 = vunpack.c.h.b16 %v3848
    %v4548 = vunpack.c.l.b16 %v3849
    %v4549 = vunpack.c.h.b16 %v3849
    %v4550 = vunpack.c.l.b16 %v3850
    %v4551 = vunpack.c.h.b16 %v3850
    %v4552 = vunpack.c.l.b16 %v3851
    %v4553 = vunpack.c.h.b16 %v3851
    %v4554 = vunpack.c.l.b16 %v3852
    %v4555 = vunpack.c.h.b16 %v3852
    %v4556 = vunpack.c.l.b16 %v3853
    %v4557 = vunpack.c.h.b16 %v3853
    %v4558 = vunpack.c.l.b16 %v3854
    %v4559 = vunpack.c.h.b16 %v3854
    %v4560 = vunpack.c.l.b16 %v3855
    %v4561 = vunpack.c.h.b16 %v3855
    %v4562 = vunpack.c.l.b16 %v3856
    %v4563 = vunpack.c.h.b16 %v3856
    %v4564 = vunpack.c.l.b16 %v3857
    %v4565 = vunpack.c.h.b16 %v3857
    %v4566 = vunpack.c.l.b16 %v3858
    %v4567 = vunpack.c.h.b16 %v3858
    %v4568 = vunpack.c.l.b16 %v3859
    %v4569 = vunpack.c.h.b16 %v3859
    %v4570 = vunpack.c.l.b16 %v3860
    %v4571 = vunpack.c.h.b16 %v3860
    %v4572 = vunpack.c.l.b16 %v3861
    %v4573 = vunpack.c.h.b16 %v3861
    %v4574 = vunpack.c.l.b16 %v3862
    %v4575 = vunpack.c.h.b16 %v3862
    %v4576 = vunpack.c.l.b16 %v3863
    %v4577 = vunpack.c.h.b16 %v3863
    %v4578 = vunpack.c.l.b16 %v3864
    %v4579 = vunpack.c.h.b16 %v3864
    %v4580 = vunpack.c.l.b16 %v3865
    %v4581 = vunpack.c.h.b16 %v3865
    %v4582 = vunpack.c.l.b16 %v3866
    %v4583 = vunpack.c.h.b16 %v3866
    %v4584 = vunpack.c.l.b16 %v3867
    %v4585 = vunpack.c.h.b16 %v3867
    %v4586 = vunpack.c.l.b16 %v3868
    %v4587 = vunpack.c.h.b16 %v3868
    %v4588 = vunpack.c.l.b16 %v3869
    %v4589 = vunpack.c.h.b16 %v3869
    %v4590 = vunpack.c.l.b16 %v3870
    %v4591 = vunpack.c.h.b16 %v3870
    %v4592 = vunpack.c.l.b16 %v3871
    %v4593 = vunpack.c.h.b16 %v3871
    %v4594 = vunpack.c.l.b16 %v3872
    %v4595 = vunpack.c.h.b16 %v3872
    %v4596 = vunpack.c.l.b16 %v3873
    %v4597 = vunpack.c.h.b16 %v3873
    %v4598 = vunpack.c.l.b16 %v3874
    %v4599 = vunpack.c.h.b16 %v3874
    %v4600 = vunpack.c.l.b16 %v3875
    %v4601 = vunpack.c.h.b16 %v3875
    %v4602 = vunpack.c.l.b16 %v3876
    %v4603 = vunpack.c.h.b16 %v3876
    %v4604 = vunpack.c.l.b16 %v3877
    %v4605 = vunpack.c.h.b16 %v3877
    %v4606 = vunpack.c.l.b16 %v3878
    %v4607 = vunpack.c.h.b16 %v3878
    %v4608 = vunpack.c.l.b16 %v3879
    %v4609 = vunpack.c.h.b16 %v3879
    %v4610 = vunpack.c.l.b16 %v3880
    %v4611 = vunpack.c.h.b16 %v3880
    %v4612 = vunpack.c.l.b16 %v3881
    %v4613 = vunpack.c.h.b16 %v3881
    %v4614 = vunpack.c.l.b16 %v3882
    %v4615 = vunpack.c.h.b16 %v3882
    %v4616 = vunpack.c.l.b16 %v3883
    %v4617 = vunpack.c.h.b16 %v3883
    %v4618 = vunpack.c.l.b16 %v3884
    %v4619 = vunpack.c.h.b16 %v3884
    %v4620 = vunpack.c.l.b16 %v3885
    %v4621 = vunpack.c.h.b16 %v3885
    %v4622 = vunpack.c.l.b16 %v3886
    %v4623 = vunpack.c.h.b16 %v3886
    %v4624 = vunpack.c.l.b16 %v3887
    %v4625 = vunpack.c.h.b16 %v3887
    %v4626 = vunpack.c.l.b16 %v3888
    %v4627 = vunpack.c.h.b16 %v3888
    %v4628 = vunpack.c.l.b16 %v3889
    %v4629 = vunpack.c.h.b16 %v3889
    %v4630 = vunpack.c.l.b16 %v3890
    %v4631 = vunpack.c.h.b16 %v3890
    %v4632 = vunpack.c.l.b16 %v3891
    %v4633 = vunpack.c.h.b16 %v3891
    %v4634 = vunpack.c.l.b16 %v3892
    %v4635 = vunpack.c.h.b16 %v3892
    %v4636 = vunpack.c.l.b16 %v3893
    %v4637 = vunpack.c.h.b16 %v3893
    %v4638 = vunpack.c.l.b16 %v3894
    %v4639 = vunpack.c.h.b16 %v3894
    %v4640 = vunpack.c.l.b16 %v3895
    %v4641 = vunpack.c.h.b16 %v3895
    %v4642 = vunpack.c.l.b16 %v3896
    %v4643 = vunpack.c.h.b16 %v3896
    %v4644 = vunpack.c.l.b16 %v3897
    %v4645 = vunpack.c.h.b16 %v3897
    %v4646 = vunpack.c.l.b16 %v3898
    %v4647 = vunpack.c.h.b16 %v3898
    %v4648 = vunpack.c.l.b16 %v3899
    %v4649 = vunpack.c.h.b16 %v3899
    %v4650 = vunpack.c.l.b16 %v3900
    %v4651 = vunpack.c.h.b16 %v3900
    %v4652 = vunpack.c.l.b16 %v3901
    %v4653 = vunpack.c.h.b16 %v3901
    %v4654 = vunpack.c.l.b16 %v3902
    %v4655 = vunpack.c.h.b16 %v3902
    %v4656 = vunpack.c.l.b16 %v3903
    %v4657 = vunpack.c.h.b16 %v3903
    %v4658 = vunpack.c.l.b16 %v3904
    %v4659 = vunpack.c.h.b16 %v3904
    %v4660 = vunpack.c.l.b16 %v3905
    %v4661 = vunpack.c.h.b16 %v3905
    %v4662 = vunpack.c.l.b16 %v3906
    %v4663 = vunpack.c.h.b16 %v3906
    %v4664 = vunpack.c.l.b16 %v3907
    %v4665 = vunpack.c.h.b16 %v3907
    %v4666 = vunpack.c.l.b16 %v3908
    %v4667 = vunpack.c.h.b16 %v3908
    %v4668 = vunpack.c.l.b16 %v3909
    %v4669 = vunpack.c.h.b16 %v3909
    %v4670 = vunpack.c.l.b16 %v3910
    %v4671 = vunpack.c.h.b16 %v3910
    %v4672 = vunpack.c.l.b16 %v3911
    %v4673 = vunpack.c.h.b16 %v3911
    %v4674 = vunpack.c.l.b16 %v3912
    %v4675 = vunpack.c.h.b16 %v3912
    %v4676 = vunpack.c.l.b16 %v3913
    %v4677 = vunpack.c.h.b16 %v3913
    %v4678 = vunpack.c.l.b16 %v3914
    %v4679 = vunpack.c.h.b16 %v3914
    %v4680 = vunpack.c.l.b16 %v3915
    %v4681 = vunpack.c.h.b16 %v3915
    %v4682 = vunpack.c.l.b16 %v3916
    %v4683 = vunpack.c.h.b16 %v3916
    %v4684 = vunpack.c.l.b16 %v3917
    %v4685 = vunpack.c.h.b16 %v3917
    %v4686 = vunpack.c.l.b16 %v3918
    %v4687 = vunpack.c.h.b16 %v3918
    %v4688 = vunpack.c.l.b16 %v3919
    %v4689 = vunpack.c.h.b16 %v3919
    %v4690 = vunpack.c.l.b16 %v3920
    %v4691 = vunpack.c.h.b16 %v3920
    %v4692 = vunpack.c.l.b16 %v3921
    %v4693 = vunpack.c.h.b16 %v3921
    %v4694 = vunpack.c.l.b16 %v3922
    %v4695 = vunpack.c.h.b16 %v3922
    %v4696 = vunpack.c.l.b16 %v3923
    %v4697 = vunpack.c.h.b16 %v3923
    %v4698 = vunpack.c.l.b16 %v3924
    %v4699 = vunpack.c.h.b16 %v3924
    %v4700 = vunpack.c.l.b16 %v3925
    %v4701 = vunpack.c.h.b16 %v3925
    %v4702 = vunpack.c.l.b16 %v3926
    %v4703 = vunpack.c.h.b16 %v3926
    %v4704 = vunpack.c.l.b16 %v3927
    %v4705 = vunpack.c.h.b16 %v3927
    %v4706 = vpack.c.b16 %v4198, %v4194
    %v4707 = vpack.c.b16 %v4199, %v4195
    %v4708 = vpack.c.b16 %v4200, %v4196
    %v4709 = vpack.c.b16 %v4201, %v4197
    %v4710 = vpack.c.b16 %v4206, %v4202
    %v4711 = vpack.c.b16 %v4207, %v4203
    %v4712 = vpack.c.b16 %v4208, %v4204
    %v4713 = vpack.c.b16 %v4209, %v4205
    %v4714 = vpack.c.b16 %v4214, %v4210
    %v4715 = vpack.c.b16 %v4215, %v4211
    %v4716 = vpack.c.b16 %v4216, %v4212
    %v4717 = vpack.c.b16 %v4217, %v4213
    %v4718 = vpack.c.b16 %v4222, %v4218
    %v4719 = vpack.c.b16 %v4223, %v4219
    %v4720 = vpack.c.b16 %v4224, %v4220
    %v4721 = vpack.c.b16 %v4225, %v4221
    %v4722 = vpack.c.b16 %v4230, %v4226
    %v4723 = vpack.c.b16 %v4231, %v4227
    %v4724 = vpack.c.b16 %v4232, %v4228
    %v4725 = vpack.c.b16 %v4233, %v4229
    %v4726 = vpack.c.b16 %v4238, %v4234
    %v4727 = vpack.c.b16 %v4239, %v4235
    %v4728 = vpack.c.b16 %v4240, %v4236
    %v4729 = vpack.c.b16 %v4241, %v4237
    %v4730 = vpack.c.b16 %v4246, %v4242
    %v4731 = vpack.c.b16 %v4247, %v4243
    %v4732 = vpack.c.b16 %v4248, %v4244
    %v4733 = vpack.c.b16 %v4249, %v4245
    %v4734 = vpack.c.b16 %v4254, %v4250
    %v4735 = vpack.c.b16 %v4255, %v4251
    %v4736 = vpack.c.b16 %v4256, %v4252
    %v4737 = vpack.c.b16 %v4257, %v4253
    %v4738 = vpack.c.b16 %v4262, %v4258
    %v4739 = vpack.c.b16 %v4263, %v4259
    %v4740 = vpack.c.b16 %v4264, %v4260
    %v4741 = vpack.c.b16 %v4265, %v4261
    %v4742 = vpack.c.b16 %v4270, %v4266
    %v4743 = vpack.c.b16 %v4271, %v4267
    %v4744 = vpack.c.b16 %v4272, %v4268
    %v4745 = vpack.c.b16 %v4273, %v4269
    %v4746 = vpack.c.b16 %v4278, %v4274
    %v4747 = vpack.c.b16 %v4279, %v4275
    %v4748 = vpack.c.b16 %v4280, %v4276
    %v4749 = vpack.c.b16 %v4281, %v4277
    %v4750 = vpack.c.b16 %v4286, %v4282
    %v4751 = vpack.c.b16 %v4287, %v4283
    %v4752 = vpack.c.b16 %v4288, %v4284
    %v4753 = vpack.c.b16 %v4289, %v4285
    %v4754 = vpack.c.b16 %v4294, %v4290
    %v4755 = vpack.c.b16 %v4295, %v4291
    %v4756 = vpack.c.b16 %v4296, %v4292
    %v4757 = vpack.c.b16 %v4297, %v4293
    %v4758 = vpack.c.b16 %v4302, %v4298
    %v4759 = vpack.c.b16 %v4303, %v4299
    %v4760 = vpack.c.b16 %v4304, %v4300
    %v4761 = vpack.c.b16 %v4305, %v4301
    %v4762 = vpack.c.b16 %v4310, %v4306
    %v4763 = vpack.c.b16 %v4311, %v4307
    %v4764 = vpack.c.b16 %v4312, %v4308
    %v4765 = vpack.c.b16 %v4313, %v4309
    %v4766 = vpack.c.b16 %v4318, %v4314
    %v4767 = vpack.c.b16 %v4319, %v4315
    %v4768 = vpack.c.b16 %v4320, %v4316
    %v4769 = vpack.c.b16 %v4321, %v4317
    %v4770 = vpack.c.b16 %v4326, %v4322
    %v4771 = vpack.c.b16 %v4327, %v4323
    %v4772 = vpack.c.b16 %v4328, %v4324
    %v4773 = vpack.c.b16 %v4329, %v4325
    %v4774 = vpack.c.b16 %v4334, %v4330
    %v4775 = vpack.c.b16 %v4335, %v4331
    %v4776 = vpack.c.b16 %v4336, %v4332
    %v4777 = vpack.c.b16 %v4337, %v4333
    %v4778 = vpack.c.b16 %v4342, %v4338
    %v4779 = vpack.c.b16 %v4343, %v4339
    %v4780 = vpack.c.b16 %v4344, %v4340
    %v4781 = vpack.c.b16 %v4345, %v4341
    %v4782 = vpack.c.b16 %v4350, %v4346
    %v4783 = vpack.c.b16 %v4351, %v4347
    %v4784 = vpack.c.b16 %v4352, %v4348
    %v4785 = vpack.c.b16 %v4353, %v4349
    %v4786 = vpack.c.b16 %v4358, %v4354
    %v4787 = vpack.c.b16 %v4359, %v4355
    %v4788 = vpack.c.b16 %v4360, %v4356
    %v4789 = vpack.c.b16 %v4361, %v4357
    %v4790 = vpack.c.b16 %v4366, %v4362
    %v4791 = vpack.c.b16 %v4367, %v4363
    %v4792 = vpack.c.b16 %v4368, %v4364
    %v4793 = vpack.c.b16 %v4369, %v4365
    %v4794 = vpack.c.b16 %v4374, %v4370
    %v4795 = vpack.c.b16 %v4375, %v4371
    %v4796 = vpack.c.b16 %v4376, %v4372
    %v4797 = vpack.c.b16 %v4377, %v4373
    %v4798 = vpack.c.b16 %v4382, %v4378
    %v4799 = vpack.c.b16 %v4383, %v4379
    %v4800 = vpack.c.b16 %v4384, %v4380
    %v4801 = vpack.c.b16 %v4385, %v4381
    %v4802 = vpack.c.b16 %v4390, %v4386
    %v4803 = vpack.c.b16 %v4391, %v4387
    %v4804 = vpack.c.b16 %v4392, %v4388
    %v4805 = vpack.c.b16 %v4393, %v4389
    %v4806 = vpack.c.b16 %v4398, %v4394
    %v4807 = vpack.c.b16 %v4399, %v4395
    %v4808 = vpack.c.b16 %v4400, %v4396
    %v4809 = vpack.c.b16 %v4401, %v4397
    %v4810 = vpack.c.b16 %v4406, %v4402
    %v4811 = vpack.c.b16 %v4407, %v4403
    %v4812 = vpack.c.b16 %v4408, %v4404
    %v4813 = vpack.c.b16 %v4409, %v4405
    %v4814 = vpack.c.b16 %v4414, %v4410
    %v4815 = vpack.c.b16 %v4415, %v4411
    %v4816 = vpack.c.b16 %v4416, %v4412
    %v4817 = vpack.c.b16 %v4417, %v4413
    %v4818 = vpack.c.b16 %v4422, %v4418
    %v4819 = vpack.c.b16 %v4423, %v4419
    %v4820 = vpack.c.b16 %v4424, %v4420
    %v4821 = vpack.c.b16 %v4425, %v4421
    %v4822 = vpack.c.b16 %v4430, %v4426
    %v4823 = vpack.c.b16 %v4431, %v4427
    %v4824 = vpack.c.b16 %v4432, %v4428
    %v4825 = vpack.c.b16 %v4433, %v4429
    %v4826 = vpack.c.b16 %v4438, %v4434
    %v4827 = vpack.c.b16 %v4439, %v4435
    %v4828 = vpack.c.b16 %v4440, %v4436
    %v4829 = vpack.c.b16 %v4441, %v4437
    %v4830 = vpack.c.b16 %v4446, %v4442
    %v4831 = vpack.c.b16 %v4447, %v4443
    %v4832 = vpack.c.b16 %v4448, %v4444
    %v4833 = vpack.c.b16 %v4449, %v4445
    %v4834 = vpack.c.b16 %v4454, %v4450
    %v4835 = vpack.c.b16 %v4455, %v4451
    %v4836 = vpack.c.b16 %v4456, %v4452
    %v4837 = vpack.c.b16 %v4457, %v4453
    %v4838 = vpack.c.b16 %v4462, %v4458
    %v4839 = vpack.c.b16 %v4463, %v4459
    %v4840 = vpack.c.b16 %v4464, %v4460
    %v4841 = vpack.c.b16 %v4465, %v4461
    %v4842 = vpack.c.b16 %v4470, %v4466
    %v4843 = vpack.c.b16 %v4471, %v4467
    %v4844 = vpack.c.b16 %v4472, %v4468
    %v4845 = vpack.c.b16 %v4473, %v4469
    %v4846 = vpack.c.b16 %v4478, %v4474
    %v4847 = vpack.c.b16 %v4479, %v4475
    %v4848 = vpack.c.b16 %v4480, %v4476
    %v4849 = vpack.c.b16 %v4481, %v4477
    %v4850 = vpack.c.b16 %v4486, %v4482
    %v4851 = vpack.c.b16 %v4487, %v4483
    %v4852 = vpack.c.b16 %v4488, %v4484
    %v4853 = vpack.c.b16 %v4489, %v4485
    %v4854 = vpack.c.b16 %v4494, %v4490
    %v4855 = vpack.c.b16 %v4495, %v4491
    %v4856 = vpack.c.b16 %v4496, %v4492
    %v4857 = vpack.c.b16 %v4497, %v4493
    %v4858 = vpack.c.b16 %v4502, %v4498
    %v4859 = vpack.c.b16 %v4503, %v4499
    %v4860 = vpack.c.b16 %v4504, %v4500
    %v4861 = vpack.c.b16 %v4505, %v4501
    %v4862 = vpack.c.b16 %v4510, %v4506
    %v4863 = vpack.c.b16 %v4511, %v4507
    %v4864 = vpack.c.b16 %v4512, %v4508
    %v4865 = vpack.c.b16 %v4513, %v4509
    %v4866 = vpack.c.b16 %v4518, %v4514
    %v4867 = vpack.c.b16 %v4519, %v4515
    %v4868 = vpack.c.b16 %v4520, %v4516
    %v4869 = vpack.c.b16 %v4521, %v4517
    %v4870 = vpack.c.b16 %v4526, %v4522
    %v4871 = vpack.c.b16 %v4527, %v4523
    %v4872 = vpack.c.b16 %v4528, %v4524
    %v4873 = vpack.c.b16 %v4529, %v4525
    %v4874 = vpack.c.b16 %v4534, %v4530
    %v4875 = vpack.c.b16 %v4535, %v4531
    %v4876 = vpack.c.b16 %v4536, %v4532
    %v4877 = vpack.c.b16 %v4537, %v4533
    %v4878 = vpack.c.b16 %v4542, %v4538
    %v4879 = vpack.c.b16 %v4543, %v4539
    %v4880 = vpack.c.b16 %v4544, %v4540
    %v4881 = vpack.c.b16 %v4545, %v4541
    %v4882 = vpack.c.b16 %v4550, %v4546
    %v4883 = vpack.c.b16 %v4551, %v4547
    %v4884 = vpack.c.b16 %v4552, %v4548
    %v4885 = vpack.c.b16 %v4553, %v4549
    %v4886 = vpack.c.b16 %v4558, %v4554
    %v4887 = vpack.c.b16 %v4559, %v4555
    %v4888 = vpack.c.b16 %v4560, %v4556
    %v4889 = vpack.c.b16 %v4561, %v4557
    %v4890 = vpack.c.b16 %v4566, %v4562
    %v4891 = vpack.c.b16 %v4567, %v4563
    %v4892 = vpack.c.b16 %v4568, %v4564
    %v4893 = vpack.c.b16 %v4569, %v4565
    %v4894 = vpack.c.b16 %v4574, %v4570
    %v4895 = vpack.c.b16 %v4575, %v4571
    %v4896 = vpack.c.b16 %v4576, %v4572
    %v4897 = vpack.c.b16 %v4577, %v4573
    %v4898 = vpack.c.b16 %v4582, %v4578
    %v4899 = vpack.c.b16 %v4583, %v4579
    %v4900 = vpack.c.b16 %v4584, %v4580
    %v4901 = vpack.c.b16 %v4585, %v4581
    %v4902 = vpack.c.b16 %v4590, %v4586
    %v4903 = vpack.c.b16 %v4591, %v4587
    %v4904 = vpack.c.b16 %v4592, %v4588
    %v4905 = vpack.c.b16 %v4593, %v4589
    %v4906 = vpack.c.b16 %v4598, %v4594
    %v4907 = vpack.c.b16 %v4599, %v4595
    %v4908 = vpack.c.b16 %v4600, %v4596
    %v4909 = vpack.c.b16 %v4601, %v4597
    %v4910 = vpack.c.b16 %v4606, %v4602
    %v4911 = vpack.c.b16 %v4607, %v4603
    %v4912 = vpack.c.b16 %v4608, %v4604
    %v4913 = vpack.c.b16 %v4609, %v4605
    %v4914 = vpack.c.b16 %v4614, %v4610
    %v4915 = vpack.c.b16 %v4615, %v4611
    %v4916 = vpack.c.b16 %v4616, %v4612
    %v4917 = vpack.c.b16 %v4617, %v4613
    %v4918 = vpack.c.b16 %v4622, %v4618
    %v4919 = vpack.c.b16 %v4623, %v4619
    %v4920 = vpack.c.b16 %v4624, %v4620
    %v4921 = vpack.c.b16 %v4625, %v4621
    %v4922 = vpack.c.b16 %v4630, %v4626
    %v4923 = vpack.c.b16 %v4631, %v4627
    %v4924 = vpack.c.b16 %v4632, %v4628
    %v4925 = vpack.c.b16 %v4633, %v4629
    %v4926 = vpack.c.b16 %v4638, %v4634
    %v4927 = vpack.c.b16 %v4639, %v4635
    %v4928 = vpack.c.b16 %v4640, %v4636
    %v4929 = vpack.c.b16 %v4641, %v4637
    %v4930 = vpack.c.b16 %v4646, %v4642
    %v4931 = vpack.c.b16 %v4647, %v4643
    %v4932 = vpack.c.b16 %v4648, %v4644
    %v4933 = vpack.c.b16 %v4649, %v4645
    %v4934 = vpack.c.b16 %v4654, %v4650
    %v4935 = vpack.c.b16 %v4655, %v4651
    %v4936 = vpack.c.b16 %v4656, %v4652
    %v4937 = vpack.c.b16 %v4657, %v4653
    %v4938 = vpack.c.b16 %v4662, %v4658
    %v4939 = vpack.c.b16 %v4663, %v4659
    %v4940 = vpack.c.b16 %v4664, %v4660
    %v4941 = vpack.c.b16 %v4665, %v4661
    %v4942 = vpack.c.b16 %v4670, %v4666
    %v4943 = vpack.c.b16 %v4671, %v4667
    %v4944 = vpack.c.b16 %v4672, %v4668
    %v4945 = vpack.c.b16 %v4673, %v4669
    %v4946 = vpack.c.b16 %v4678, %v4674
    %v4947 = vpack.c.b16 %v4679, %v4675
    %v4948 = vpack.c.b16 %v4680, %v4676
    %v4949 = vpack.c.b16 %v4681, %v4677
    %v4950 = vpack.c.b16 %v4686, %v4682
    %v4951 = vpack.c.b16 %v4687, %v4683
    %v4952 = vpack.c.b16 %v4688, %v4684
    %v4953 = vpack.c.b16 %v4689, %v4685
    %v4954 = vpack.c.b16 %v4694, %v4690
    %v4955 = vpack.c.b16 %v4695, %v4691
    %v4956 = vpack.c.b16 %v4696, %v4692
    %v4957 = vpack.c.b16 %v4697, %v4693
    %v4958 = vpack.c.b16 %v4702, %v4698
    %v4959 = vpack.c.b16 %v4703, %v4699
    %v4960 = vpack.c.b16 %v4704, %v4700
    %v4961 = vpack.c.b16 %v4705, %v4701
    %5218 = vmatpush.bf16.msra.mxu0 %v4734
    %5219 = vmatpush.bf16.msra.mxu0 %v4730
    %5220 = vmatpush.bf16.msra.mxu0 %v4726
    %5221 = vmatpush.bf16.msra.mxu0 %v4722
    %5222 = vmatpush.bf16.msra.mxu0 %v4718
    %5223 = vmatpush.bf16.msra.mxu0 %v4714
    %5224 = vmatpush.bf16.msra.mxu0 %v4710
    %5225 = vmatpush.bf16.msra.mxu0 %v4706
    %5226 = vmatmul.bf16.gmra.mxu0 %v3664
    %v5227 = vpop.f32.mrf.mxu0
    %v5228 = vadd.f32 %v3930, %v5227
    %v5229 = vpop.f32.mrf.mxu0
    %v5230 = vadd.f32 %v3930, %v5229
    %5231 = vdwg.mxu0
    %5232 = vmatpush.bf16.msra.mxu0 %v4766
    %5233 = vmatpush.bf16.msra.mxu0 %v4762
    %5234 = vmatpush.bf16.msra.mxu0 %v4758
    %5235 = vmatpush.bf16.msra.mxu0 %v4754
    %5236 = vmatpush.bf16.msra.mxu0 %v4750
    %5237 = vmatpush.bf16.msra.mxu0 %v4746
    %5238 = vmatpush.bf16.msra.mxu0 %v4742
    %5239 = vmatpush.bf16.msra.mxu0 %v4738
    %5240 = vmatmul.bf16.gmra.mxu0 %v3665
    %v5241 = vpop.f32.mrf.mxu0
    %v5242 = vadd.f32 %v5228, %v5241
    %v5243 = vpop.f32.mrf.mxu0
    %v5244 = vadd.f32 %v5230, %v5243
    %5245 = vdwg.mxu0
    %5246 = vmatpush.bf16.msra.mxu0 %v4798
    %5247 = vmatpush.bf16.msra.mxu0 %v4794
    %5248 = vmatpush.bf16.msra.mxu0 %v4790
    %5249 = vmatpush.bf16.msra.mxu0 %v4786
    %5250 = vmatpush.bf16.msra.mxu0 %v4782
    %5251 = vmatpush.bf16.msra.mxu0 %v4778
    %5252 = vmatpush.bf16.msra.mxu0 %v4774
    %5253 = vmatpush.bf16.msra.mxu0 %v4770
    %5254 = vmatmul.bf16.gmra.mxu0 %v3666
    %v5255 = vpop.f32.mrf.mxu0
    %v5256 = vadd.f32 %v5242, %v5255
    %v5257 = vpop.f32.mrf.mxu0
    %v5258 = vadd.f32 %v5244, %v5257
    %5259 = vdwg.mxu0
    %5260 = vmatpush.bf16.msra.mxu0 %v4830
    %5261 = vmatpush.bf16.msra.mxu0 %v4826
    %5262 = vmatpush.bf16.msra.mxu0 %v4822
    %5263 = vmatpush.bf16.msra.mxu0 %v4818
    %5264 = vmatpush.bf16.msra.mxu0 %v4814
    %5265 = vmatpush.bf16.msra.mxu0 %v4810
    %5266 = vmatpush.bf16.msra.mxu0 %v4806
    %5267 = vmatpush.bf16.msra.mxu0 %v4802
    %5268 = vmatmul.bf16.gmra.mxu0 %v3667
    %v5269 = vpop.f32.mrf.mxu0
    %v5270 = vadd.f32 %v5256, %v5269
    %v5271 = vpop.f32.mrf.mxu0
    %v5272 = vadd.f32 %v5258, %v5271
    %5273 = vdwg.mxu0
    %5274 = vmatpush.bf16.msra.mxu0 %v4862
    %5275 = vmatpush.bf16.msra.mxu0 %v4858
    %5276 = vmatpush.bf16.msra.mxu0 %v4854
    %5277 = vmatpush.bf16.msra.mxu0 %v4850
    %5278 = vmatpush.bf16.msra.mxu0 %v4846
    %5279 = vmatpush.bf16.msra.mxu0 %v4842
    %5280 = vmatpush.bf16.msra.mxu0 %v4838
    %5281 = vmatpush.bf16.msra.mxu0 %v4834
    %5282 = vmatmul.bf16.gmra.mxu0 %v3668
    %v5283 = vpop.f32.mrf.mxu0
    %v5284 = vadd.f32 %v5270, %v5283
    %v5285 = vpop.f32.mrf.mxu0
    %v5286 = vadd.f32 %v5272, %v5285
    %5287 = vdwg.mxu0
    %5288 = vmatpush.bf16.msra.mxu0 %v4894
    %5289 = vmatpush.bf16.msra.mxu0 %v4890
    %5290 = vmatpush.bf16.msra.mxu0 %v4886
    %5291 = vmatpush.bf16.msra.mxu0 %v4882
    %5292 = vmatpush.bf16.msra.mxu0 %v4878
    %5293 = vmatpush.bf16.msra.mxu0 %v4874
    %5294 = vmatpush.bf16.msra.mxu0 %v4870
    %5295 = vmatpush.bf16.msra.mxu0 %v4866
    %5296 = vmatmul.bf16.gmra.mxu0 %v3669
    %v5297 = vpop.f32.mrf.mxu0
    %v5298 = vadd.f32 %v5284, %v5297
    %v5299 = vpop.f32.mrf.mxu0
    %v5300 = vadd.f32 %v5286, %v5299
    %5301 = vdwg.mxu0
    %5302 = vmatpush.bf16.msra.mxu0 %v4926
    %5303 = vmatpush.bf16.msra.mxu0 %v4922
    %5304 = vmatpush.bf16.msra.mxu0 %v4918
    %5305 = vmatpush.bf16.msra.mxu0 %v4914
    %5306 = vmatpush.bf16.msra.mxu0 %v4910
    %5307 = vmatpush.bf16.msra.mxu0 %v4906
    %5308 = vmatpush.bf16.msra.mxu0 %v4902
    %5309 = vmatpush.bf16.msra.mxu0 %v4898
    %5310 = vmatmul.bf16.gmra.mxu0 %v3670
    %v5311 = vpop.f32.mrf.mxu0
    %v5312 = vadd.f32 %v5298, %v5311
    %v5313 = vpop.f32.mrf.mxu0
    %v5314 = vadd.f32 %v5300, %v5313
    %5315 = vdwg.mxu0
    %5316 = vmatpush.bf16.msra.mxu0 %v4958
    %5317 = vmatpush.bf16.msra.mxu0 %v4954
    %5318 = vmatpush.bf16.msra.mxu0 %v4950
    %5319 = vmatpush.bf16.msra.mxu0 %v4946
    %5320 = vmatpush.bf16.msra.mxu0 %v4942
    %5321 = vmatpush.bf16.msra.mxu0 %v4938
    %5322 = vmatpush.bf16.msra.mxu0 %v4934
    %5323 = vmatpush.bf16.msra.mxu0 %v4930
    %5324 = vmatmul.bf16.gmra.mxu0 %v3671
    %v5325 = vpop.f32.mrf.mxu0
    %v5326 = vadd.f32 %v5312, %v5325
    %v5327 = vpop.f32.mrf.mxu0
    %v5328 = vadd.f32 %v5314, %v5327
    %5329 = vdwg.mxu0
    %5330 = vmatpush.bf16.msra.mxu0 %v4735
    %5331 = vmatpush.bf16.msra.mxu0 %v4731
    %5332 = vmatpush.bf16.msra.mxu0 %v4727
    %5333 = vmatpush.bf16.msra.mxu0 %v4723
    %5334 = vmatpush.bf16.msra.mxu0 %v4719
    %5335 = vmatpush.bf16.msra.mxu0 %v4715
    %5336 = vmatpush.bf16.msra.mxu0 %v4711
    %5337 = vmatpush.bf16.msra.mxu0 %v4707
    %5338 = vmatmul.bf16.gmra.mxu0 %v3664
    %v5339 = vpop.f32.mrf.mxu0
    %v5340 = vadd.f32 %v3931, %v5339
    %v5341 = vpop.f32.mrf.mxu0
    %v5342 = vadd.f32 %v3931, %v5341
    %5343 = vdwg.mxu0
    %5344 = vmatpush.bf16.msra.mxu0 %v4767
    %5345 = vmatpush.bf16.msra.mxu0 %v4763
    %5346 = vmatpush.bf16.msra.mxu0 %v4759
    %5347 = vmatpush.bf16.msra.mxu0 %v4755
    %5348 = vmatpush.bf16.msra.mxu0 %v4751
    %5349 = vmatpush.bf16.msra.mxu0 %v4747
    %5350 = vmatpush.bf16.msra.mxu0 %v4743
    %5351 = vmatpush.bf16.msra.mxu0 %v4739
    %5352 = vmatmul.bf16.gmra.mxu0 %v3665
    %v5353 = vpop.f32.mrf.mxu0
    %v5354 = vadd.f32 %v5340, %v5353
    %v5355 = vpop.f32.mrf.mxu0
    %v5356 = vadd.f32 %v5342, %v5355
    %5357 = vdwg.mxu0
    %5358 = vmatpush.bf16.msra.mxu0 %v4799
    %5359 = vmatpush.bf16.msra.mxu0 %v4795
    %5360 = vmatpush.bf16.msra.mxu0 %v4791
    %5361 = vmatpush.bf16.msra.mxu0 %v4787
    %5362 = vmatpush.bf16.msra.mxu0 %v4783
    %5363 = vmatpush.bf16.msra.mxu0 %v4779
    %5364 = vmatpush.bf16.msra.mxu0 %v4775
    %5365 = vmatpush.bf16.msra.mxu0 %v4771
    %5366 = vmatmul.bf16.gmra.mxu0 %v3666
    %v5367 = vpop.f32.mrf.mxu0
    %v5368 = vadd.f32 %v5354, %v5367
    %v5369 = vpop.f32.mrf.mxu0
    %v5370 = vadd.f32 %v5356, %v5369
    %5371 = vdwg.mxu0
    %5372 = vmatpush.bf16.msra.mxu0 %v4831
    %5373 = vmatpush.bf16.msra.mxu0 %v4827
    %5374 = vmatpush.bf16.msra.mxu0 %v4823
    %5375 = vmatpush.bf16.msra.mxu0 %v4819
    %5376 = vmatpush.bf16.msra.mxu0 %v4815
    %5377 = vmatpush.bf16.msra.mxu0 %v4811
    %5378 = vmatpush.bf16.msra.mxu0 %v4807
    %5379 = vmatpush.bf16.msra.mxu0 %v4803
    %5380 = vmatmul.bf16.gmra.mxu0 %v3667
    %v5381 = vpop.f32.mrf.mxu0
    %v5382 = vadd.f32 %v5368, %v5381
    %v5383 = vpop.f32.mrf.mxu0
    %v5384 = vadd.f32 %v5370, %v5383
    %5385 = vdwg.mxu0
    %5386 = vmatpush.bf16.msra.mxu0 %v4863
    %5387 = vmatpush.bf16.msra.mxu0 %v4859
    %5388 = vmatpush.bf16.msra.mxu0 %v4855
    %5389 = vmatpush.bf16.msra.mxu0 %v4851
    %5390 = vmatpush.bf16.msra.mxu0 %v4847
    %5391 = vmatpush.bf16.msra.mxu0 %v4843
    %5392 = vmatpush.bf16.msra.mxu0 %v4839
    %5393 = vmatpush.bf16.msra.mxu0 %v4835
    %5394 = vmatmul.bf16.gmra.mxu0 %v3668
    %v5395 = vpop.f32.mrf.mxu0
    %v5396 = vadd.f32 %v5382, %v5395
    %v5397 = vpop.f32.mrf.mxu0
    %v5398 = vadd.f32 %v5384, %v5397
    %5399 = vdwg.mxu0
    %5400 = vmatpush.bf16.msra.mxu0 %v4895
    %5401 = vmatpush.bf16.msra.mxu0 %v4891
    %5402 = vmatpush.bf16.msra.mxu0 %v4887
    %5403 = vmatpush.bf16.msra.mxu0 %v4883
    %5404 = vmatpush.bf16.msra.mxu0 %v4879
    %5405 = vmatpush.bf16.msra.mxu0 %v4875
    %5406 = vmatpush.bf16.msra.mxu0 %v4871
    %5407 = vmatpush.bf16.msra.mxu0 %v4867
    %5408 = vmatmul.bf16.gmra.mxu0 %v3669
    %v5409 = vpop.f32.mrf.mxu0
    %v5410 = vadd.f32 %v5396, %v5409
    %v5411 = vpop.f32.mrf.mxu0
    %v5412 = vadd.f32 %v5398, %v5411
    %5413 = vdwg.mxu0
    %5414 = vmatpush.bf16.msra.mxu0 %v4927
    %5415 = vmatpush.bf16.msra.mxu0 %v4923
    %5416 = vmatpush.bf16.msra.mxu0 %v4919
    %5417 = vmatpush.bf16.msra.mxu0 %v4915
    %5418 = vmatpush.bf16.msra.mxu0 %v4911
    %5419 = vmatpush.bf16.msra.mxu0 %v4907
    %5420 = vmatpush.bf16.msra.mxu0 %v4903
    %5421 = vmatpush.bf16.msra.mxu0 %v4899
    %5422 = vmatmul.bf16.gmra.mxu0 %v3670
    %v5423 = vpop.f32.mrf.mxu0
    %v5424 = vadd.f32 %v5410, %v5423
    %v5425 = vpop.f32.mrf.mxu0
    %v5426 = vadd.f32 %v5412, %v5425
    %5427 = vdwg.mxu0
    %5428 = vmatpush.bf16.msra.mxu0 %v4959
    %5429 = vmatpush.bf16.msra.mxu0 %v4955
    %5430 = vmatpush.bf16.msra.mxu0 %v4951
    %5431 = vmatpush.bf16.msra.mxu0 %v4947
    %5432 = vmatpush.bf16.msra.mxu0 %v4943
    %5433 = vmatpush.bf16.msra.mxu0 %v4939
    %5434 = vmatpush.bf16.msra.mxu0 %v4935
    %5435 = vmatpush.bf16.msra.mxu0 %v4931
    %5436 = vmatmul.bf16.gmra.mxu0 %v3671
    %v5437 = vpop.f32.mrf.mxu0
    %v5438 = vadd.f32 %v5424, %v5437
    %v5439 = vpop.f32.mrf.mxu0
    %v5440 = vadd.f32 %v5426, %v5439
    %5441 = vdwg.mxu0
    %5442 = vmatpush.bf16.msra.mxu0 %v4736
    %5443 = vmatpush.bf16.msra.mxu0 %v4732
    %5444 = vmatpush.bf16.msra.mxu0 %v4728
    %5445 = vmatpush.bf16.msra.mxu0 %v4724
    %5446 = vmatpush.bf16.msra.mxu0 %v4720
    %5447 = vmatpush.bf16.msra.mxu0 %v4716
    %5448 = vmatpush.bf16.msra.mxu0 %v4712
    %5449 = vmatpush.bf16.msra.mxu0 %v4708
    %5450 = vmatmul.bf16.gmra.mxu0 %v3664
    %v5451 = vpop.f32.mrf.mxu0
    %v5452 = vadd.f32 %v3932, %v5451
    %v5453 = vpop.f32.mrf.mxu0
    %v5454 = vadd.f32 %v3932, %v5453
    %5455 = vdwg.mxu0
    %5456 = vmatpush.bf16.msra.mxu0 %v4768
    %5457 = vmatpush.bf16.msra.mxu0 %v4764
    %5458 = vmatpush.bf16.msra.mxu0 %v4760
    %5459 = vmatpush.bf16.msra.mxu0 %v4756
    %5460 = vmatpush.bf16.msra.mxu0 %v4752
    %5461 = vmatpush.bf16.msra.mxu0 %v4748
    %5462 = vmatpush.bf16.msra.mxu0 %v4744
    %5463 = vmatpush.bf16.msra.mxu0 %v4740
    %5464 = vmatmul.bf16.gmra.mxu0 %v3665
    %v5465 = vpop.f32.mrf.mxu0
    %v5466 = vadd.f32 %v5452, %v5465
    %v5467 = vpop.f32.mrf.mxu0
    %v5468 = vadd.f32 %v5454, %v5467
    %5469 = vdwg.mxu0
    %5470 = vmatpush.bf16.msra.mxu0 %v4800
    %5471 = vmatpush.bf16.msra.mxu0 %v4796
    %5472 = vmatpush.bf16.msra.mxu0 %v4792
    %5473 = vmatpush.bf16.msra.mxu0 %v4788
    %5474 = vmatpush.bf16.msra.mxu0 %v4784
    %5475 = vmatpush.bf16.msra.mxu0 %v4780
    %5476 = vmatpush.bf16.msra.mxu0 %v4776
    %5477 = vmatpush.bf16.msra.mxu0 %v4772
    %5478 = vmatmul.bf16.gmra.mxu0 %v3666
    %v5479 = vpop.f32.mrf.mxu0
    %v5480 = vadd.f32 %v5466, %v5479
    %v5481 = vpop.f32.mrf.mxu0
    %v5482 = vadd.f32 %v5468, %v5481
    %5483 = vdwg.mxu0
    %5484 = vmatpush.bf16.msra.mxu0 %v4832
    %5485 = vmatpush.bf16.msra.mxu0 %v4828
    %5486 = vmatpush.bf16.msra.mxu0 %v4824
    %5487 = vmatpush.bf16.msra.mxu0 %v4820
    %5488 = vmatpush.bf16.msra.mxu0 %v4816
    %5489 = vmatpush.bf16.msra.mxu0 %v4812
    %5490 = vmatpush.bf16.msra.mxu0 %v4808
    %5491 = vmatpush.bf16.msra.mxu0 %v4804
    %5492 = vmatmul.bf16.gmra.mxu0 %v3667
    %v5493 = vpop.f32.mrf.mxu0
    %v5494 = vadd.f32 %v5480, %v5493
    %v5495 = vpop.f32.mrf.mxu0
    %v5496 = vadd.f32 %v5482, %v5495
    %5497 = vdwg.mxu0
    %5498 = vmatpush.bf16.msra.mxu0 %v4864
    %5499 = vmatpush.bf16.msra.mxu0 %v4860
    %5500 = vmatpush.bf16.msra.mxu0 %v4856
    %5501 = vmatpush.bf16.msra.mxu0 %v4852
    %5502 = vmatpush.bf16.msra.mxu0 %v4848
    %5503 = vmatpush.bf16.msra.mxu0 %v4844
    %5504 = vmatpush.bf16.msra.mxu0 %v4840
    %5505 = vmatpush.bf16.msra.mxu0 %v4836
    %5506 = vmatmul.bf16.gmra.mxu0 %v3668
    %v5507 = vpop.f32.mrf.mxu0
    %v5508 = vadd.f32 %v5494, %v5507
    %v5509 = vpop.f32.mrf.mxu0
    %v5510 = vadd.f32 %v5496, %v5509
    %5511 = vdwg.mxu0
    %5512 = vmatpush.bf16.msra.mxu0 %v4896
    %5513 = vmatpush.bf16.msra.mxu0 %v4892
    %5514 = vmatpush.bf16.msra.mxu0 %v4888
    %5515 = vmatpush.bf16.msra.mxu0 %v4884
    %5516 = vmatpush.bf16.msra.mxu0 %v4880
    %5517 = vmatpush.bf16.msra.mxu0 %v4876
    %5518 = vmatpush.bf16.msra.mxu0 %v4872
    %5519 = vmatpush.bf16.msra.mxu0 %v4868
    %5520 = vmatmul.bf16.gmra.mxu0 %v3669
    %v5521 = vpop.f32.mrf.mxu0
    %v5522 = vadd.f32 %v5508, %v5521
    %v5523 = vpop.f32.mrf.mxu0
    %v5524 = vadd.f32 %v5510, %v5523
    %5525 = vdwg.mxu0
    %5526 = vmatpush.bf16.msra.mxu0 %v4928
    %5527 = vmatpush.bf16.msra.mxu0 %v4924
    %5528 = vmatpush.bf16.msra.mxu0 %v4920
    %5529 = vmatpush.bf16.msra.mxu0 %v4916
    %5530 = vmatpush.bf16.msra.mxu0 %v4912
    %5531 = vmatpush.bf16.msra.mxu0 %v4908
    %5532 = vmatpush.bf16.msra.mxu0 %v4904
    %5533 = vmatpush.bf16.msra.mxu0 %v4900
    %5534 = vmatmul.bf16.gmra.mxu0 %v3670
    %v5535 = vpop.f32.mrf.mxu0
    %v5536 = vadd.f32 %v5522, %v5535
    %v5537 = vpop.f32.mrf.mxu0
    %v5538 = vadd.f32 %v5524, %v5537
    %5539 = vdwg.mxu0
    %5540 = vmatpush.bf16.msra.mxu0 %v4960
    %5541 = vmatpush.bf16.msra.mxu0 %v4956
    %5542 = vmatpush.bf16.msra.mxu0 %v4952
    %5543 = vmatpush.bf16.msra.mxu0 %v4948
    %5544 = vmatpush.bf16.msra.mxu0 %v4944
    %5545 = vmatpush.bf16.msra.mxu0 %v4940
    %5546 = vmatpush.bf16.msra.mxu0 %v4936
    %5547 = vmatpush.bf16.msra.mxu0 %v4932
    %5548 = vmatmul.bf16.gmra.mxu0 %v3671
    %v5549 = vpop.f32.mrf.mxu0
    %v5550 = vadd.f32 %v5536, %v5549
    %v5551 = vpop.f32.mrf.mxu0
    %v5552 = vadd.f32 %v5538, %v5551
    %5553 = vdwg.mxu0
    %5554 = vmatpush.bf16.msra.mxu0 %v4737
    %5555 = vmatpush.bf16.msra.mxu0 %v4733
    %5556 = vmatpush.bf16.msra.mxu0 %v4729
    %5557 = vmatpush.bf16.msra.mxu0 %v4725
    %5558 = vmatpush.bf16.msra.mxu0 %v4721
    %5559 = vmatpush.bf16.msra.mxu0 %v4717
    %5560 = vmatpush.bf16.msra.mxu0 %v4713
    %5561 = vmatpush.bf16.msra.mxu0 %v4709
    %5562 = vmatmul.bf16.gmra.mxu0 %v3664
    %v5563 = vpop.f32.mrf.mxu0
    %v5564 = vadd.f32 %v3933, %v5563
    %v5565 = vpop.f32.mrf.mxu0
    %v5566 = vadd.f32 %v3933, %v5565
    %5567 = vdwg.mxu0
    %5568 = vmatpush.bf16.msra.mxu0 %v4769
    %5569 = vmatpush.bf16.msra.mxu0 %v4765
    %5570 = vmatpush.bf16.msra.mxu0 %v4761
    %5571 = vmatpush.bf16.msra.mxu0 %v4757
    %5572 = vmatpush.bf16.msra.mxu0 %v4753
    %5573 = vmatpush.bf16.msra.mxu0 %v4749
    %5574 = vmatpush.bf16.msra.mxu0 %v4745
    %5575 = vmatpush.bf16.msra.mxu0 %v4741
    %5576 = vmatmul.bf16.gmra.mxu0 %v3665
    %v5577 = vpop.f32.mrf.mxu0
    %v5578 = vadd.f32 %v5564, %v5577
    %v5579 = vpop.f32.mrf.mxu0
    %v5580 = vadd.f32 %v5566, %v5579
    %5581 = vdwg.mxu0
    %5582 = vmatpush.bf16.msra.mxu0 %v4801
    %5583 = vmatpush.bf16.msra.mxu0 %v4797
    %5584 = vmatpush.bf16.msra.mxu0 %v4793
    %5585 = vmatpush.bf16.msra.mxu0 %v4789
    %5586 = vmatpush.bf16.msra.mxu0 %v4785
    %5587 = vmatpush.bf16.msra.mxu0 %v4781
    %5588 = vmatpush.bf16.msra.mxu0 %v4777
    %5589 = vmatpush.bf16.msra.mxu0 %v4773
    %5590 = vmatmul.bf16.gmra.mxu0 %v3666
    %v5591 = vpop.f32.mrf.mxu0
    %v5592 = vadd.f32 %v5578, %v5591
    %v5593 = vpop.f32.mrf.mxu0
    %v5594 = vadd.f32 %v5580, %v5593
    %5595 = vdwg.mxu0
    %5596 = vmatpush.bf16.msra.mxu0 %v4833
    %5597 = vmatpush.bf16.msra.mxu0 %v4829
    %5598 = vmatpush.bf16.msra.mxu0 %v4825
    %5599 = vmatpush.bf16.msra.mxu0 %v4821
    %5600 = vmatpush.bf16.msra.mxu0 %v4817
    %5601 = vmatpush.bf16.msra.mxu0 %v4813
    %5602 = vmatpush.bf16.msra.mxu0 %v4809
    %5603 = vmatpush.bf16.msra.mxu0 %v4805
    %5604 = vmatmul.bf16.gmra.mxu0 %v3667
    %v5605 = vpop.f32.mrf.mxu0
    %v5606 = vadd.f32 %v5592, %v5605
    %v5607 = vpop.f32.mrf.mxu0
    %v5608 = vadd.f32 %v5594, %v5607
    %5609 = vdwg.mxu0
    %5610 = vmatpush.bf16.msra.mxu0 %v4865
    %5611 = vmatpush.bf16.msra.mxu0 %v4861
    %5612 = vmatpush.bf16.msra.mxu0 %v4857
    %5613 = vmatpush.bf16.msra.mxu0 %v4853
    %5614 = vmatpush.bf16.msra.mxu0 %v4849
    %5615 = vmatpush.bf16.msra.mxu0 %v4845
    %5616 = vmatpush.bf16.msra.mxu0 %v4841
    %5617 = vmatpush.bf16.msra.mxu0 %v4837
    %5618 = vmatmul.bf16.gmra.mxu0 %v3668
    %v5619 = vpop.f32.mrf.mxu0
    %v5620 = vadd.f32 %v5606, %v5619
    %v5621 = vpop.f32.mrf.mxu0
    %v5622 = vadd.f32 %v5608, %v5621
    %5623 = vdwg.mxu0
    %5624 = vmatpush.bf16.msra.mxu0 %v4897
    %5625 = vmatpush.bf16.msra.mxu0 %v4893
    %5626 = vmatpush.bf16.msra.mxu0 %v4889
    %5627 = vmatpush.bf16.msra.mxu0 %v4885
    %5628 = vmatpush.bf16.msra.mxu0 %v4881
    %5629 = vmatpush.bf16.msra.mxu0 %v4877
    %5630 = vmatpush.bf16.msra.mxu0 %v4873
    %5631 = vmatpush.bf16.msra.mxu0 %v4869
    %5632 = vmatmul.bf16.gmra.mxu0 %v3669
    %v5633 = vpop.f32.mrf.mxu0
    %v5634 = vadd.f32 %v5620, %v5633
    %v5635 = vpop.f32.mrf.mxu0
    %v5636 = vadd.f32 %v5622, %v5635
    %5637 = vdwg.mxu0
    %5638 = vmatpush.bf16.msra.mxu0 %v4929
    %5639 = vmatpush.bf16.msra.mxu0 %v4925
    %5640 = vmatpush.bf16.msra.mxu0 %v4921
    %5641 = vmatpush.bf16.msra.mxu0 %v4917
    %5642 = vmatpush.bf16.msra.mxu0 %v4913
    %5643 = vmatpush.bf16.msra.mxu0 %v4909
    %5644 = vmatpush.bf16.msra.mxu0 %v4905
    %5645 = vmatpush.bf16.msra.mxu0 %v4901
    %5646 = vmatmul.bf16.gmra.mxu0 %v3670
    %v5647 = vpop.f32.mrf.mxu0
    %v5648 = vadd.f32 %v5634, %v5647
    %v5649 = vpop.f32.mrf.mxu0
    %v5650 = vadd.f32 %v5636, %v5649
    %5651 = vdwg.mxu0
    %5652 = vmatpush.bf16.msra.mxu0 %v4961
    %5653 = vmatpush.bf16.msra.mxu0 %v4957
    %5654 = vmatpush.bf16.msra.mxu0 %v4953
    %5655 = vmatpush.bf16.msra.mxu0 %v4949
    %5656 = vmatpush.bf16.msra.mxu0 %v4945
    %5657 = vmatpush.bf16.msra.mxu0 %v4941
    %5658 = vmatpush.bf16.msra.mxu0 %v4937
    %5659 = vmatpush.bf16.msra.mxu0 %v4933
    %5660 = vmatmul.bf16.gmra.mxu0 %v3671
    %v5661 = vpop.f32.mrf.mxu0
    %v5662 = vadd.f32 %v5648, %v5661
    %v5663 = vpop.f32.mrf.mxu0
    %v5664 = vadd.f32 %v5650, %v5663
    %5665 = vdwg.mxu0
    %v5666 = vmax.f32 %v5326, 0.0
    %v5667 = vmax.f32 %v5438, 0.0
    %v5668 = vmax.f32 %v5550, 0.0
    %v5669 = vmax.f32 %v5662, 0.0
    %v5670 = vmax.f32 %v5328, 0.0
    %v5671 = vmax.f32 %v5440, 0.0
    %v5672 = vmax.f32 %v5552, 0.0
    %v5673 = vmax.f32 %v5664, 0.0
    %v5674 = vpack.c.bf16 %v5670, %v5666
    %v5675 = vpack.c.bf16 %v5671, %v5667
    %v5676 = vpack.c.bf16 %v5672, %v5668
    %v5677 = vpack.c.bf16 %v5673, %v5669
    %v5678 = vld [vmem:[#allocation9] sm:$0xf]
    %v5679 = vld [vmem:[#allocation9 + $0x4] sm:$0xf]
    %v5680 = vld [vmem:[#allocation9 + $0x8] sm:$0xf]
    %v5681 = vld [vmem:[#allocation9 + $0xc] sm:$0xf]
    %v5682 = vld [vmem:[#allocation9 + $0x10] sm:$0xf]
    %v5683 = vld [vmem:[#allocation9 + $0x14] sm:$0xf]
    %v5684 = vld [vmem:[#allocation9 + $0x18] sm:$0xf]
    %v5685 = vld [vmem:[#allocation9 + $0x1c] sm:$0xf]
    %v5686 = vld [vmem:[#allocation9 + $0x20] sm:$0xf]
    %v5687 = vld [vmem:[#allocation9 + $0x24] sm:$0xf]
    %v5688 = vld [vmem:[#allocation9 + $0x28] sm:$0xf]
    %v5689 = vld [vmem:[#allocation9 + $0x2c] sm:$0xf]
    %v5690 = vld [vmem:[#allocation9 + $0x30] sm:$0xf]
    %v5691 = vld [vmem:[#allocation9 + $0x34] sm:$0xf]
    %v5692 = vld [vmem:[#allocation9 + $0x38] sm:$0xf]
    %v5693 = vld [vmem:[#allocation9 + $0x3c] sm:$0xf]
    %v5694 = vld [vmem:[#allocation9 + $0x40] sm:$0xf]
    %v5695 = vld [vmem:[#allocation9 + $0x44] sm:$0xf]
    %v5696 = vld [vmem:[#allocation9 + $0x48] sm:$0xf]
    %v5697 = vld [vmem:[#allocation9 + $0x4c] sm:$0xf]
    %v5698 = vld [vmem:[#allocation9 + $0x50] sm:$0xf]
    %v5699 = vld [vmem:[#allocation9 + $0x54] sm:$0xf]
    %v5700 = vld [vmem:[#allocation9 + $0x58] sm:$0xf]
    %v5701 = vld [vmem:[#allocation9 + $0x5c] sm:$0xf]
    %v5702 = vld [vmem:[#allocation9 + $0x60] sm:$0xf]
    %v5703 = vld [vmem:[#allocation9 + $0x64] sm:$0xf]
    %v5704 = vld [vmem:[#allocation9 + $0x68] sm:$0xf]
    %v5705 = vld [vmem:[#allocation9 + $0x6c] sm:$0xf]
    %v5706 = vld [vmem:[#allocation9 + $0x70] sm:$0xf]
    %v5707 = vld [vmem:[#allocation9 + $0x74] sm:$0xf]
    %v5708 = vld [vmem:[#allocation9 + $0x78] sm:$0xf]
    %v5709 = vld [vmem:[#allocation9 + $0x7c] sm:$0xf]
    %v5710 = vld [vmem:[#allocation9 + $0x80] sm:$0xf]
    %v5711 = vld [vmem:[#allocation9 + $0x84] sm:$0xf]
    %v5712 = vld [vmem:[#allocation9 + $0x88] sm:$0xf]
    %v5713 = vld [vmem:[#allocation9 + $0x8c] sm:$0xf]
    %v5714 = vld [vmem:[#allocation9 + $0x90] sm:$0xf]
    %v5715 = vld [vmem:[#allocation9 + $0x94] sm:$0xf]
    %v5716 = vld [vmem:[#allocation9 + $0x98] sm:$0xf]
    %v5717 = vld [vmem:[#allocation9 + $0x9c] sm:$0xf]
    %v5718 = vld [vmem:[#allocation9 + $0xa0] sm:$0xf]
    %v5719 = vld [vmem:[#allocation9 + $0xa4] sm:$0xf]
    %v5720 = vld [vmem:[#allocation9 + $0xa8] sm:$0xf]
    %v5721 = vld [vmem:[#allocation9 + $0xac] sm:$0xf]
    %v5722 = vld [vmem:[#allocation9 + $0xb0] sm:$0xf]
    %v5723 = vld [vmem:[#allocation9 + $0xb4] sm:$0xf]
    %v5724 = vld [vmem:[#allocation9 + $0xb8] sm:$0xf]
    %v5725 = vld [vmem:[#allocation9 + $0xbc] sm:$0xf]
    %v5726 = vld [vmem:[#allocation9 + $0xc0] sm:$0xf]
    %v5727 = vld [vmem:[#allocation9 + $0xc4] sm:$0xf]
    %v5728 = vld [vmem:[#allocation9 + $0xc8] sm:$0xf]
    %v5729 = vld [vmem:[#allocation9 + $0xcc] sm:$0xf]
    %v5730 = vld [vmem:[#allocation9 + $0xd0] sm:$0xf]
    %v5731 = vld [vmem:[#allocation9 + $0xd4] sm:$0xf]
    %v5732 = vld [vmem:[#allocation9 + $0xd8] sm:$0xf]
    %v5733 = vld [vmem:[#allocation9 + $0xdc] sm:$0xf]
    %v5734 = vld [vmem:[#allocation9 + $0xe0] sm:$0xf]
    %v5735 = vld [vmem:[#allocation9 + $0xe4] sm:$0xf]
    %v5736 = vld [vmem:[#allocation9 + $0xe8] sm:$0xf]
    %v5737 = vld [vmem:[#allocation9 + $0xec] sm:$0xf]
    %v5738 = vld [vmem:[#allocation9 + $0xf0] sm:$0xf]
    %v5739 = vld [vmem:[#allocation9 + $0xf4] sm:$0xf]
    %v5740 = vld [vmem:[#allocation9 + $0xf8] sm:$0xf]
    %v5741 = vld [vmem:[#allocation9 + $0xfc] sm:$0xf]
    %v5742 = vld [vmem:[#allocation10] sm:$0x1]
    %v5744 = vperm.slane %v5742, 0
    %v5810 = vunpack.c.l.b16 %v5678
    %v5811 = vunpack.c.l.b16 %v5679
    %v5812 = vunpack.c.l.b16 %v5680
    %v5813 = vunpack.c.l.b16 %v5681
    %v5814 = vunpack.c.l.b16 %v5682
    %v5815 = vunpack.c.l.b16 %v5683
    %v5816 = vunpack.c.l.b16 %v5684
    %v5817 = vunpack.c.l.b16 %v5685
    %v5818 = vunpack.c.l.b16 %v5686
    %v5819 = vunpack.c.l.b16 %v5687
    %v5820 = vunpack.c.l.b16 %v5688
    %v5821 = vunpack.c.l.b16 %v5689
    %v5822 = vunpack.c.l.b16 %v5690
    %v5823 = vunpack.c.l.b16 %v5691
    %v5824 = vunpack.c.l.b16 %v5692
    %v5825 = vunpack.c.l.b16 %v5693
    %v5826 = vunpack.c.l.b16 %v5694
    %v5827 = vunpack.c.l.b16 %v5695
    %v5828 = vunpack.c.l.b16 %v5696
    %v5829 = vunpack.c.l.b16 %v5697
    %v5830 = vunpack.c.l.b16 %v5698
    %v5831 = vunpack.c.l.b16 %v5699
    %v5832 = vunpack.c.l.b16 %v5700
    %v5833 = vunpack.c.l.b16 %v5701
    %v5834 = vunpack.c.l.b16 %v5702
    %v5835 = vunpack.c.l.b16 %v5703
    %v5836 = vunpack.c.l.b16 %v5704
    %v5837 = vunpack.c.l.b16 %v5705
    %v5838 = vunpack.c.l.b16 %v5706
    %v5839 = vunpack.c.l.b16 %v5707
    %v5840 = vunpack.c.l.b16 %v5708
    %v5841 = vunpack.c.l.b16 %v5709
    %v5842 = vunpack.c.l.b16 %v5710
    %v5843 = vunpack.c.l.b16 %v5711
    %v5844 = vunpack.c.l.b16 %v5712
    %v5845 = vunpack.c.l.b16 %v5713
    %v5846 = vunpack.c.l.b16 %v5714
    %v5847 = vunpack.c.l.b16 %v5715
    %v5848 = vunpack.c.l.b16 %v5716
    %v5849 = vunpack.c.l.b16 %v5717
    %v5850 = vunpack.c.l.b16 %v5718
    %v5851 = vunpack.c.l.b16 %v5719
    %v5852 = vunpack.c.l.b16 %v5720
    %v5853 = vunpack.c.l.b16 %v5721
    %v5854 = vunpack.c.l.b16 %v5722
    %v5855 = vunpack.c.l.b16 %v5723
    %v5856 = vunpack.c.l.b16 %v5724
    %v5857 = vunpack.c.l.b16 %v5725
    %v5858 = vunpack.c.l.b16 %v5726
    %v5859 = vunpack.c.l.b16 %v5727
    %v5860 = vunpack.c.l.b16 %v5728
    %v5861 = vunpack.c.l.b16 %v5729
    %v5862 = vunpack.c.l.b16 %v5730
    %v5863 = vunpack.c.l.b16 %v5731
    %v5864 = vunpack.c.l.b16 %v5732
    %v5865 = vunpack.c.l.b16 %v5733
    %v5866 = vunpack.c.l.b16 %v5734
    %v5867 = vunpack.c.l.b16 %v5735
    %v5868 = vunpack.c.l.b16 %v5736
    %v5869 = vunpack.c.l.b16 %v5737
    %v5870 = vunpack.c.l.b16 %v5738
    %v5871 = vunpack.c.l.b16 %v5739
    %v5872 = vunpack.c.l.b16 %v5740
    %v5873 = vunpack.c.l.b16 %v5741
    %v5874 = vpack.c.b16 %v5811, %v5810
    %v5875 = vpack.c.b16 %v5813, %v5812
    %v5876 = vpack.c.b16 %v5815, %v5814
    %v5877 = vpack.c.b16 %v5817, %v5816
    %v5878 = vpack.c.b16 %v5819, %v5818
    %v5879 = vpack.c.b16 %v5821, %v5820
    %v5880 = vpack.c.b16 %v5823, %v5822
    %v5881 = vpack.c.b16 %v5825, %v5824
    %v5882 = vpack.c.b16 %v5827, %v5826
    %v5883 = vpack.c.b16 %v5829, %v5828
    %v5884 = vpack.c.b16 %v5831, %v5830
    %v5885 = vpack.c.b16 %v5833, %v5832
    %v5886 = vpack.c.b16 %v5835, %v5834
    %v5887 = vpack.c.b16 %v5837, %v5836
    %v5888 = vpack.c.b16 %v5839, %v5838
    %v5889 = vpack.c.b16 %v5841, %v5840
    %v5890 = vpack.c.b16 %v5843, %v5842
    %v5891 = vpack.c.b16 %v5845, %v5844
    %v5892 = vpack.c.b16 %v5847, %v5846
    %v5893 = vpack.c.b16 %v5849, %v5848
    %v5894 = vpack.c.b16 %v5851, %v5850
    %v5895 = vpack.c.b16 %v5853, %v5852
    %v5896 = vpack.c.b16 %v5855, %v5854
    %v5897 = vpack.c.b16 %v5857, %v5856
    %v5898 = vpack.c.b16 %v5859, %v5858
    %v5899 = vpack.c.b16 %v5861, %v5860
    %v5900 = vpack.c.b16 %v5863, %v5862
    %v5901 = vpack.c.b16 %v5865, %v5864
    %v5902 = vpack.c.b16 %v5867, %v5866
    %v5903 = vpack.c.b16 %v5869, %v5868
    %v5904 = vpack.c.b16 %v5871, %v5870
    %v5905 = vpack.c.b16 %v5873, %v5872
    %5938 = vmatpush.bf16.msra.mxu0 %v5881
    %5939 = vmatpush.bf16.msra.mxu0 %v5880
    %5940 = vmatpush.bf16.msra.mxu0 %v5879
    %5941 = vmatpush.bf16.msra.mxu0 %v5878
    %5942 = vmatpush.bf16.msra.mxu0 %v5877
    %5943 = vmatpush.bf16.msra.mxu0 %v5876
    %5944 = vmatpush.bf16.msra.mxu0 %v5875
    %5945 = vmatpush.bf16.msra.mxu0 %v5874
    %5946 = vmatmul.bf16.gmra.mxu0 %v5674
    %v5947 = vpop.f32.mrf.mxu0
    %v5948 = vadd.f32 %v5744, %v5947
    %v5949 = vpop.f32.mrf.mxu0
    %v5950 = vadd.f32 %v5744, %v5949
    %5951 = vdwg.mxu0
    %5952 = vmatpush.bf16.msra.mxu0 %v5889
    %5953 = vmatpush.bf16.msra.mxu0 %v5888
    %5954 = vmatpush.bf16.msra.mxu0 %v5887
    %5955 = vmatpush.bf16.msra.mxu0 %v5886
    %5956 = vmatpush.bf16.msra.mxu0 %v5885
    %5957 = vmatpush.bf16.msra.mxu0 %v5884
    %5958 = vmatpush.bf16.msra.mxu0 %v5883
    %5959 = vmatpush.bf16.msra.mxu0 %v5882
    %5960 = vmatmul.bf16.gmra.mxu0 %v5675
    %v5961 = vpop.f32.mrf.mxu0
    %v5962 = vadd.f32 %v5948, %v5961
    %v5963 = vpop.f32.mrf.mxu0
    %v5964 = vadd.f32 %v5950, %v5963
    %5965 = vdwg.mxu0
    %5966 = vmatpush.bf16.msra.mxu0 %v5897
    %5967 = vmatpush.bf16.msra.mxu0 %v5896
    %5968 = vmatpush.bf16.msra.mxu0 %v5895
    %5969 = vmatpush.bf16.msra.mxu0 %v5894
    %5970 = vmatpush.bf16.msra.mxu0 %v5893
    %5971 = vmatpush.bf16.msra.mxu0 %v5892
    %5972 = vmatpush.bf16.msra.mxu0 %v5891
    %5973 = vmatpush.bf16.msra.mxu0 %v5890
    %5974 = vmatmul.bf16.gmra.mxu0 %v5676
    %v5975 = vpop.f32.mrf.mxu0
    %v5976 = vadd.f32 %v5962, %v5975
    %v5977 = vpop.f32.mrf.mxu0
    %v5978 = vadd.f32 %v5964, %v5977
    %5979 = vdwg.mxu0
    %5980 = vmatpush.bf16.msra.mxu0 %v5905
    %5981 = vmatpush.bf16.msra.mxu0 %v5904
    %5982 = vmatpush.bf16.msra.mxu0 %v5903
    %5983 = vmatpush.bf16.msra.mxu0 %v5902
    %5984 = vmatpush.bf16.msra.mxu0 %v5901
    %5985 = vmatpush.bf16.msra.mxu0 %v5900
    %5986 = vmatpush.bf16.msra.mxu0 %v5899
    %5987 = vmatpush.bf16.msra.mxu0 %v5898
    %5988 = vmatmul.bf16.gmra.mxu0 %v5677
    %v5989 = vpop.f32.mrf.mxu0
    %v5990 = vadd.f32 %v5976, %v5989
    %v5991 = vpop.f32.mrf.mxu0
    %v5992 = vadd.f32 %v5978, %v5991
    %5993 = vdwg.mxu0
    %5994 = vst [vmem:[%s7] sm:$0xff] %v5990
    %5995 = vst [vmem:[%s7 + $0x8] sm:$0xff] %v5992
    // Predicated region
    $region54: #{mlp_forward.1} parent=1 // pred_check
      _
    $region55: #{mlp_forward.1} parent=1 // pred_check_branch
      %5997 = sbr.rel (0) target = $region57
    $region56: #{mlp_forward.1} parent=1 // pred_region
      _
    $region57: #{mlp_forward.1} parent=1 // pred_fallthru
      _
    // Predicated region
    $region58: #{mlp_forward.1} parent=1 // pred_check
      _
    $region59: #{mlp_forward.1} parent=1 // pred_check_branch
      %5999 = sbr.rel (0) target = $region61
    $region60: #{mlp_forward.1} parent=1 // pred_region
      _
    $region61: #{mlp_forward.1} parent=1 // pred_fallthru
      _
    %6000 = vsyncpa [#allocation3], 1
    %6001 = vsyncpa [#allocation5], 1
    %6002 = vsyncpa [#allocation8], 1
    %6003 = vsyncpa [#allocation11], 1

</llo_original>
